<compile_context>
chip_gen: v7x
topology: tpu7x:2x2x1
jax: 0.10.0
libtpu: 0.0.40
codegen_flags: <defaults>
</compile_context>

<pallas_src>
import functools

import jax
import jax.numpy as jnp
from jax import lax
from jax.experimental import pallas as pl
from jax.experimental.pallas import tpu as pltpu


# ---------------------------------------------------------------------------
# Banded weight-matrix builders (wrapper-side, one-time packing).
# Activation rows are lane-dense: row[h, w*C + c] = x[h, w, c].
# ---------------------------------------------------------------------------
def _band_matrix_s1(wk, W):
    """wk: (3, Cin, Cout) kw-taps at a fixed kh -> (W*Cin, W*Cout).

    Folds the kw contraction of a 3x3 / stride-1 / pad-1 conv along W;
    'same' zero padding is encoded by omitting out-of-range taps."""
    k, Cin, Cout = wk.shape
    rows = jnp.arange(W * Cin)
    cols = jnp.arange(W * Cout)
    w_in, ci = rows // Cin, rows % Cin
    w_out, co = cols // Cout, cols % Cout
    kw = w_in[:, None] - w_out[None, :] + 1          # +1 <=> pad=1
    valid = (kw >= 0) & (kw < k)
    vals = wk[jnp.clip(kw, 0, k - 1), ci[:, None], co[None, :]]
    return jnp.where(valid, vals, 0.0)


def _band_matrix_s2(wk, W):
    """wk: (2, Cin, Cout) kw-taps at a fixed kh -> (W*Cin, (W//2)*Cout).

    Folds the kw contraction of a 2x2 / stride-2 / no-pad conv along W."""
    k, Cin, Cout = wk.shape
    Wo = W // 2
    rows = jnp.arange(W * Cin)
    cols = jnp.arange(Wo * Cout)
    w_in, ci = rows // Cin, rows % Cin
    w_out, co = cols // Cout, cols % Cout
    kw = w_in[:, None] - 2 * w_out[None, :]
    valid = (kw >= 0) & (kw < k)
    vals = wk[jnp.clip(kw, 0, k - 1), ci[:, None], co[None, :]]
    return jnp.where(valid, vals, 0.0)


def pack_params(params, H, W):
    """Pack HWIO conv params into kh-concatenated banded bf16 matmul operands.

    TODO(synk): at large W*C cap the banded block (tile along W with a kw halo)
    instead of letting these matrices grow quadratically."""
    w1, b1 = params["w1"], params["b1"]          # (3,3,Cin,Cin)
    w2, b2 = params["w2"], params["b2"]          # (3,3,Cin,Cin)
    w3, b3 = params["w3"], params["b3"]          # (2,2,Cin,Cout)
    Wo = W // 2
    # kh taps stacked along K -> one fused dot per conv (K = 3*W*C / 2*W*C).
    m1 = jnp.concatenate([_band_matrix_s1(w1[kh], W) for kh in range(3)],
                         axis=0).astype(jnp.bfloat16)     # (3*W*Cin, W*Cin)
    m2 = jnp.concatenate([_band_matrix_s1(w2[kh], W) for kh in range(3)],
                         axis=0).astype(jnp.bfloat16)     # (3*W*Cin, W*Cin)
    m3 = jnp.concatenate([_band_matrix_s2(w3[kh], W) for kh in range(2)],
                         axis=0).astype(jnp.bfloat16)     # (2*W*Cin, Wo*Cout)
    b1r = jnp.tile(b1, W)[None, :].astype(jnp.float32)    # (1, W*Cin)
    b2r = jnp.tile(b2, W)[None, :].astype(jnp.float32)    # (1, W*Cin)
    b3r = jnp.tile(b3, Wo)[None, :].astype(jnp.float32)   # (1, Wo*Cout)
    return dict(m1=m1, b1=b1r, m2=m2, b2=b2r, m3=m3, b3=b3r)


# ---------------------------------------------------------------------------
# Fused kernel: B_TILE images per grid step, everything stays in VMEM.
# ---------------------------------------------------------------------------
def _encoder_fused_kernel(x_ref, m1_ref, b1_ref, m2_ref, b2_ref, m3_ref, b3_ref,
                          o_ref, pad_ref, r1_ref, y2_ref, c3_ref, *, bt, H):
    # x_ref  : (bt*H, W*Cin)        bf16 lane-dense input tile
    # m1_ref : (3*W*Cin, W*Cin)     bf16 banded weights (kh taps stacked on K)
    # m2_ref : (3*W*Cin, W*Cin)     bf16
    # m3_ref : (2*W*Cin, Wo*Cout)   bf16 (even-row band | odd-row band on K)
    # b*_ref : (1, lanes)           f32 lane-tiled biases
    # o_ref  : (bt*Ho, Wo*Cout)     f32 output tile (lane-dense, unmasked vst)
    # pad_ref: (bt*(H+2)+2, W*Cin)  bf16 per-image H-padded activations
    # r1_ref : (bt*(H+2), 3*W*Cin)  bf16 im2row operand (reused by conv1/conv2)
    # y2_ref : (bt*(H+2), W*Cin)    f32 conv2 output (stride-2 gather source)
    # c3_ref : (bt*Ho, 2*W*Cin)     bf16 conv3 operand (even|odd row pairs)
    WC = x_ref.shape[1]
    Hp = H + 2
    Ho = H // 2
    M = bt * Hp          # matmul M rows; 2 unused "junk" rows per image.

    # Fresh padded scratch every step (no cross-step state -> megacore-safe).
    pad_ref[...] = jnp.zeros_like(pad_ref)

    def fill_taps():
        # r1[j, k*WC:(k+1)*WC] = padded_row[j + k]  ->  fused K = 3*WC operand.
        for k in range(3):
            r1_ref[:, k * WC:(k + 1) * WC] = pad_ref[k:k + M, :]

    def zero_borders():
        # Re-zero the per-image border rows (and the 2 trailing virtual rows)
        # clobbered by a bulk interior store.
        zrow = jnp.zeros((1, WC), jnp.bfloat16)
        for i in range(bt):
            pad_ref[i * Hp:i * Hp + 1, :] = zrow
            pad_ref[i * Hp + H + 1:i * Hp + H + 2, :] = zrow
        pad_ref[M:M + 2, :] = jnp.zeros((2, WC), jnp.bfloat16)

    # ---- conv1: 3x3 / s1 / pad1 + bias + ReLU ------------------------------
    for i in range(bt):                  # image i -> padded rows i*Hp+1..i*Hp+H
        pad_ref[i * Hp + 1:i * Hp + 1 + H, :] = x_ref[i * H:(i + 1) * H, :]
    fill_taps()
    acc1 = jnp.dot(r1_ref[...], m1_ref[...], preferred_element_type=jnp.float32)
    y1 = jnp.maximum(acc1 + b1_ref[...], 0.0).astype(jnp.bfloat16)     # (M, WC)

    # ---- conv2: 3x3 / s1 / pad1 + bias + ReLU ------------------------------
    pad_ref[1:1 + M, :] = y1             # y1 row j -> padded row j+1
    zero_borders()
    fill_taps()
    acc2 = jnp.dot(r1_ref[...], m2_ref[...], preferred_element_type=jnp.float32)
    y2_ref[...] = jnp.maximum(acc2 + b2_ref[...], 0.0)                 # (M, WC)

    # ---- conv3: 2x2 / s2 / valid + bias + ReLU -----------------------------
    # Even/odd rows of every image gathered with stride-2 sublane reads and
    # concatenated along K -> one (bt*Ho, 2*WC) @ (2*WC, Wo*Cout) dot.
    for i in range(bt):
        base = i * Hp
        c3_ref[i * Ho:(i + 1) * Ho, 0:WC] = (
            y2_ref[pl.ds(base, Ho, stride=2), :].astype(jnp.bfloat16))
        c3_ref[i * Ho:(i + 1) * Ho, WC:2 * WC] = (
            y2_ref[pl.ds(base + 1, Ho, stride=2), :].astype(jnp.bfloat16))
    acc3 = jnp.dot(c3_ref[...], m3_ref[...], preferred_element_type=jnp.float32)
    o_ref[...] = jnp.maximum(acc3 + b3_ref[...], 0.0)                  # (bt*Ho, WoC)


def _pick_batch_tile(N, H, target_rows=128):
    """Smallest divisor of N whose conv matmul M = bt*(H+2) reaches
    target_rows (>=128 fills a v5e MXU pass; use >=256 on v6e/v7x once the
    batch is large enough)."""
    bt = 1
    for cand in range(1, N + 1):
        if N % cand == 0:
            bt = cand
            if cand * (H + 2) >= target_rows:
                break
    return bt


@jax.jit
def encoder_layer_forward(x_nchw, packed):
    """NCHW in / NCHW out, matching the PyTorch module."""
    N, Cin, H, W = x_nchw.shape
    Ho, Wo = H // 2, W // 2
    m1, m2, m3 = packed["m1"], packed["m2"], packed["m3"]
    b1, b2, b3 = packed["b1"], packed["b2"], packed["b3"]
    WC = W * Cin                      # conv1/conv2 lane width (Cmid == Cin)
    WoC = m3.shape[1]                 # Wo * Cout
    Cout = WoC // Wo
    assert H % 2 == 0 and W % 2 == 0
    assert WC % 128 == 0 and WoC % 128 == 0, (
        "lane-dense layout expects W*Cin and (W//2)*Cout to be multiples of 128")
    bt = _pick_batch_tile(N, H)
    MR = bt * (H + 2)

    # NCHW -> NHWC -> lane-dense rows (the reshape is free, row-major); bf16
    # halves input DMA -- matmul operands are bf16 anyway, accumulation is f32.
    x2d = jnp.transpose(x_nchw, (0, 2, 3, 1)).reshape(N * H, WC).astype(jnp.bfloat16)

    def const_spec(shape):
        # Grid-constant block: DMA'd once, single-buffered (no pointless
        # double-buffering of weights -- matters on v7x's 64 MiB VMEM).
        return pl.BlockSpec(shape, lambda n: (0,) * len(shape),
                            pipeline_mode=pl.Buffered(1))

    kernel = functools.partial(_encoder_fused_kernel, bt=bt, H=H)

    out2d = pl.pallas_call(
        kernel,
        out_shape=jax.ShapeDtypeStruct((N * Ho, WoC), jnp.float32),
        grid=(N // bt,),
        in_specs=[
            pl.BlockSpec((bt * H, WC), lambda n: (n, 0)),   # input batch tile
            const_spec((3 * WC, WC)),                        # m1
            const_spec((1, WC)),                             # b1
            const_spec((3 * WC, WC)),                        # m2
            const_spec((1, WC)),                             # b2
            const_spec((2 * WC, WoC)),                       # m3
            const_spec((1, WoC)),                            # b3
        ],
        out_specs=pl.BlockSpec((bt * Ho, WoC), lambda n: (n, 0)),
        scratch_shapes=[
            pltpu.VMEM((MR + 2, WC), jnp.bfloat16),          # padded activations
            pltpu.VMEM((MR, 3 * WC), jnp.bfloat16),          # im2row operand
            pltpu.VMEM((MR, WC), jnp.float32),               # conv2 output
            pltpu.VMEM((bt * Ho, 2 * WC), jnp.bfloat16),     # conv3 operand
        ],
        compiler_params=pltpu.CompilerParams(
            dimension_semantics=("parallel",),
            vmem_limit_bytes=32 * 1024 * 1024),
    )(x2d, m1, b1, m2, b2, m3, b3)

    # (N*Ho, Wo*Cout) -> (N, Cout, Ho, Wo)
    return out2d.reshape(N, Ho, Wo, Cout).transpose(0, 3, 1, 2)


# ---------------------------------------------------------------------------
# Parameter init + pure-JAX reference (for correctness checking).
# ---------------------------------------------------------------------------
def init_params(key, in_channels, out_channels):
    ks = jax.random.split(key, 6)
    scale = 0.1
    return {
        # HWIO layout (kh, kw, Cin, Cout)
        "w1": scale * jax.random.normal(ks[0], (3, 3, in_channels, in_channels), jnp.float32),
        "b1": scale * jax.random.normal(ks[1], (in_channels,), jnp.float32),
        "w2": scale * jax.random.normal(ks[2], (3, 3, in_channels, in_channels), jnp.float32),
        "b2": scale * jax.random.normal(ks[3], (in_channels,), jnp.float32),
        "w3": scale * jax.random.normal(ks[4], (2, 2, in_channels, out_channels), jnp.float32),
        "b3": scale * jax.random.normal(ks[5], (out_channels,), jnp.float32),
    }


def reference_forward(x_nchw, params):
    """Pure-JAX f32 reference (lax.conv) matching the PyTorch module."""
    def conv(x, w, b, stride, pad):
        y = lax.conv_general_dilated(
            x, w, window_strides=(stride, stride), padding=pad,
            dimension_numbers=("NHWC", "HWIO", "NHWC"))
        return jnp.maximum(y + b, 0.0)
    x = jnp.transpose(x_nchw, (0, 2, 3, 1))
    x = conv(x, params["w1"], params["b1"], 1, ((1, 1), (1, 1)))
    x = conv(x, params["w2"], params["b2"], 1, ((1, 1), (1, 1)))
    x = conv(x, params["w3"], params["b3"], 2, ((0, 0), (0, 0)))
    return jnp.transpose(x, (0, 3, 1, 2))


if __name__ == "__main__":
    # N=16 so the batch tile (8 images -> M=144 matmul rows) and a 2-step grid
    # are both exercised; channel/spatial sizes give 128-lane-dense rows.
    N, Cin, Cout, H, W = 16, 8, 16, 16, 16
    key = jax.random.PRNGKey(0)
    kx, kp = jax.random.split(key)
    x = jax.random.normal(kx, (N, Cin, H, W), jnp.float32)   # NCHW, like PyTorch
    params = init_params(kp, Cin, Cout)
    packed = pack_params(params, H, W)                        # one-time packing

    out = jax.block_until_ready(encoder_layer_forward(x, packed))
    assert out.shape == (N, Cout, H // 2, W // 2), out.shape

    ref = jax.block_until_ready(reference_forward(x, params))
    # bf16 matmul operands (f32 accumulation) vs f32 reference -> loosened tol.
    max_err = float(jnp.max(jnp.abs(out - ref)))
    assert jnp.allclose(out, ref, atol=5e-2, rtol=5e-2), max_err

    print("KERNEL_OK")
</pallas_src>

<mosaic_0001>
module attributes {stable_mosaic.version = 11 : i64} {
  func.func @_encoder_fused_kernel(%arg0: i32, %arg1: memref<128x128xbf16, #tpu.memory_space<vmem>>, %arg2: memref<384x128xbf16, #tpu.memory_space<vmem>>, %arg3: memref<1x128xf32, #tpu.memory_space<vmem>>, %arg4: memref<384x128xbf16, #tpu.memory_space<vmem>>, %arg5: memref<1x128xf32, #tpu.memory_space<vmem>>, %arg6: memref<256x128xbf16, #tpu.memory_space<vmem>>, %arg7: memref<1x128xf32, #tpu.memory_space<vmem>>, %arg8: memref<64x128xf32, #tpu.memory_space<vmem>>, %arg9: memref<146x128xbf16, #tpu.memory_space<vmem>>, %arg10: memref<144x384xbf16, #tpu.memory_space<vmem>>, %arg11: memref<144x128xf32, #tpu.memory_space<vmem>>, %arg12: memref<64x256xbf16, #tpu.memory_space<vmem>>) attributes {dimension_semantics = [#tpu.dimension_semantics<parallel>], iteration_bounds = array<i64: 2>, scalar_prefetch = 0 : i64, scratch_operands = 4 : i64, tpu.core_type = #tpu.core_type<tc>, window_params = [{transform_indices = @transform_0, window_bounds = array<i64: 128, 128>}, {pipeline_mode = #tpu.pipeline_mode<synchronous>, transform_indices = @transform_1, window_bounds = array<i64: 384, 128>}, {pipeline_mode = #tpu.pipeline_mode<synchronous>, transform_indices = @transform_2, window_bounds = array<i64: 1, 128>}, {pipeline_mode = #tpu.pipeline_mode<synchronous>, transform_indices = @transform_3, window_bounds = array<i64: 384, 128>}, {pipeline_mode = #tpu.pipeline_mode<synchronous>, transform_indices = @transform_4, window_bounds = array<i64: 1, 128>}, {pipeline_mode = #tpu.pipeline_mode<synchronous>, transform_indices = @transform_5, window_bounds = array<i64: 256, 128>}, {pipeline_mode = #tpu.pipeline_mode<synchronous>, transform_indices = @transform_6, window_bounds = array<i64: 1, 128>}, {transform_indices = @transform_7, window_bounds = array<i64: 64, 128>}]} {
    %cst = arith.constant 0.000000e+00 : bf16
    %0 = vector.broadcast %cst : bf16 to vector<146x128xbf16>
    %c0 = arith.constant 0 : index
    %c0_0 = arith.constant 0 : index
    %1 = vector.load %arg9[%c0, %c0_0] : memref<146x128xbf16, #tpu.memory_space<vmem>>, vector<146x128xbf16>
    tpu.vector_store %arg9[%c0, %c0_0], %0 {strides = array<i32>} : memref<146x128xbf16, #tpu.memory_space<vmem>>, vector<146x128xbf16>,
    %c0_1 = arith.constant 0 : index
    %c0_2 = arith.constant 0 : index
    %2 = vector.load %arg1[%c0_1, %c0_2] : memref<128x128xbf16, #tpu.memory_space<vmem>>, vector<16x128xbf16>
    %c1 = arith.constant 1 : index
    %c0_3 = arith.constant 0 : index
    %3 = vector.load %arg9[%c1, %c0_3] : memref<146x128xbf16, #tpu.memory_space<vmem>>, vector<16x128xbf16>
    tpu.vector_store %arg9[%c1, %c0_3], %2 {strides = array<i32>} : memref<146x128xbf16, #tpu.memory_space<vmem>>, vector<16x128xbf16>,
    %c16 = arith.constant 16 : index
    %c0_4 = arith.constant 0 : index
    %4 = vector.load %arg1[%c16, %c0_4] : memref<128x128xbf16, #tpu.memory_space<vmem>>, vector<16x128xbf16>
    %c19 = arith.constant 19 : index
    %c0_5 = arith.constant 0 : index
    %5 = vector.load %arg9[%c19, %c0_5] : memref<146x128xbf16, #tpu.memory_space<vmem>>, vector<16x128xbf16>
    tpu.vector_store %arg9[%c19, %c0_5], %4 {strides = array<i32>} : memref<146x128xbf16, #tpu.memory_space<vmem>>, vector<16x128xbf16>,
    %c32 = arith.constant 32 : index
    %c0_6 = arith.constant 0 : index
    %6 = vector.load %arg1[%c32, %c0_6] : memref<128x128xbf16, #tpu.memory_space<vmem>>, vector<16x128xbf16>
    %c37 = arith.constant 37 : index
    %c0_7 = arith.constant 0 : index
    %7 = vector.load %arg9[%c37, %c0_7] : memref<146x128xbf16, #tpu.memory_space<vmem>>, vector<16x128xbf16>
    tpu.vector_store %arg9[%c37, %c0_7], %6 {strides = array<i32>} : memref<146x128xbf16, #tpu.memory_space<vmem>>, vector<16x128xbf16>,
    %c48 = arith.constant 48 : index
    %c0_8 = arith.constant 0 : index
    %8 = vector.load %arg1[%c48, %c0_8] : memref<128x128xbf16, #tpu.memory_space<vmem>>, vector<16x128xbf16>
    %c55 = arith.constant 55 : index
    %c0_9 = arith.constant 0 : index
    %9 = vector.load %arg9[%c55, %c0_9] : memref<146x128xbf16, #tpu.memory_space<vmem>>, vector<16x128xbf16>
    tpu.vector_store %arg9[%c55, %c0_9], %8 {strides = array<i32>} : memref<146x128xbf16, #tpu.memory_space<vmem>>, vector<16x128xbf16>,
    %c64 = arith.constant 64 : index
    %c0_10 = arith.constant 0 : index
    %10 = vector.load %arg1[%c64, %c0_10] : memref<128x128xbf16, #tpu.memory_space<vmem>>, vector<16x128xbf16>
    %c73 = arith.constant 73 : index
    %c0_11 = arith.constant 0 : index
    %11 = vector.load %arg9[%c73, %c0_11] : memref<146x128xbf16, #tpu.memory_space<vmem>>, vector<16x128xbf16>
    tpu.vector_store %arg9[%c73, %c0_11], %10 {strides = array<i32>} : memref<146x128xbf16, #tpu.memory_space<vmem>>, vector<16x128xbf16>,
    %c80 = arith.constant 80 : index
    %c0_12 = arith.constant 0 : index
    %12 = vector.load %arg1[%c80, %c0_12] : memref<128x128xbf16, #tpu.memory_space<vmem>>, vector<16x128xbf16>
    %c91 = arith.constant 91 : index
    %c0_13 = arith.constant 0 : index
    %13 = vector.load %arg9[%c91, %c0_13] : memref<146x128xbf16, #tpu.memory_space<vmem>>, vector<16x128xbf16>
    tpu.vector_store %arg9[%c91, %c0_13], %12 {strides = array<i32>} : memref<146x128xbf16, #tpu.memory_space<vmem>>, vector<16x128xbf16>,
    %c96 = arith.constant 96 : index
    %c0_14 = arith.constant 0 : index
    %14 = vector.load %arg1[%c96, %c0_14] : memref<128x128xbf16, #tpu.memory_space<vmem>>, vector<16x128xbf16>
    %c109 = arith.constant 109 : index
    %c0_15 = arith.constant 0 : index
    %15 = vector.load %arg9[%c109, %c0_15] : memref<146x128xbf16, #tpu.memory_space<vmem>>, vector<16x128xbf16>
    tpu.vector_store %arg9[%c109, %c0_15], %14 {strides = array<i32>} : memref<146x128xbf16, #tpu.memory_space<vmem>>, vector<16x128xbf16>,
    %c112 = arith.constant 112 : index
    %c0_16 = arith.constant 0 : index
    %16 = vector.load %arg1[%c112, %c0_16] : memref<128x128xbf16, #tpu.memory_space<vmem>>, vector<16x128xbf16>
    %c127 = arith.constant 127 : index
    %c0_17 = arith.constant 0 : index
    %17 = vector.load %arg9[%c127, %c0_17] : memref<146x128xbf16, #tpu.memory_space<vmem>>, vector<16x128xbf16>
    tpu.vector_store %arg9[%c127, %c0_17], %16 {strides = array<i32>} : memref<146x128xbf16, #tpu.memory_space<vmem>>, vector<16x128xbf16>,
    %c0_18 = arith.constant 0 : index
    %c0_19 = arith.constant 0 : index
    %18 = vector.load %arg9[%c0_18, %c0_19] : memref<146x128xbf16, #tpu.memory_space<vmem>>, vector<144x128xbf16>
    %c0_20 = arith.constant 0 : index
    %c0_21 = arith.constant 0 : index
    %19 = vector.load %arg10[%c0_20, %c0_21] : memref<144x384xbf16, #tpu.memory_space<vmem>>, vector<144x128xbf16>
    tpu.vector_store %arg10[%c0_20, %c0_21], %18 {strides = array<i32>} : memref<144x384xbf16, #tpu.memory_space<vmem>>, vector<144x128xbf16>,
    %c1_22 = arith.constant 1 : index
    %c0_23 = arith.constant 0 : index
    %20 = vector.load %arg9[%c1_22, %c0_23] : memref<146x128xbf16, #tpu.memory_space<vmem>>, vector<144x128xbf16>
    %c0_24 = arith.constant 0 : index
    %c128 = arith.constant 128 : index
    %21 = vector.load %arg10[%c0_24, %c128] : memref<144x384xbf16, #tpu.memory_space<vmem>>, vector<144x128xbf16>
    tpu.vector_store %arg10[%c0_24, %c128], %20 {strides = array<i32>} : memref<144x384xbf16, #tpu.memory_space<vmem>>, vector<144x128xbf16>,
    %c2 = arith.constant 2 : index
    %c0_25 = arith.constant 0 : index
    %22 = vector.load %arg9[%c2, %c0_25] : memref<146x128xbf16, #tpu.memory_space<vmem>>, vector<144x128xbf16>
    %c0_26 = arith.constant 0 : index
    %c256 = arith.constant 256 : index
    %23 = vector.load %arg10[%c0_26, %c256] : memref<144x384xbf16, #tpu.memory_space<vmem>>, vector<144x128xbf16>
    tpu.vector_store %arg10[%c0_26, %c256], %22 {strides = array<i32>} : memref<144x384xbf16, #tpu.memory_space<vmem>>, vector<144x128xbf16>,
    %c0_27 = arith.constant 0 : index
    %c0_28 = arith.constant 0 : index
    %24 = vector.load %arg10[%c0_27, %c0_28] : memref<144x384xbf16, #tpu.memory_space<vmem>>, vector<144x384xbf16>
    %c0_29 = arith.constant 0 : index
    %c0_30 = arith.constant 0 : index
    %25 = vector.load %arg2[%c0_29, %c0_30] : memref<384x128xbf16, #tpu.memory_space<vmem>>, vector<384x128xbf16>
    %cst_31 = arith.constant dense<0.000000e+00> : vector<144x128xf32>
    %26 = tpu.matmul %24, %25, %cst_31 {dimension_numbers = #tpu.dot_dimension_numbers<[1], [0], [0], [1], [0, 0, 1, 1], [], []>} : vector<144x384xbf16>, vector<384x128xbf16>, vector<144x128xf32> -> vector<144x128xf32>
    %c0_32 = arith.constant 0 : index
    %c0_33 = arith.constant 0 : index
    %27 = vector.load %arg3[%c0_32, %c0_33] : memref<1x128xf32, #tpu.memory_space<vmem>>, vector<1x128xf32>
    %28 = vector.broadcast %27 : vector<1x128xf32> to vector<144x128xf32>
    %29 = arith.addf %26, %28 : vector<144x128xf32>
    %cst_34 = arith.constant 0.000000e+00 : f32
    %30 = vector.broadcast %cst_34 : f32 to vector<144x128xf32>
    %31 = arith.maximumf %29, %30 : vector<144x128xf32>
    %32 = arith.truncf %31 : vector<144x128xf32> to vector<144x128xbf16>
    %c1_35 = arith.constant 1 : index
    %c0_36 = arith.constant 0 : index
    %33 = vector.load %arg9[%c1_35, %c0_36] : memref<146x128xbf16, #tpu.memory_space<vmem>>, vector<144x128xbf16>
    tpu.vector_store %arg9[%c1_35, %c0_36], %32 {strides = array<i32>} : memref<146x128xbf16, #tpu.memory_space<vmem>>, vector<144x128xbf16>,
    %cst_37 = arith.constant 0.000000e+00 : bf16
    %34 = vector.broadcast %cst_37 : bf16 to vector<1x128xbf16>
    %c0_38 = arith.constant 0 : index
    %c0_39 = arith.constant 0 : index
    %35 = vector.load %arg9[%c0_38, %c0_39] : memref<146x128xbf16, #tpu.memory_space<vmem>>, vector<1x128xbf16>
    tpu.vector_store %arg9[%c0_38, %c0_39], %34 {strides = array<i32>} : memref<146x128xbf16, #tpu.memory_space<vmem>>, vector<1x128xbf16>,
    %c17 = arith.constant 17 : index
    %c0_40 = arith.constant 0 : index
    %36 = vector.load %arg9[%c17, %c0_40] : memref<146x128xbf16, #tpu.memory_space<vmem>>, vector<1x128xbf16>
    tpu.vector_store %arg9[%c17, %c0_40], %34 {strides = array<i32>} : memref<146x128xbf16, #tpu.memory_space<vmem>>, vector<1x128xbf16>,
    %c18 = arith.constant 18 : index
    %c0_41 = arith.constant 0 : index
    %37 = vector.load %arg9[%c18, %c0_41] : memref<146x128xbf16, #tpu.memory_space<vmem>>, vector<1x128xbf16>
    tpu.vector_store %arg9[%c18, %c0_41], %34 {strides = array<i32>} : memref<146x128xbf16, #tpu.memory_space<vmem>>, vector<1x128xbf16>,
    %c35 = arith.constant 35 : index
    %c0_42 = arith.constant 0 : index
    %38 = vector.load %arg9[%c35, %c0_42] : memref<146x128xbf16, #tpu.memory_space<vmem>>, vector<1x128xbf16>
    tpu.vector_store %arg9[%c35, %c0_42], %34 {strides = array<i32>} : memref<146x128xbf16, #tpu.memory_space<vmem>>, vector<1x128xbf16>,
    %c36 = arith.constant 36 : index
    %c0_43 = arith.constant 0 : index
    %39 = vector.load %arg9[%c36, %c0_43] : memref<146x128xbf16, #tpu.memory_space<vmem>>, vector<1x128xbf16>
    tpu.vector_store %arg9[%c36, %c0_43], %34 {strides = array<i32>} : memref<146x128xbf16, #tpu.memory_space<vmem>>, vector<1x128xbf16>,
    %c53 = arith.constant 53 : index
    %c0_44 = arith.constant 0 : index
    %40 = vector.load %arg9[%c53, %c0_44] : memref<146x128xbf16, #tpu.memory_space<vmem>>, vector<1x128xbf16>
    tpu.vector_store %arg9[%c53, %c0_44], %34 {strides = array<i32>} : memref<146x128xbf16, #tpu.memory_space<vmem>>, vector<1x128xbf16>,
    %c54 = arith.constant 54 : index
    %c0_45 = arith.constant 0 : index
    %41 = vector.load %arg9[%c54, %c0_45] : memref<146x128xbf16, #tpu.memory_space<vmem>>, vector<1x128xbf16>
    tpu.vector_store %arg9[%c54, %c0_45], %34 {strides = array<i32>} : memref<146x128xbf16, #tpu.memory_space<vmem>>, vector<1x128xbf16>,
    %c71 = arith.constant 71 : index
    %c0_46 = arith.constant 0 : index
    %42 = vector.load %arg9[%c71, %c0_46] : memref<146x128xbf16, #tpu.memory_space<vmem>>, vector<1x128xbf16>
    tpu.vector_store %arg9[%c71, %c0_46], %34 {strides = array<i32>} : memref<146x128xbf16, #tpu.memory_space<vmem>>, vector<1x128xbf16>,
    %c72 = arith.constant 72 : index
    %c0_47 = arith.constant 0 : index
    %43 = vector.load %arg9[%c72, %c0_47] : memref<146x128xbf16, #tpu.memory_space<vmem>>, vector<1x128xbf16>
    tpu.vector_store %arg9[%c72, %c0_47], %34 {strides = array<i32>} : memref<146x128xbf16, #tpu.memory_space<vmem>>, vector<1x128xbf16>,
    %c89 = arith.constant 89 : index
    %c0_48 = arith.constant 0 : index
    %44 = vector.load %arg9[%c89, %c0_48] : memref<146x128xbf16, #tpu.memory_space<vmem>>, vector<1x128xbf16>
    tpu.vector_store %arg9[%c89, %c0_48], %34 {strides = array<i32>} : memref<146x128xbf16, #tpu.memory_space<vmem>>, vector<1x128xbf16>,
    %c90 = arith.constant 90 : index
    %c0_49 = arith.constant 0 : index
    %45 = vector.load %arg9[%c90, %c0_49] : memref<146x128xbf16, #tpu.memory_space<vmem>>, vector<1x128xbf16>
    tpu.vector_store %arg9[%c90, %c0_49], %34 {strides = array<i32>} : memref<146x128xbf16, #tpu.memory_space<vmem>>, vector<1x128xbf16>,
    %c107 = arith.constant 107 : index
    %c0_50 = arith.constant 0 : index
    %46 = vector.load %arg9[%c107, %c0_50] : memref<146x128xbf16, #tpu.memory_space<vmem>>, vector<1x128xbf16>
    tpu.vector_store %arg9[%c107, %c0_50], %34 {strides = array<i32>} : memref<146x128xbf16, #tpu.memory_space<vmem>>, vector<1x128xbf16>,
    %c108 = arith.constant 108 : index
    %c0_51 = arith.constant 0 : index
    %47 = vector.load %arg9[%c108, %c0_51] : memref<146x128xbf16, #tpu.memory_space<vmem>>, vector<1x128xbf16>
    tpu.vector_store %arg9[%c108, %c0_51], %34 {strides = array<i32>} : memref<146x128xbf16, #tpu.memory_space<vmem>>, vector<1x128xbf16>,
    %c125 = arith.constant 125 : index
    %c0_52 = arith.constant 0 : index
    %48 = vector.load %arg9[%c125, %c0_52] : memref<146x128xbf16, #tpu.memory_space<vmem>>, vector<1x128xbf16>
    tpu.vector_store %arg9[%c125, %c0_52], %34 {strides = array<i32>} : memref<146x128xbf16, #tpu.memory_space<vmem>>, vector<1x128xbf16>,
    %c126 = arith.constant 126 : index
    %c0_53 = arith.constant 0 : index
    %49 = vector.load %arg9[%c126, %c0_53] : memref<146x128xbf16, #tpu.memory_space<vmem>>, vector<1x128xbf16>
    tpu.vector_store %arg9[%c126, %c0_53], %34 {strides = array<i32>} : memref<146x128xbf16, #tpu.memory_space<vmem>>, vector<1x128xbf16>,
    %c143 = arith.constant 143 : index
    %c0_54 = arith.constant 0 : index
    %50 = vector.load %arg9[%c143, %c0_54] : memref<146x128xbf16, #tpu.memory_space<vmem>>, vector<1x128xbf16>
    tpu.vector_store %arg9[%c143, %c0_54], %34 {strides = array<i32>} : memref<146x128xbf16, #tpu.memory_space<vmem>>, vector<1x128xbf16>,
    %cst_55 = arith.constant 0.000000e+00 : bf16
    %51 = vector.broadcast %cst_55 : bf16 to vector<2x128xbf16>
    %c144 = arith.constant 144 : index
    %c0_56 = arith.constant 0 : index
    %52 = vector.load %arg9[%c144, %c0_56] : memref<146x128xbf16, #tpu.memory_space<vmem>>, vector<2x128xbf16>
    tpu.vector_store %arg9[%c144, %c0_56], %51 {strides = array<i32>} : memref<146x128xbf16, #tpu.memory_space<vmem>>, vector<2x128xbf16>,
    %c0_57 = arith.constant 0 : index
    %c0_58 = arith.constant 0 : index
    %53 = vector.load %arg9[%c0_57, %c0_58] : memref<146x128xbf16, #tpu.memory_space<vmem>>, vector<144x128xbf16>
    %c0_59 = arith.constant 0 : index
    %c0_60 = arith.constant 0 : index
    %54 = vector.load %arg10[%c0_59, %c0_60] : memref<144x384xbf16, #tpu.memory_space<vmem>>, vector<144x128xbf16>
    tpu.vector_store %arg10[%c0_59, %c0_60], %53 {strides = array<i32>} : memref<144x384xbf16, #tpu.memory_space<vmem>>, vector<144x128xbf16>,
    %c1_61 = arith.constant 1 : index
    %c0_62 = arith.constant 0 : index
    %55 = vector.load %arg9[%c1_61, %c0_62] : memref<146x128xbf16, #tpu.memory_space<vmem>>, vector<144x128xbf16>
    %c0_63 = arith.constant 0 : index
    %c128_64 = arith.constant 128 : index
    %56 = vector.load %arg10[%c0_63, %c128_64] : memref<144x384xbf16, #tpu.memory_space<vmem>>, vector<144x128xbf16>
    tpu.vector_store %arg10[%c0_63, %c128_64], %55 {strides = array<i32>} : memref<144x384xbf16, #tpu.memory_space<vmem>>, vector<144x128xbf16>,
    %c2_65 = arith.constant 2 : index
    %c0_66 = arith.constant 0 : index
    %57 = vector.load %arg9[%c2_65, %c0_66] : memref<146x128xbf16, #tpu.memory_space<vmem>>, vector<144x128xbf16>
    %c0_67 = arith.constant 0 : index
    %c256_68 = arith.constant 256 : index
    %58 = vector.load %arg10[%c0_67, %c256_68] : memref<144x384xbf16, #tpu.memory_space<vmem>>, vector<144x128xbf16>
    tpu.vector_store %arg10[%c0_67, %c256_68], %57 {strides = array<i32>} : memref<144x384xbf16, #tpu.memory_space<vmem>>, vector<144x128xbf16>,
    %c0_69 = arith.constant 0 : index
    %c0_70 = arith.constant 0 : index
    %59 = vector.load %arg10[%c0_69, %c0_70] : memref<144x384xbf16, #tpu.memory_space<vmem>>, vector<144x384xbf16>
    %c0_71 = arith.constant 0 : index
    %c0_72 = arith.constant 0 : index
    %60 = vector.load %arg4[%c0_71, %c0_72] : memref<384x128xbf16, #tpu.memory_space<vmem>>, vector<384x128xbf16>
    %cst_73 = arith.constant dense<0.000000e+00> : vector<144x128xf32>
    %61 = tpu.matmul %59, %60, %cst_73 {dimension_numbers = #tpu.dot_dimension_numbers<[1], [0], [0], [1], [0, 0, 1, 1], [], []>} : vector<144x384xbf16>, vector<384x128xbf16>, vector<144x128xf32> -> vector<144x128xf32>
    %c0_74 = arith.constant 0 : index
    %c0_75 = arith.constant 0 : index
    %62 = vector.load %arg5[%c0_74, %c0_75] : memref<1x128xf32, #tpu.memory_space<vmem>>, vector<1x128xf32>
    %63 = vector.broadcast %62 : vector<1x128xf32> to vector<144x128xf32>
    %64 = arith.addf %61, %63 : vector<144x128xf32>
    %cst_76 = arith.constant 0.000000e+00 : f32
    %65 = vector.broadcast %cst_76 : f32 to vector<144x128xf32>
    %66 = arith.maximumf %64, %65 : vector<144x128xf32>
    %c0_77 = arith.constant 0 : index
    %c0_78 = arith.constant 0 : index
    %67 = vector.load %arg11[%c0_77, %c0_78] : memref<144x128xf32, #tpu.memory_space<vmem>>, vector<144x128xf32>
    tpu.vector_store %arg11[%c0_77, %c0_78], %66 {strides = array<i32>} : memref<144x128xf32, #tpu.memory_space<vmem>>, vector<144x128xf32>,
    %c0_79 = arith.constant 0 : index
    %c0_80 = arith.constant 0 : index
    %68 = tpu.strided_load %arg11[%c0_79, %c0_80] {strides = array<i32: 2, 1>} : memref<144x128xf32, #tpu.memory_space<vmem>>, vector<8x128xf32>
    %69 = arith.truncf %68 : vector<8x128xf32> to vector<8x128xbf16>
    %c0_81 = arith.constant 0 : index
    %c0_82 = arith.constant 0 : index
    %70 = vector.load %arg12[%c0_81, %c0_82] : memref<64x256xbf16, #tpu.memory_space<vmem>>, vector<8x128xbf16>
    tpu.vector_store %arg12[%c0_81, %c0_82], %69 {strides = array<i32>} : memref<64x256xbf16, #tpu.memory_space<vmem>>, vector<8x128xbf16>,
    %c1_83 = arith.constant 1 : index
    %c0_84 = arith.constant 0 : index
    %71 = tpu.strided_load %arg11[%c1_83, %c0_84] {strides = array<i32: 2, 1>} : memref<144x128xf32, #tpu.memory_space<vmem>>, vector<8x128xf32>
    %72 = arith.truncf %71 : vector<8x128xf32> to vector<8x128xbf16>
    %c0_85 = arith.constant 0 : index
    %c128_86 = arith.constant 128 : index
    %73 = vector.load %arg12[%c0_85, %c128_86] : memref<64x256xbf16, #tpu.memory_space<vmem>>, vector<8x128xbf16>
    tpu.vector_store %arg12[%c0_85, %c128_86], %72 {strides = array<i32>} : memref<64x256xbf16, #tpu.memory_space<vmem>>, vector<8x128xbf16>,
    %c18_87 = arith.constant 18 : index
    %c0_88 = arith.constant 0 : index
    %74 = tpu.strided_load %arg11[%c18_87, %c0_88] {strides = array<i32: 2, 1>} : memref<144x128xf32, #tpu.memory_space<vmem>>, vector<8x128xf32>
    %75 = arith.truncf %74 : vector<8x128xf32> to vector<8x128xbf16>
    %c8 = arith.constant 8 : index
    %c0_89 = arith.constant 0 : index
    %76 = vector.load %arg12[%c8, %c0_89] : memref<64x256xbf16, #tpu.memory_space<vmem>>, vector<8x128xbf16>
    tpu.vector_store %arg12[%c8, %c0_89], %75 {strides = array<i32>} : memref<64x256xbf16, #tpu.memory_space<vmem>>, vector<8x128xbf16>,
    %c19_90 = arith.constant 19 : index
    %c0_91 = arith.constant 0 : index
    %77 = tpu.strided_load %arg11[%c19_90, %c0_91] {strides = array<i32: 2, 1>} : memref<144x128xf32, #tpu.memory_space<vmem>>, vector<8x128xf32>
    %78 = arith.truncf %77 : vector<8x128xf32> to vector<8x128xbf16>
    %c8_92 = arith.constant 8 : index
    %c128_93 = arith.constant 128 : index
    %79 = vector.load %arg12[%c8_92, %c128_93] : memref<64x256xbf16, #tpu.memory_space<vmem>>, vector<8x128xbf16>
    tpu.vector_store %arg12[%c8_92, %c128_93], %78 {strides = array<i32>} : memref<64x256xbf16, #tpu.memory_space<vmem>>, vector<8x128xbf16>,
    %c36_94 = arith.constant 36 : index
    %c0_95 = arith.constant 0 : index
    %80 = tpu.strided_load %arg11[%c36_94, %c0_95] {strides = array<i32: 2, 1>} : memref<144x128xf32, #tpu.memory_space<vmem>>, vector<8x128xf32>
    %81 = arith.truncf %80 : vector<8x128xf32> to vector<8x128xbf16>
    %c16_96 = arith.constant 16 : index
    %c0_97 = arith.constant 0 : index
    %82 = vector.load %arg12[%c16_96, %c0_97] : memref<64x256xbf16, #tpu.memory_space<vmem>>, vector<8x128xbf16>
    tpu.vector_store %arg12[%c16_96, %c0_97], %81 {strides = array<i32>} : memref<64x256xbf16, #tpu.memory_space<vmem>>, vector<8x128xbf16>,
    %c37_98 = arith.constant 37 : index
    %c0_99 = arith.constant 0 : index
    %83 = tpu.strided_load %arg11[%c37_98, %c0_99] {strides = array<i32: 2, 1>} : memref<144x128xf32, #tpu.memory_space<vmem>>, vector<8x128xf32>
    %84 = arith.truncf %83 : vector<8x128xf32> to vector<8x128xbf16>
    %c16_100 = arith.constant 16 : index
    %c128_101 = arith.constant 128 : index
    %85 = vector.load %arg12[%c16_100, %c128_101] : memref<64x256xbf16, #tpu.memory_space<vmem>>, vector<8x128xbf16>
    tpu.vector_store %arg12[%c16_100, %c128_101], %84 {strides = array<i32>} : memref<64x256xbf16, #tpu.memory_space<vmem>>, vector<8x128xbf16>,
    %c54_102 = arith.constant 54 : index
    %c0_103 = arith.constant 0 : index
    %86 = tpu.strided_load %arg11[%c54_102, %c0_103] {strides = array<i32: 2, 1>} : memref<144x128xf32, #tpu.memory_space<vmem>>, vector<8x128xf32>
    %87 = arith.truncf %86 : vector<8x128xf32> to vector<8x128xbf16>
    %c24 = arith.constant 24 : index
    %c0_104 = arith.constant 0 : index
    %88 = vector.load %arg12[%c24, %c0_104] : memref<64x256xbf16, #tpu.memory_space<vmem>>, vector<8x128xbf16>
    tpu.vector_store %arg12[%c24, %c0_104], %87 {strides = array<i32>} : memref<64x256xbf16, #tpu.memory_space<vmem>>, vector<8x128xbf16>,
    %c55_105 = arith.constant 55 : index
    %c0_106 = arith.constant 0 : index
    %89 = tpu.strided_load %arg11[%c55_105, %c0_106] {strides = array<i32: 2, 1>} : memref<144x128xf32, #tpu.memory_space<vmem>>, vector<8x128xf32>
    %90 = arith.truncf %89 : vector<8x128xf32> to vector<8x128xbf16>
    %c24_107 = arith.constant 24 : index
    %c128_108 = arith.constant 128 : index
    %91 = vector.load %arg12[%c24_107, %c128_108] : memref<64x256xbf16, #tpu.memory_space<vmem>>, vector<8x128xbf16>
    tpu.vector_store %arg12[%c24_107, %c128_108], %90 {strides = array<i32>} : memref<64x256xbf16, #tpu.memory_space<vmem>>, vector<8x128xbf16>,
    %c72_109 = arith.constant 72 : index
    %c0_110 = arith.constant 0 : index
    %92 = tpu.strided_load %arg11[%c72_109, %c0_110] {strides = array<i32: 2, 1>} : memref<144x128xf32, #tpu.memory_space<vmem>>, vector<8x128xf32>
    %93 = arith.truncf %92 : vector<8x128xf32> to vector<8x128xbf16>
    %c32_111 = arith.constant 32 : index
    %c0_112 = arith.constant 0 : index
    %94 = vector.load %arg12[%c32_111, %c0_112] : memref<64x256xbf16, #tpu.memory_space<vmem>>, vector<8x128xbf16>
    tpu.vector_store %arg12[%c32_111, %c0_112], %93 {strides = array<i32>} : memref<64x256xbf16, #tpu.memory_space<vmem>>, vector<8x128xbf16>,
    %c73_113 = arith.constant 73 : index
    %c0_114 = arith.constant 0 : index
    %95 = tpu.strided_load %arg11[%c73_113, %c0_114] {strides = array<i32: 2, 1>} : memref<144x128xf32, #tpu.memory_space<vmem>>, vector<8x128xf32>
    %96 = arith.truncf %95 : vector<8x128xf32> to vector<8x128xbf16>
    %c32_115 = arith.constant 32 : index
    %c128_116 = arith.constant 128 : index
    %97 = vector.load %arg12[%c32_115, %c128_116] : memref<64x256xbf16, #tpu.memory_space<vmem>>, vector<8x128xbf16>
    tpu.vector_store %arg12[%c32_115, %c128_116], %96 {strides = array<i32>} : memref<64x256xbf16, #tpu.memory_space<vmem>>, vector<8x128xbf16>,
    %c90_117 = arith.constant 90 : index
    %c0_118 = arith.constant 0 : index
    %98 = tpu.strided_load %arg11[%c90_117, %c0_118] {strides = array<i32: 2, 1>} : memref<144x128xf32, #tpu.memory_space<vmem>>, vector<8x128xf32>
    %99 = arith.truncf %98 : vector<8x128xf32> to vector<8x128xbf16>
    %c40 = arith.constant 40 : index
    %c0_119 = arith.constant 0 : index
    %100 = vector.load %arg12[%c40, %c0_119] : memref<64x256xbf16, #tpu.memory_space<vmem>>, vector<8x128xbf16>
    tpu.vector_store %arg12[%c40, %c0_119], %99 {strides = array<i32>} : memref<64x256xbf16, #tpu.memory_space<vmem>>, vector<8x128xbf16>,
    %c91_120 = arith.constant 91 : index
    %c0_121 = arith.constant 0 : index
    %101 = tpu.strided_load %arg11[%c91_120, %c0_121] {strides = array<i32: 2, 1>} : memref<144x128xf32, #tpu.memory_space<vmem>>, vector<8x128xf32>
    %102 = arith.truncf %101 : vector<8x128xf32> to vector<8x128xbf16>
    %c40_122 = arith.constant 40 : index
    %c128_123 = arith.constant 128 : index
    %103 = vector.load %arg12[%c40_122, %c128_123] : memref<64x256xbf16, #tpu.memory_space<vmem>>, vector<8x128xbf16>
    tpu.vector_store %arg12[%c40_122, %c128_123], %102 {strides = array<i32>} : memref<64x256xbf16, #tpu.memory_space<vmem>>, vector<8x128xbf16>,
    %c108_124 = arith.constant 108 : index
    %c0_125 = arith.constant 0 : index
    %104 = tpu.strided_load %arg11[%c108_124, %c0_125] {strides = array<i32: 2, 1>} : memref<144x128xf32, #tpu.memory_space<vmem>>, vector<8x128xf32>
    %105 = arith.truncf %104 : vector<8x128xf32> to vector<8x128xbf16>
    %c48_126 = arith.constant 48 : index
    %c0_127 = arith.constant 0 : index
    %106 = vector.load %arg12[%c48_126, %c0_127] : memref<64x256xbf16, #tpu.memory_space<vmem>>, vector<8x128xbf16>
    tpu.vector_store %arg12[%c48_126, %c0_127], %105 {strides = array<i32>} : memref<64x256xbf16, #tpu.memory_space<vmem>>, vector<8x128xbf16>,
    %c109_128 = arith.constant 109 : index
    %c0_129 = arith.constant 0 : index
    %107 = tpu.strided_load %arg11[%c109_128, %c0_129] {strides = array<i32: 2, 1>} : memref<144x128xf32, #tpu.memory_space<vmem>>, vector<8x128xf32>
    %108 = arith.truncf %107 : vector<8x128xf32> to vector<8x128xbf16>
    %c48_130 = arith.constant 48 : index
    %c128_131 = arith.constant 128 : index
    %109 = vector.load %arg12[%c48_130, %c128_131] : memref<64x256xbf16, #tpu.memory_space<vmem>>, vector<8x128xbf16>
    tpu.vector_store %arg12[%c48_130, %c128_131], %108 {strides = array<i32>} : memref<64x256xbf16, #tpu.memory_space<vmem>>, vector<8x128xbf16>,
    %c126_132 = arith.constant 126 : index
    %c0_133 = arith.constant 0 : index
    %110 = tpu.strided_load %arg11[%c126_132, %c0_133] {strides = array<i32: 2, 1>} : memref<144x128xf32, #tpu.memory_space<vmem>>, vector<8x128xf32>
    %111 = arith.truncf %110 : vector<8x128xf32> to vector<8x128xbf16>
    %c56 = arith.constant 56 : index
    %c0_134 = arith.constant 0 : index
    %112 = vector.load %arg12[%c56, %c0_134] : memref<64x256xbf16, #tpu.memory_space<vmem>>, vector<8x128xbf16>
    tpu.vector_store %arg12[%c56, %c0_134], %111 {strides = array<i32>} : memref<64x256xbf16, #tpu.memory_space<vmem>>, vector<8x128xbf16>,
    %c127_135 = arith.constant 127 : index
    %c0_136 = arith.constant 0 : index
    %113 = tpu.strided_load %arg11[%c127_135, %c0_136] {strides = array<i32: 2, 1>} : memref<144x128xf32, #tpu.memory_space<vmem>>, vector<8x128xf32>
    %114 = arith.truncf %113 : vector<8x128xf32> to vector<8x128xbf16>
    %c56_137 = arith.constant 56 : index
    %c128_138 = arith.constant 128 : index
    %115 = vector.load %arg12[%c56_137, %c128_138] : memref<64x256xbf16, #tpu.memory_space<vmem>>, vector<8x128xbf16>
    tpu.vector_store %arg12[%c56_137, %c128_138], %114 {strides = array<i32>} : memref<64x256xbf16, #tpu.memory_space<vmem>>, vector<8x128xbf16>,
    %c0_139 = arith.constant 0 : index
    %c0_140 = arith.constant 0 : index
    %116 = vector.load %arg12[%c0_139, %c0_140] : memref<64x256xbf16, #tpu.memory_space<vmem>>, vector<64x256xbf16>
    %c0_141 = arith.constant 0 : index
    %c0_142 = arith.constant 0 : index
    %117 = vector.load %arg6[%c0_141, %c0_142] : memref<256x128xbf16, #tpu.memory_space<vmem>>, vector<256x128xbf16>
    %cst_143 = arith.constant dense<0.000000e+00> : vector<64x128xf32>
    %118 = tpu.matmul %116, %117, %cst_143 {dimension_numbers = #tpu.dot_dimension_numbers<[1], [0], [0], [1], [0, 0, 1, 1], [], []>} : vector<64x256xbf16>, vector<256x128xbf16>, vector<64x128xf32> -> vector<64x128xf32>
    %c0_144 = arith.constant 0 : index
    %c0_145 = arith.constant 0 : index
    %119 = vector.load %arg7[%c0_144, %c0_145] : memref<1x128xf32, #tpu.memory_space<vmem>>, vector<1x128xf32>
    %120 = vector.broadcast %119 : vector<1x128xf32> to vector<64x128xf32>
    %121 = arith.addf %118, %120 : vector<64x128xf32>
    %cst_146 = arith.constant 0.000000e+00 : f32
    %122 = vector.broadcast %cst_146 : f32 to vector<64x128xf32>
    %123 = arith.maximumf %121, %122 : vector<64x128xf32>
    %c0_147 = arith.constant 0 : index
    %c0_148 = arith.constant 0 : index
    %124 = vector.load %arg8[%c0_147, %c0_148] : memref<64x128xf32, #tpu.memory_space<vmem>>, vector<64x128xf32>
    tpu.vector_store %arg8[%c0_147, %c0_148], %123 {strides = array<i32>} : memref<64x128xf32, #tpu.memory_space<vmem>>, vector<64x128xf32>,
    return
  }
  func.func @transform_0(%arg0: i32) -> (i32, i32) {
    %c0_i32 = arith.constant 0 : i32
    %c0_i32_0 = arith.constant 0 : i32
    return %arg0, %c0_i32 : i32, i32
  }
  func.func @transform_1(%arg0: i32) -> (i32, i32) {
    %c0_i32 = arith.constant 0 : i32
    %c0_i32_0 = arith.constant 0 : i32
    %c0_i32_1 = arith.constant 0 : i32
    return %c0_i32, %c0_i32_0 : i32, i32
  }
  func.func @transform_2(%arg0: i32) -> (i32, i32) {
    %c0_i32 = arith.constant 0 : i32
    %c0_i32_0 = arith.constant 0 : i32
    %c0_i32_1 = arith.constant 0 : i32
    return %c0_i32, %c0_i32_0 : i32, i32
  }
  func.func @transform_3(%arg0: i32) -> (i32, i32) {
    %c0_i32 = arith.constant 0 : i32
    %c0_i32_0 = arith.constant 0 : i32
    %c0_i32_1 = arith.constant 0 : i32
    return %c0_i32, %c0_i32_0 : i32, i32
  }
  func.func @transform_4(%arg0: i32) -> (i32, i32) {
    %c0_i32 = arith.constant 0 : i32
    %c0_i32_0 = arith.constant 0 : i32
    %c0_i32_1 = arith.constant 0 : i32
    return %c0_i32, %c0_i32_0 : i32, i32
  }
  func.func @transform_5(%arg0: i32) -> (i32, i32) {
    %c0_i32 = arith.constant 0 : i32
    %c0_i32_0 = arith.constant 0 : i32
    %c0_i32_1 = arith.constant 0 : i32
    return %c0_i32, %c0_i32_0 : i32, i32
  }
  func.func @transform_6(%arg0: i32) -> (i32, i32) {
    %c0_i32 = arith.constant 0 : i32
    %c0_i32_0 = arith.constant 0 : i32
    %c0_i32_1 = arith.constant 0 : i32
    return %c0_i32, %c0_i32_0 : i32, i32
  }
  func.func @transform_7(%arg0: i32) -> (i32, i32) {
    %c0_i32 = arith.constant 0 : i32
    %c0_i32_0 = arith.constant 0 : i32
    return %arg0, %c0_i32 : i32, i32
  }
}

</mosaic_0001>

<llo_original>
// kernel: encoder_layer_forward.1
$region0: #{encoder_layer_forward.1}
  #allocation0 [shape = 'u32[]', space=smem, size = 0x4, offset = 0x4, fixed_abs, tag = 'smem constant byte address 0x4 - core index']
  #allocation1 [shape = 'u32[144,128]{1,0:T(1,128)}', space=vmem, size = 0x12000, scoped, tag = 'internal scratch']
  #allocation2 [shape = 'bf16[146,128]{1,0:T(8,128)(2,1)}', space=vmem, size = 0x9800, scoped, tag = 'scratch operand']
  #allocation3 [shape = 'bf16[144,384]{1,0:T(16,128)(2,1)}', space=vmem, size = 0x1b000, scoped, tag = 'scratch operand']
  #allocation4 [shape = 'f32[144,128]{1,0:T(8,128)}', space=vmem, size = 0x12000, scoped, tag = 'scratch operand']
  #allocation5 [shape = 'bf16[64,256]{1,0:T(16,128)(2,1)}', space=vmem, size = 0x8000, scoped, tag = 'scratch operand']
  %s0 = inlined_call_operand.vmem [shape: bf16[256,128], index: 0, kind: input, shape index: {}]
  %s1 = inlined_call_operand.vmem [shape: bf16[384,128], index: 1, kind: input, shape index: {}]
  %s2 = inlined_call_operand.vmem [shape: f32[1,128], index: 2, kind: input, shape index: {}]
  %s3 = inlined_call_operand.vmem [shape: bf16[384,128], index: 3, kind: input, shape index: {}]
  %s4 = inlined_call_operand.vmem [shape: f32[1,128], index: 4, kind: input, shape index: {}]
  %s5 = inlined_call_operand.vmem [shape: bf16[256,128], index: 5, kind: input, shape index: {}]
  %s6 = inlined_call_operand.vmem [shape: f32[1,128], index: 6, kind: input, shape index: {}]
  %s7 = inlined_call_operand.vmem [shape: f32[128,128], index: 7, kind: output, shape index: {}]
  %s8 = sld [smem:[#allocation0]]
  $region61: #{encoder_layer_forward.1} parent=0
    _
  %s10 = ssub.s32 1, %s8
  %s11 = scalar_select 0, %s10, %s8
  loop: start=0, step=1, limit=4
  $region2: #{encoder_layer_forward.1} parent=0 // loop_pre_header
    _
  $region3: #{encoder_layer_forward.1} parent=0 // loop_header
    %s13 = sphi 0, %s17
    %p14 = scmp.ge.s32.totalorder %s13, 4
    %s23 = sphi 0, %s25
    %s26 = sphi 0, %s23
    %s27 = sphi 0, %s26
    %s43 = sphi 0, %s27
    %s47 = sphi 0, %s47
    %s49 = sphi 0, %s47
    %s50 = sphi 0, %s49
    %s64 = sphi 0, %s50
    %s68 = sphi 0, %s68
    %s70 = sphi 0, %s68
    %s71 = sphi 0, %s70
    %s85 = sphi 0, %s71
    %s89 = sphi 0, %s89
    %s91 = sphi 0, %s89
    %s92 = sphi 0, %s91
    %s106 = sphi 0, %s92
    %s110 = sphi 0, %s110
    %s112 = sphi 0, %s110
    %s113 = sphi 0, %s112
    %s127 = sphi 0, %s113
    %s131 = sphi 0, %s131
    %s133 = sphi 0, %s131
    %s134 = sphi 0, %s133
    %s148 = sphi 0, %s134
    %s152 = sphi 0, %s152
    %s154 = sphi 0, %s152
    %s155 = sphi 0, %s154
    %s169 = sphi 0, %s155
    %s175 = sphi 0, %s177
    %s178 = sphi 0, %s175
    %s179 = sphi 0, %s178
    %s195 = sphi 0, %s179
  $region4: #{encoder_layer_forward.1} parent=0 // loop_header_branch
    %16 = sbr.rel (%p14) target = $region8
  $region5: #{encoder_layer_forward.1} parent=0 // loop_body
    %s18 = ssub.s32 %s13, 1
    %s19 = ssub.s32 %s13, 2
    %s20 = sadd.s32 %s13, 1
    %s21 = ssub.s32 %s13, %s20
    %p22 = scmp.eq.s32.totalorder %s21, 0
    %s24 = sadd.s32 %s23, 1
    %s25 = scalar_select %p22, %s23, %s24
    %p28 = pneg %p22
    %p29 = scmp.eq.s32.totalorder %s13, 1
    %p30 = por %p28, %p29
    %p31 = scmp.ne.s32.totalorder %s23, %s26
    %p32 = scmp.eq.s32.totalorder %s13, 0
    %p33 = por %p31, %p32
    %p34 = scmp.ne.s32.totalorder %s23, %s26
    %p35 = scmp.eq.s32.totalorder %s18, 1
    %p36 = por %p34, %p35
    %p37 = scmp.ne.s32.totalorder %s26, %s27
    %p38 = scmp.eq.s32.totalorder %s18, 0
    %p39 = por %p37, %p38
    %p40 = scmp.ne.s32.totalorder %s26, %s27
    %p41 = scmp.eq.s32.totalorder %s19, 1
    %p42 = por %p40, %p41
    %p44 = scmp.ne.s32.totalorder %s27, %s43
    %p45 = scmp.eq.s32.totalorder %s19, 0
    %p46 = por %p44, %p45
    %s48 = sadd.s32 %s47, 1
    %p51 = scmp.eq.s32.totalorder %s13, 1
    %p52 = scmp.ne.s32.totalorder %s47, %s49
    %p53 = scmp.eq.s32.totalorder %s13, 0
    %p54 = por %p52, %p53
    %p55 = scmp.ne.s32.totalorder %s47, %s49
    %p56 = scmp.eq.s32.totalorder %s18, 1
    %p57 = por %p55, %p56
    %p58 = scmp.ne.s32.totalorder %s49, %s50
    %p59 = scmp.eq.s32.totalorder %s18, 0
    %p60 = por %p58, %p59
    %p61 = scmp.ne.s32.totalorder %s49, %s50
    %p62 = scmp.eq.s32.totalorder %s19, 1
    %p63 = por %p61, %p62
    %p65 = scmp.ne.s32.totalorder %s50, %s64
    %p66 = scmp.eq.s32.totalorder %s19, 0
    %p67 = por %p65, %p66
    %s69 = sadd.s32 %s68, 1
    %p72 = scmp.eq.s32.totalorder %s13, 1
    %p73 = scmp.ne.s32.totalorder %s68, %s70
    %p74 = scmp.eq.s32.totalorder %s13, 0
    %p75 = por %p73, %p74
    %p76 = scmp.ne.s32.totalorder %s68, %s70
    %p77 = scmp.eq.s32.totalorder %s18, 1
    %p78 = por %p76, %p77
    %p79 = scmp.ne.s32.totalorder %s70, %s71
    %p80 = scmp.eq.s32.totalorder %s18, 0
    %p81 = por %p79, %p80
    %p82 = scmp.ne.s32.totalorder %s70, %s71
    %p83 = scmp.eq.s32.totalorder %s19, 1
    %p84 = por %p82, %p83
    %p86 = scmp.ne.s32.totalorder %s71, %s85
    %p87 = scmp.eq.s32.totalorder %s19, 0
    %p88 = por %p86, %p87
    %s90 = sadd.s32 %s89, 1
    %p93 = scmp.eq.s32.totalorder %s13, 1
    %p94 = scmp.ne.s32.totalorder %s89, %s91
    %p95 = scmp.eq.s32.totalorder %s13, 0
    %p96 = por %p94, %p95
    %p97 = scmp.ne.s32.totalorder %s89, %s91
    %p98 = scmp.eq.s32.totalorder %s18, 1
    %p99 = por %p97, %p98
    %p100 = scmp.ne.s32.totalorder %s91, %s92
    %p101 = scmp.eq.s32.totalorder %s18, 0
    %p102 = por %p100, %p101
    %p103 = scmp.ne.s32.totalorder %s91, %s92
    %p104 = scmp.eq.s32.totalorder %s19, 1
    %p105 = por %p103, %p104
    %p107 = scmp.ne.s32.totalorder %s92, %s106
    %p108 = scmp.eq.s32.totalorder %s19, 0
    %p109 = por %p107, %p108
    %s111 = sadd.s32 %s110, 1
    %p114 = scmp.eq.s32.totalorder %s13, 1
    %p115 = scmp.ne.s32.totalorder %s110, %s112
    %p116 = scmp.eq.s32.totalorder %s13, 0
    %p117 = por %p115, %p116
    %p118 = scmp.ne.s32.totalorder %s110, %s112
    %p119 = scmp.eq.s32.totalorder %s18, 1
    %p120 = por %p118, %p119
    %p121 = scmp.ne.s32.totalorder %s112, %s113
    %p122 = scmp.eq.s32.totalorder %s18, 0
    %p123 = por %p121, %p122
    %p124 = scmp.ne.s32.totalorder %s112, %s113
    %p125 = scmp.eq.s32.totalorder %s19, 1
    %p126 = por %p124, %p125
    %p128 = scmp.ne.s32.totalorder %s113, %s127
    %p129 = scmp.eq.s32.totalorder %s19, 0
    %p130 = por %p128, %p129
    %s132 = sadd.s32 %s131, 1
    %p135 = scmp.eq.s32.totalorder %s13, 1
    %p136 = scmp.ne.s32.totalorder %s131, %s133
    %p137 = scmp.eq.s32.totalorder %s13, 0
    %p138 = por %p136, %p137
    %p139 = scmp.ne.s32.totalorder %s131, %s133
    %p140 = scmp.eq.s32.totalorder %s18, 1
    %p141 = por %p139, %p140
    %p142 = scmp.ne.s32.totalorder %s133, %s134
    %p143 = scmp.eq.s32.totalorder %s18, 0
    %p144 = por %p142, %p143
    %p145 = scmp.ne.s32.totalorder %s133, %s134
    %p146 = scmp.eq.s32.totalorder %s19, 1
    %p147 = por %p145, %p146
    %p149 = scmp.ne.s32.totalorder %s134, %s148
    %p150 = scmp.eq.s32.totalorder %s19, 0
    %p151 = por %p149, %p150
    %s153 = sadd.s32 %s152, 1
    %p156 = scmp.eq.s32.totalorder %s13, 1
    %p157 = scmp.ne.s32.totalorder %s152, %s154
    %p158 = scmp.eq.s32.totalorder %s13, 0
    %p159 = por %p157, %p158
    %p160 = scmp.ne.s32.totalorder %s152, %s154
    %p161 = scmp.eq.s32.totalorder %s18, 1
    %p162 = por %p160, %p161
    %p163 = scmp.ne.s32.totalorder %s154, %s155
    %p164 = scmp.eq.s32.totalorder %s18, 0
    %p165 = por %p163, %p164
    %p166 = scmp.ne.s32.totalorder %s154, %s155
    %p167 = scmp.eq.s32.totalorder %s19, 1
    %p168 = por %p166, %p167
    %p170 = scmp.ne.s32.totalorder %s155, %s169
    %p171 = scmp.eq.s32.totalorder %s19, 0
    %p172 = por %p170, %p171
    %s173 = ssub.s32 %s13, %s20
    %p174 = scmp.eq.s32.totalorder %s173, 0
    %s176 = sadd.s32 %s175, 1
    %s177 = scalar_select %p174, %s175, %s176
    %p180 = pneg %p174
    %p181 = scmp.eq.s32.totalorder %s13, 1
    %p182 = por %p180, %p181
    %p183 = scmp.ne.s32.totalorder %s175, %s178
    %p184 = scmp.eq.s32.totalorder %s13, 0
    %p185 = por %p183, %p184
    %p186 = scmp.ne.s32.totalorder %s175, %s178
    %p187 = scmp.eq.s32.totalorder %s18, 1
    %p188 = por %p186, %p187
    %p189 = scmp.ne.s32.totalorder %s178, %s179
    %p190 = scmp.eq.s32.totalorder %s18, 0
    %p191 = por %p189, %p190
    %p192 = scmp.ne.s32.totalorder %s178, %s179
    %p193 = scmp.eq.s32.totalorder %s19, 1
    %p194 = por %p192, %p193
    %p196 = scmp.ne.s32.totalorder %s179, %s195
    %p197 = scmp.eq.s32.totalorder %s19, 0
    %p198 = por %p196, %p197
    %p199 = scmp.le.s32.totalorder 1, %s13
    %p200 = scmp.lt.s32.totalorder %s13, 3
    %p201 = pnand %p199, %p200
    %p202 = pneg %p201
    // Predicated region
    $region9: #{encoder_layer_forward.1} parent=5 // pred_check
      _
    $region10: #{encoder_layer_forward.1} parent=5 // pred_check_branch
      %204 = sbr.rel (%p201) target = $region12
    $region11: #{encoder_layer_forward.1} parent=5 // pred_region
      %s205 = ssub.s32 %s13, 1
      // Predicated region
      $region13: #{encoder_layer_forward.1} parent=11 // pred_check
        %p206 = pneg %p60
      $region14: #{encoder_layer_forward.1} parent=11 // pred_check_branch
        %208 = sbr.rel (%p206) target = $region16
      $region15: #{encoder_layer_forward.1} parent=11 // pred_region
        _
      $region16: #{encoder_layer_forward.1} parent=11 // pred_fallthru
        _
      // Predicated region
      $region17: #{encoder_layer_forward.1} parent=11 // pred_check
        %p209 = pneg %p81
      $region18: #{encoder_layer_forward.1} parent=11 // pred_check_branch
        %211 = sbr.rel (%p209) target = $region20
      $region19: #{encoder_layer_forward.1} parent=11 // pred_region
        _
      $region20: #{encoder_layer_forward.1} parent=11 // pred_fallthru
        _
      // Predicated region
      $region21: #{encoder_layer_forward.1} parent=11 // pred_check
        %p212 = pneg %p102
      $region22: #{encoder_layer_forward.1} parent=11 // pred_check_branch
        %214 = sbr.rel (%p212) target = $region24
      $region23: #{encoder_layer_forward.1} parent=11 // pred_region
        _
      $region24: #{encoder_layer_forward.1} parent=11 // pred_fallthru
        _
      // Predicated region
      $region25: #{encoder_layer_forward.1} parent=11 // pred_check
        %p215 = pneg %p123
      $region26: #{encoder_layer_forward.1} parent=11 // pred_check_branch
        %217 = sbr.rel (%p215) target = $region28
      $region27: #{encoder_layer_forward.1} parent=11 // pred_region
        _
      $region28: #{encoder_layer_forward.1} parent=11 // pred_fallthru
        _
      // Predicated region
      $region29: #{encoder_layer_forward.1} parent=11 // pred_check
        %p218 = pneg %p144
      $region30: #{encoder_layer_forward.1} parent=11 // pred_check_branch
        %220 = sbr.rel (%p218) target = $region32
      $region31: #{encoder_layer_forward.1} parent=11 // pred_region
        _
      $region32: #{encoder_layer_forward.1} parent=11 // pred_fallthru
        _
      // Predicated region
      $region33: #{encoder_layer_forward.1} parent=11 // pred_check
        %p221 = pneg %p165
      $region34: #{encoder_layer_forward.1} parent=11 // pred_check_branch
        %223 = sbr.rel (%p221) target = $region36
      $region35: #{encoder_layer_forward.1} parent=11 // pred_region
        _
      $region36: #{encoder_layer_forward.1} parent=11 // pred_fallthru
        _
    $region12: #{encoder_layer_forward.1} parent=5 // pred_fallthru
      _
    %p224 = scmp.lt.s32.totalorder %s13, 2
    // Predicated region
    $region37: #{encoder_layer_forward.1} parent=5 // pred_check
      %p225 = pneg %p224
    $region38: #{encoder_layer_forward.1} parent=5 // pred_check_branch
      %227 = sbr.rel (%p225) target = $region40
    $region39: #{encoder_layer_forward.1} parent=5 // pred_region
      // Predicated region
      $region41: #{encoder_layer_forward.1} parent=39 // pred_check
        %p228 = pneg %p33
      $region42: #{encoder_layer_forward.1} parent=39 // pred_check_branch
        %230 = sbr.rel (%p228) target = $region44
      $region43: #{encoder_layer_forward.1} parent=39 // pred_region
        %s231 = smul.u32 16, %s13
        %p232 = scmp.lt.s32.totalorder %s231, 31
        %s233 = scalar_select %p232, %s231, 31
        %s234 = smul.addr %s233, 4
        %s235 = scalar_lea.vmem %s0, %s234
        %s236 = smul.u32 16, %s13
      $region44: #{encoder_layer_forward.1} parent=39 // pred_fallthru
        _
    $region40: #{encoder_layer_forward.1} parent=5 // pred_fallthru
      _
    %p237 = scmp.le.s32.totalorder 1, %s13
    %p238 = scmp.lt.s32.totalorder %s13, 3
    %p239 = pnand %p237, %p238
    %p240 = pneg %p239
    // Predicated region
    $region45: #{encoder_layer_forward.1} parent=5 // pred_check
      _
    $region46: #{encoder_layer_forward.1} parent=5 // pred_check_branch
      %242 = sbr.rel (%p239) target = $region48
    $region47: #{encoder_layer_forward.1} parent=5 // pred_region
      %s243 = ssub.s32 %s13, 1
      %s244 = smul.u32 16, %s18
      %p245 = scmp.lt.s32.totalorder %s244, 31
      %s246 = scalar_select %p245, %s244, 31
      %s247 = smul.addr %s246, 4
      %s248 = scalar_lea.vmem %s0, %s247
      %p249 = pneg %p39
      %p250 = pneg %p36
      %p251 = pneg %p60
      %p252 = pneg %p57
      %p253 = pneg %p81
      %p254 = pneg %p78
      %p255 = pneg %p102
      %p256 = pneg %p99
      %p257 = pneg %p123
      %p258 = pneg %p120
      %p259 = pneg %p144
      %p260 = pneg %p141
      %p261 = pneg %p165
      %p262 = pneg %p162
      %p263 = pneg %p191
      %p264 = pneg %p188
      %s265 = smul.u32 8, %s18
      %p266 = scmp.lt.s32.totalorder %s265, 15
      %s267 = scalar_select %p266, %s265, 15
      %s268 = smul.addr %s267, 8
      %s269 = scalar_lea.vmem %s7, %s268
      %s270 = smul.u32 16, %s18
      %p271 = scmp.lt.s32.totalorder %s270, 31
      %s272 = scalar_select %p271, %s270, 31
      %s273 = smul.addr %s272, 4
      %s274 = scalar_lea.vmem %s0, %s273
      %s275 = smul.u32 16, %s18
      %s276 = smul.u32 8, %s18
      %p277 = scmp.lt.s32.totalorder %s276, 15
      %s278 = scalar_select %p277, %s276, 15
      %s279 = smul.addr %s278, 8
      %s280 = scalar_lea.vmem %s7, %s279
      %s281 = smul.u32 8, %s18
      %283 = vst [vmem:[#allocation2] sm:$0xf] 0
      %284 = vst [vmem:[#allocation2 + $0x4] sm:$0xf] 0
      %285 = vst [vmem:[#allocation2 + $0x8] sm:$0xf] 0
      %286 = vst [vmem:[#allocation2 + $0xc] sm:$0xf] 0
      %287 = vst [vmem:[#allocation2 + $0x10] sm:$0xf] 0
      %288 = vst [vmem:[#allocation2 + $0x14] sm:$0xf] 0
      %289 = vst [vmem:[#allocation2 + $0x18] sm:$0xf] 0
      %290 = vst [vmem:[#allocation2 + $0x1c] sm:$0xf] 0
      %291 = vst [vmem:[#allocation2 + $0x20] sm:$0xf] 0
      %292 = vst [vmem:[#allocation2 + $0x24] sm:$0xf] 0
      %293 = vst [vmem:[#allocation2 + $0x28] sm:$0xf] 0
      %294 = vst [vmem:[#allocation2 + $0x2c] sm:$0xf] 0
      %295 = vst [vmem:[#allocation2 + $0x30] sm:$0xf] 0
      %296 = vst [vmem:[#allocation2 + $0x34] sm:$0xf] 0
      %297 = vst [vmem:[#allocation2 + $0x38] sm:$0xf] 0
      %298 = vst [vmem:[#allocation2 + $0x3c] sm:$0xf] 0
      %299 = vst [vmem:[#allocation2 + $0x40] sm:$0xf] 0
      %300 = vst [vmem:[#allocation2 + $0x44] sm:$0xf] 0
      %301 = vst [vmem:[#allocation2 + $0x48] sm:$0x1] 0
      %v302 = vld [vmem:[%s274] sm:$0xf]
      %v303 = vld [vmem:[%s274 + $0x4] sm:$0xf]
      %vm304 = vsmask.f32 256
      %vm305 = vsmask.f32 4368
      %vm306 = vmor %vm304, %vm305
      %v308 = vshrl.u32 %v302, 16
      %v310 = vrot.slane %v308, 7
      %v311 = vshll.u32 %v302, 16
      %v313 = vor.u32 %v310, %v311
      %v314 = vrot.slane %v310, 4
      %v316 = vshrl.u32 %v303, 16
      %v318 = vrot.slane %v316, 7
      %v319 = vshll.u32 %v303, 16
      %v321 = vor.u32 %v318, %v319
      %v322 = vsel %vm306, %v314, %v321
      %v323 = vrot.slane %v318, 4
      %vm327 = vcmask 1043456
      %vm328 = vsmask.f32 7938
      %vm329 = vmand %vm327, %vm328
      %v330 = vld [vmem:[#allocation2] sm:$0xf]
      %v331 = vsel %vm329, %v313, %v330
      %332 = vst [vmem:[#allocation2] sm:$0xf] %v331
      %333 = vst [vmem:[#allocation2 + $0x4] sm:$0xf] %v322
      %vm334 = vcmask 1040384
      %vm335 = vmand %vm334, %vm304
      %v336 = vld [vmem:[#allocation2 + $0x8] sm:$0x1]
      %v337 = vsel %vm335, %v323, %v336
      %338 = vst [vmem:[#allocation2 + $0x8] sm:$0x1] %v337
      %v339 = vld [vmem:[%s274 + $0x8] sm:$0xf]
      %v340 = vld [vmem:[%s274 + $0xc] sm:$0xf]
      %vm341 = vsmask.f32 1280
      %vm342 = vsmask.f32 5392
      %vm343 = vmor %vm341, %vm342
      %v345 = vshrl.u32 %v339, 16
      %v347 = vrot.slane %v345, 6
      %v348 = vshll.u32 %v339, 16
      %v350 = vrot.slane %v348, 7
      %v351 = vor.u32 %v347, %v350
      %v352 = vrot.slane %v351, 4
      %v354 = vshrl.u32 %v340, 16
      %v356 = vrot.slane %v354, 6
      %v357 = vshll.u32 %v340, 16
      %v359 = vrot.slane %v357, 7
      %v360 = vor.u32 %v356, %v359
      %v361 = vsel %vm343, %v352, %v360
      %v362 = vrot.slane %v360, 4
      %vm366 = vcmask 1043457
      %vm367 = vsmask.f32 7942
      %vm368 = vmand %vm366, %vm367
      %v369 = vld [vmem:[#allocation2 + $0x8] sm:$0xe]
      %v370 = vsel %vm368, %v351, %v369
      %371 = vst [vmem:[#allocation2 + $0x8] sm:$0xe] %v370
      %372 = vst [vmem:[#allocation2 + $0xc] sm:$0xf] %v361
      %vm373 = vcmask 1041408
      %vm374 = vmand %vm373, %vm341
      %v375 = vld [vmem:[#allocation2 + $0x10] sm:$0x3]
      %v376 = vsel %vm374, %v362, %v375
      %377 = vst [vmem:[#allocation2 + $0x10] sm:$0x3] %v376
      %v378 = vld [vmem:[%s274 + $0x10] sm:$0xf]
      %v379 = vld [vmem:[%s274 + $0x14] sm:$0xf]
      %vm380 = vsmask.f32 2304
      %vm381 = vsmask.f32 6416
      %vm382 = vmor %vm380, %vm381
      %v384 = vshrl.u32 %v378, 16
      %v386 = vrot.slane %v384, 5
      %v387 = vshll.u32 %v378, 16
      %v389 = vrot.slane %v387, 6
      %v390 = vor.u32 %v386, %v389
      %v391 = vrot.slane %v390, 4
      %v393 = vshrl.u32 %v379, 16
      %v395 = vrot.slane %v393, 5
      %v396 = vshll.u32 %v379, 16
      %v398 = vrot.slane %v396, 6
      %v399 = vor.u32 %v395, %v398
      %v400 = vsel %vm382, %v391, %v399
      %v401 = vrot.slane %v399, 4
      %vm405 = vcmask 1043458
      %vm406 = vsmask.f32 7946
      %vm407 = vmand %vm405, %vm406
      %v408 = vld [vmem:[#allocation2 + $0x10] sm:$0xc]
      %v409 = vsel %vm407, %v390, %v408
      %410 = vst [vmem:[#allocation2 + $0x10] sm:$0xc] %v409
      %411 = vst [vmem:[#allocation2 + $0x14] sm:$0xf] %v400
      %vm412 = vcmask 1042432
      %vm413 = vmand %vm412, %vm380
      %v414 = vld [vmem:[#allocation2 + $0x18] sm:$0x7]
      %v415 = vsel %vm413, %v401, %v414
      %416 = vst [vmem:[#allocation2 + $0x18] sm:$0x7] %v415
      %v417 = vld [vmem:[%s274 + $0x18] sm:$0xf]
      %v418 = vld [vmem:[%s274 + $0x1c] sm:$0xf]
      %vm419 = vsmask.f32 3328
      %vm420 = vsmask.f32 7440
      %vm421 = vmor %vm419, %vm420
      %v423 = vshll.u32 %v417, 16
      %v425 = vrot.slane %v423, 5
      %v426 = vshrl.u32 %v417, 16
      %v428 = vrot.slane %v426, 4
      %v429 = vor.u32 %v428, %v425
      %v430 = vrot.slane %v429, 4
      %v432 = vshll.u32 %v418, 16
      %v434 = vrot.slane %v432, 5
      %v435 = vsel %vm421, %v430, %v434
      %v436 = vshrl.u32 %v418, 16
      %v438 = vrot.slane %v436, 4
      %v439 = vor.u32 %v438, %v434
      %v440 = vrot.slane %v439, 4
      %vm444 = vcmask 1043459
      %vm445 = vsmask.f32 7950
      %vm446 = vmand %vm444, %vm445
      %v447 = vld [vmem:[#allocation2 + $0x18] sm:$0x8]
      %v448 = vsel %vm446, %v425, %v447
      %449 = vst [vmem:[#allocation2 + $0x18] sm:$0x8] %v448
      %450 = vst [vmem:[#allocation2 + $0x1c] sm:$0xf] %v435
      %vm451 = vmand %vm327, %vm419
      %v452 = vld [vmem:[#allocation2 + $0x20] sm:$0xf]
      %v453 = vsel %vm451, %v440, %v452
      %454 = vst [vmem:[#allocation2 + $0x20] sm:$0xf] %v453
      %v455 = vld [vmem:[%s274 + $0x20] sm:$0xf]
      %v456 = vld [vmem:[%s274 + $0x24] sm:$0xf]
      %v458 = vshrl.u32 %v455, 16
      %v460 = vrot.slane %v458, 7
      %v461 = vshll.u32 %v455, 16
      %v463 = vor.u32 %v460, %v461
      %v464 = vrot.slane %v460, 4
      %v466 = vshrl.u32 %v456, 16
      %v468 = vrot.slane %v466, 7
      %v469 = vshll.u32 %v456, 16
      %v471 = vor.u32 %v468, %v469
      %v472 = vsel %vm306, %v464, %v471
      %v473 = vrot.slane %v468, 4
      %v477 = vld [vmem:[#allocation2 + $0x24] sm:$0xf]
      %v478 = vsel %vm329, %v463, %v477
      %479 = vst [vmem:[#allocation2 + $0x24] sm:$0xf] %v478
      %480 = vst [vmem:[#allocation2 + $0x28] sm:$0xf] %v472
      %v481 = vld [vmem:[#allocation2 + $0x2c] sm:$0x1]
      %v482 = vsel %vm335, %v473, %v481
      %483 = vst [vmem:[#allocation2 + $0x2c] sm:$0x1] %v482
      %v484 = vld [vmem:[%s274 + $0x28] sm:$0xf]
      %v485 = vld [vmem:[%s274 + $0x2c] sm:$0xf]
      %v487 = vshrl.u32 %v484, 16
      %v489 = vrot.slane %v487, 6
      %v490 = vshll.u32 %v484, 16
      %v492 = vrot.slane %v490, 7
      %v493 = vor.u32 %v489, %v492
      %v494 = vrot.slane %v493, 4
      %v496 = vshrl.u32 %v485, 16
      %v498 = vrot.slane %v496, 6
      %v499 = vshll.u32 %v485, 16
      %v501 = vrot.slane %v499, 7
      %v502 = vor.u32 %v498, %v501
      %v503 = vsel %vm343, %v494, %v502
      %v504 = vrot.slane %v502, 4
      %v508 = vld [vmem:[#allocation2 + $0x2c] sm:$0xe]
      %v509 = vsel %vm368, %v493, %v508
      %510 = vst [vmem:[#allocation2 + $0x2c] sm:$0xe] %v509
      %511 = vst [vmem:[#allocation2 + $0x30] sm:$0xf] %v503
      %v512 = vld [vmem:[#allocation2 + $0x34] sm:$0x3]
      %v513 = vsel %vm374, %v504, %v512
      %514 = vst [vmem:[#allocation2 + $0x34] sm:$0x3] %v513
      %v515 = vld [vmem:[%s274 + $0x30] sm:$0xf]
      %v516 = vld [vmem:[%s274 + $0x34] sm:$0xf]
      %v518 = vshrl.u32 %v515, 16
      %v520 = vrot.slane %v518, 5
      %v521 = vshll.u32 %v515, 16
      %v523 = vrot.slane %v521, 6
      %v524 = vor.u32 %v520, %v523
      %v525 = vrot.slane %v524, 4
      %v527 = vshrl.u32 %v516, 16
      %v529 = vrot.slane %v527, 5
      %v530 = vshll.u32 %v516, 16
      %v532 = vrot.slane %v530, 6
      %v533 = vor.u32 %v529, %v532
      %v534 = vsel %vm382, %v525, %v533
      %v535 = vrot.slane %v533, 4
      %v539 = vld [vmem:[#allocation2 + $0x34] sm:$0xc]
      %v540 = vsel %vm407, %v524, %v539
      %541 = vst [vmem:[#allocation2 + $0x34] sm:$0xc] %v540
      %542 = vst [vmem:[#allocation2 + $0x38] sm:$0xf] %v534
      %v543 = vld [vmem:[#allocation2 + $0x3c] sm:$0x7]
      %v544 = vsel %vm413, %v535, %v543
      %545 = vst [vmem:[#allocation2 + $0x3c] sm:$0x7] %v544
      %v546 = vld [vmem:[%s274 + $0x38] sm:$0xf]
      %v547 = vld [vmem:[%s274 + $0x3c] sm:$0xf]
      %v549 = vshll.u32 %v546, 16
      %v551 = vrot.slane %v549, 5
      %v552 = vshrl.u32 %v546, 16
      %v554 = vrot.slane %v552, 4
      %v555 = vor.u32 %v554, %v551
      %v556 = vrot.slane %v555, 4
      %v558 = vshll.u32 %v547, 16
      %v560 = vrot.slane %v558, 5
      %v561 = vsel %vm421, %v556, %v560
      %v562 = vshrl.u32 %v547, 16
      %v564 = vrot.slane %v562, 4
      %v565 = vor.u32 %v564, %v560
      %v566 = vrot.slane %v565, 4
      %v570 = vld [vmem:[#allocation2 + $0x3c] sm:$0x8]
      %v571 = vsel %vm446, %v551, %v570
      %572 = vst [vmem:[#allocation2 + $0x3c] sm:$0x8] %v571
      %573 = vst [vmem:[#allocation2 + $0x40] sm:$0xf] %v561
      %v574 = vld [vmem:[#allocation2 + $0x44] sm:$0xf]
      %v575 = vsel %vm451, %v566, %v574
      %576 = vst [vmem:[#allocation2 + $0x44] sm:$0xf] %v575
      %v577 = vld [vmem:[#allocation2] sm:$0xf]
      %v578 = vld [vmem:[#allocation2 + $0x4] sm:$0xf]
      %v579 = vld [vmem:[#allocation2 + $0x8] sm:$0xf]
      %v580 = vld [vmem:[#allocation2 + $0xc] sm:$0xf]
      %v581 = vld [vmem:[#allocation2 + $0x10] sm:$0xf]
      %v582 = vld [vmem:[#allocation2 + $0x14] sm:$0xf]
      %v583 = vld [vmem:[#allocation2 + $0x18] sm:$0xf]
      %v584 = vld [vmem:[#allocation2 + $0x1c] sm:$0xf]
      %v585 = vld [vmem:[#allocation2 + $0x20] sm:$0xf]
      %v586 = vld [vmem:[#allocation2 + $0x24] sm:$0xf]
      %v587 = vld [vmem:[#allocation2 + $0x28] sm:$0xf]
      %v588 = vld [vmem:[#allocation2 + $0x2c] sm:$0xf]
      %v589 = vld [vmem:[#allocation2 + $0x30] sm:$0xf]
      %v590 = vld [vmem:[#allocation2 + $0x34] sm:$0xf]
      %v591 = vld [vmem:[#allocation2 + $0x38] sm:$0xf]
      %v592 = vld [vmem:[#allocation2 + $0x3c] sm:$0xf]
      %v593 = vld [vmem:[#allocation2 + $0x40] sm:$0xf]
      %v594 = vld [vmem:[#allocation2 + $0x44] sm:$0xf]
      %v613 = vunpack.c.l.b16 %v577
      %v614 = vunpack.c.l.b16 %v578
      %v615 = vunpack.c.l.b16 %v579
      %v616 = vunpack.c.l.b16 %v580
      %v617 = vunpack.c.l.b16 %v581
      %v618 = vunpack.c.l.b16 %v582
      %v619 = vunpack.c.l.b16 %v583
      %v620 = vunpack.c.l.b16 %v584
      %v621 = vunpack.c.l.b16 %v585
      %v622 = vunpack.c.l.b16 %v586
      %v623 = vunpack.c.l.b16 %v587
      %v624 = vunpack.c.l.b16 %v588
      %v625 = vunpack.c.l.b16 %v589
      %v626 = vunpack.c.l.b16 %v590
      %v627 = vunpack.c.l.b16 %v591
      %v628 = vunpack.c.l.b16 %v592
      %v629 = vunpack.c.l.b16 %v593
      %v630 = vunpack.c.l.b16 %v594
      %v631 = vpack.c.b16 %v614, %v613
      %v632 = vpack.c.b16 %v616, %v615
      %v633 = vpack.c.b16 %v618, %v617
      %v634 = vpack.c.b16 %v620, %v619
      %v635 = vpack.c.b16 %v622, %v621
      %v636 = vpack.c.b16 %v624, %v623
      %v637 = vpack.c.b16 %v626, %v625
      %v638 = vpack.c.b16 %v628, %v627
      %v639 = vpack.c.b16 %v630, %v629
      %649 = vst [vmem:[#allocation3] sm:$0xff] %v631
      %650 = vst [vmem:[#allocation3 + $0x18] sm:$0xff] %v632
      %651 = vst [vmem:[#allocation3 + $0x30] sm:$0xff] %v633
      %652 = vst [vmem:[#allocation3 + $0x48] sm:$0xff] %v634
      %653 = vst [vmem:[#allocation3 + $0x60] sm:$0xff] %v635
      %654 = vst [vmem:[#allocation3 + $0x78] sm:$0xff] %v636
      %655 = vst [vmem:[#allocation3 + $0x90] sm:$0xff] %v637
      %656 = vst [vmem:[#allocation3 + $0xa8] sm:$0xff] %v638
      %657 = vst [vmem:[#allocation3 + $0xc0] sm:$0xff] %v639
      %v658 = vld [vmem:[#allocation2] sm:$0xf]
      %v659 = vld [vmem:[#allocation2 + $0x4] sm:$0xf]
      %v660 = vld [vmem:[#allocation2 + $0x8] sm:$0xf]
      %v661 = vld [vmem:[#allocation2 + $0xc] sm:$0xf]
      %v662 = vld [vmem:[#allocation2 + $0x10] sm:$0xf]
      %v663 = vld [vmem:[#allocation2 + $0x14] sm:$0xf]
      %v664 = vld [vmem:[#allocation2 + $0x18] sm:$0xf]
      %v665 = vld [vmem:[#allocation2 + $0x1c] sm:$0xf]
      %v666 = vld [vmem:[#allocation2 + $0x20] sm:$0xf]
      %v667 = vld [vmem:[#allocation2 + $0x24] sm:$0xf]
      %v668 = vld [vmem:[#allocation2 + $0x28] sm:$0xf]
      %v669 = vld [vmem:[#allocation2 + $0x2c] sm:$0xf]
      %v670 = vld [vmem:[#allocation2 + $0x30] sm:$0xf]
      %v671 = vld [vmem:[#allocation2 + $0x34] sm:$0xf]
      %v672 = vld [vmem:[#allocation2 + $0x38] sm:$0xf]
      %v673 = vld [vmem:[#allocation2 + $0x3c] sm:$0xf]
      %v674 = vld [vmem:[#allocation2 + $0x40] sm:$0xf]
      %v675 = vld [vmem:[#allocation2 + $0x44] sm:$0xf]
      %v676 = vld [vmem:[#allocation2 + $0x48] sm:$0x1]
      %v696 = vunpack.c.l.b16 %v658
      %v697 = vunpack.c.l.b16 %v659
      %v698 = vunpack.c.l.b16 %v660
      %v699 = vunpack.c.l.b16 %v661
      %v700 = vunpack.c.l.b16 %v662
      %v701 = vunpack.c.l.b16 %v663
      %v702 = vunpack.c.l.b16 %v664
      %v703 = vunpack.c.l.b16 %v665
      %v704 = vunpack.c.l.b16 %v666
      %v705 = vunpack.c.l.b16 %v667
      %v706 = vunpack.c.l.b16 %v668
      %v707 = vunpack.c.l.b16 %v669
      %v708 = vunpack.c.l.b16 %v670
      %v709 = vunpack.c.l.b16 %v671
      %v710 = vunpack.c.l.b16 %v672
      %v711 = vunpack.c.l.b16 %v673
      %v712 = vunpack.c.l.b16 %v674
      %v713 = vunpack.c.l.b16 %v675
      %v714 = vunpack.c.l.b16 %v676
      %v715 = vpack.c.b16 %v697, %v696
      %v716 = vpack.c.b16 %v699, %v698
      %v717 = vpack.c.b16 %v701, %v700
      %v718 = vpack.c.b16 %v703, %v702
      %v719 = vpack.c.b16 %v705, %v704
      %v720 = vpack.c.b16 %v707, %v706
      %v721 = vpack.c.b16 %v709, %v708
      %v722 = vpack.c.b16 %v711, %v710
      %v723 = vpack.c.b16 %v713, %v712
      %v724 = vpack.c.b16 %v714, %v714
      %vm725 = vsmask.f32 7424
      %v727 = vshrl.u32 %v715, 16
      %v729 = vshll.u32 %v715, 16
      %v731 = vrot.slane %v729, 1
      %v732 = vor.u32 %v727, %v731
      %v734 = vshll.u32 %v716, 16
      %v736 = vrot.slane %v734, 1
      %v737 = vsel %vm725, %v732, %v736
      %v738 = vshrl.u32 %v716, 16
      %v740 = vor.u32 %v738, %v736
      %v742 = vshll.u32 %v717, 16
      %v744 = vrot.slane %v742, 1
      %v745 = vsel %vm725, %v740, %v744
      %v746 = vshrl.u32 %v717, 16
      %v748 = vor.u32 %v746, %v744
      %v750 = vshll.u32 %v718, 16
      %v752 = vrot.slane %v750, 1
      %v753 = vsel %vm725, %v748, %v752
      %v754 = vshrl.u32 %v718, 16
      %v756 = vor.u32 %v754, %v752
      %v758 = vshll.u32 %v719, 16
      %v760 = vrot.slane %v758, 1
      %v761 = vsel %vm725, %v756, %v760
      %v762 = vshrl.u32 %v719, 16
      %v764 = vor.u32 %v762, %v760
      %v766 = vshll.u32 %v720, 16
      %v768 = vrot.slane %v766, 1
      %v769 = vsel %vm725, %v764, %v768
      %v770 = vshrl.u32 %v720, 16
      %v772 = vor.u32 %v770, %v768
      %v774 = vshll.u32 %v721, 16
      %v776 = vrot.slane %v774, 1
      %v777 = vsel %vm725, %v772, %v776
      %v778 = vshrl.u32 %v721, 16
      %v780 = vor.u32 %v778, %v776
      %v782 = vshll.u32 %v722, 16
      %v784 = vrot.slane %v782, 1
      %v785 = vsel %vm725, %v780, %v784
      %v786 = vshrl.u32 %v722, 16
      %v788 = vor.u32 %v786, %v784
      %v790 = vshll.u32 %v723, 16
      %v792 = vrot.slane %v790, 1
      %v793 = vsel %vm725, %v788, %v792
      %v794 = vshrl.u32 %v723, 16
      %v796 = vor.u32 %v794, %v792
      %v798 = vshll.u32 %v724, 16
      %v800 = vrot.slane %v798, 1
      %v801 = vsel %vm725, %v796, %v800
      %811 = vst [vmem:[#allocation3 + $0x8] sm:$0xff] %v737
      %812 = vst [vmem:[#allocation3 + $0x20] sm:$0xff] %v745
      %813 = vst [vmem:[#allocation3 + $0x38] sm:$0xff] %v753
      %814 = vst [vmem:[#allocation3 + $0x50] sm:$0xff] %v761
      %815 = vst [vmem:[#allocation3 + $0x68] sm:$0xff] %v769
      %816 = vst [vmem:[#allocation3 + $0x80] sm:$0xff] %v777
      %817 = vst [vmem:[#allocation3 + $0x98] sm:$0xff] %v785
      %818 = vst [vmem:[#allocation3 + $0xb0] sm:$0xff] %v793
      %819 = vst [vmem:[#allocation3 + $0xc8] sm:$0xff] %v801
      %v820 = vld [vmem:[#allocation2] sm:$0xe]
      %v821 = vld [vmem:[#allocation2 + $0x4] sm:$0xf]
      %v822 = vld [vmem:[#allocation2 + $0x8] sm:$0xf]
      %v823 = vld [vmem:[#allocation2 + $0xc] sm:$0xf]
      %v824 = vld [vmem:[#allocation2 + $0x10] sm:$0xf]
      %v825 = vld [vmem:[#allocation2 + $0x14] sm:$0xf]
      %v826 = vld [vmem:[#allocation2 + $0x18] sm:$0xf]
      %v827 = vld [vmem:[#allocation2 + $0x1c] sm:$0xf]
      %v828 = vld [vmem:[#allocation2 + $0x20] sm:$0xf]
      %v829 = vld [vmem:[#allocation2 + $0x24] sm:$0xf]
      %v830 = vld [vmem:[#allocation2 + $0x28] sm:$0xf]
      %v831 = vld [vmem:[#allocation2 + $0x2c] sm:$0xf]
      %v832 = vld [vmem:[#allocation2 + $0x30] sm:$0xf]
      %v833 = vld [vmem:[#allocation2 + $0x34] sm:$0xf]
      %v834 = vld [vmem:[#allocation2 + $0x38] sm:$0xf]
      %v835 = vld [vmem:[#allocation2 + $0x3c] sm:$0xf]
      %v836 = vld [vmem:[#allocation2 + $0x40] sm:$0xf]
      %v837 = vld [vmem:[#allocation2 + $0x44] sm:$0xf]
      %v838 = vld [vmem:[#allocation2 + $0x48] sm:$0x1]
      %v858 = vunpack.c.l.b16 %v820
      %v859 = vunpack.c.l.b16 %v821
      %v860 = vunpack.c.l.b16 %v822
      %v861 = vunpack.c.l.b16 %v823
      %v862 = vunpack.c.l.b16 %v824
      %v863 = vunpack.c.l.b16 %v825
      %v864 = vunpack.c.l.b16 %v826
      %v865 = vunpack.c.l.b16 %v827
      %v866 = vunpack.c.l.b16 %v828
      %v867 = vunpack.c.l.b16 %v829
      %v868 = vunpack.c.l.b16 %v830
      %v869 = vunpack.c.l.b16 %v831
      %v870 = vunpack.c.l.b16 %v832
      %v871 = vunpack.c.l.b16 %v833
      %v872 = vunpack.c.l.b16 %v834
      %v873 = vunpack.c.l.b16 %v835
      %v874 = vunpack.c.l.b16 %v836
      %v875 = vunpack.c.l.b16 %v837
      %v876 = vunpack.c.l.b16 %v838
      %v877 = vpack.c.b16 %v859, %v858
      %v878 = vpack.c.b16 %v861, %v860
      %v879 = vpack.c.b16 %v863, %v862
      %v880 = vpack.c.b16 %v865, %v864
      %v881 = vpack.c.b16 %v867, %v866
      %v882 = vpack.c.b16 %v869, %v868
      %v883 = vpack.c.b16 %v871, %v870
      %v884 = vpack.c.b16 %v873, %v872
      %v885 = vpack.c.b16 %v875, %v874
      %v886 = vpack.c.b16 %v876, %v876
      %vm887 = vcmask 1046528
      %v888 = vrot.slane %v877, 1
      %v889 = vrot.slane %v878, 1
      %v890 = vsel %vm887, %v888, %v889
      %v891 = vrot.slane %v879, 1
      %v892 = vsel %vm887, %v889, %v891
      %v893 = vrot.slane %v880, 1
      %v894 = vsel %vm887, %v891, %v893
      %v895 = vrot.slane %v881, 1
      %v896 = vsel %vm887, %v893, %v895
      %v897 = vrot.slane %v882, 1
      %v898 = vsel %vm887, %v895, %v897
      %v899 = vrot.slane %v883, 1
      %v900 = vsel %vm887, %v897, %v899
      %v901 = vrot.slane %v884, 1
      %v902 = vsel %vm887, %v899, %v901
      %v903 = vrot.slane %v885, 1
      %v904 = vsel %vm887, %v901, %v903
      %v905 = vrot.slane %v886, 1
      %v906 = vsel %vm887, %v903, %v905
      %916 = vst [vmem:[#allocation3 + $0x10] sm:$0xff] %v890
      %917 = vst [vmem:[#allocation3 + $0x28] sm:$0xff] %v892
      %918 = vst [vmem:[#allocation3 + $0x40] sm:$0xff] %v894
      %919 = vst [vmem:[#allocation3 + $0x58] sm:$0xff] %v896
      %920 = vst [vmem:[#allocation3 + $0x70] sm:$0xff] %v898
      %921 = vst [vmem:[#allocation3 + $0x88] sm:$0xff] %v900
      %922 = vst [vmem:[#allocation3 + $0xa0] sm:$0xff] %v902
      %923 = vst [vmem:[#allocation3 + $0xb8] sm:$0xff] %v904
      %924 = vst [vmem:[#allocation3 + $0xd0] sm:$0xff] %v906
      %v925 = vld [vmem:[#allocation3] sm:$0xff]
      %v926 = vld [vmem:[#allocation3 + $0x8] sm:$0xff]
      %v927 = vld [vmem:[#allocation3 + $0x10] sm:$0xff]
      %v928 = vld [vmem:[#allocation3 + $0x18] sm:$0xff]
      %v929 = vld [vmem:[#allocation3 + $0x20] sm:$0xff]
      %v930 = vld [vmem:[#allocation3 + $0x28] sm:$0xff]
      %v931 = vld [vmem:[#allocation3 + $0x30] sm:$0xff]
      %v932 = vld [vmem:[#allocation3 + $0x38] sm:$0xff]
      %v933 = vld [vmem:[#allocation3 + $0x40] sm:$0xff]
      %v934 = vld [vmem:[#allocation3 + $0x48] sm:$0xff]
      %v935 = vld [vmem:[#allocation3 + $0x50] sm:$0xff]
      %v936 = vld [vmem:[#allocation3 + $0x58] sm:$0xff]
      %v937 = vld [vmem:[#allocation3 + $0x60] sm:$0xff]
      %v938 = vld [vmem:[#allocation3 + $0x68] sm:$0xff]
      %v939 = vld [vmem:[#allocation3 + $0x70] sm:$0xff]
      %v940 = vld [vmem:[#allocation3 + $0x78] sm:$0xff]
      %v941 = vld [vmem:[#allocation3 + $0x80] sm:$0xff]
      %v942 = vld [vmem:[#allocation3 + $0x88] sm:$0xff]
      %v943 = vld [vmem:[#allocation3 + $0x90] sm:$0xff]
      %v944 = vld [vmem:[#allocation3 + $0x98] sm:$0xff]
      %v945 = vld [vmem:[#allocation3 + $0xa0] sm:$0xff]
      %v946 = vld [vmem:[#allocation3 + $0xa8] sm:$0xff]
      %v947 = vld [vmem:[#allocation3 + $0xb0] sm:$0xff]
      %v948 = vld [vmem:[#allocation3 + $0xb8] sm:$0xff]
      %v949 = vld [vmem:[#allocation3 + $0xc0] sm:$0xff]
      %v950 = vld [vmem:[#allocation3 + $0xc8] sm:$0xff]
      %v951 = vld [vmem:[#allocation3 + $0xd0] sm:$0xff]
      %v952 = vld [vmem:[%s1] sm:$0xf]
      %v953 = vld [vmem:[%s1 + $0x4] sm:$0xf]
      %v954 = vld [vmem:[%s1 + $0x8] sm:$0xf]
      %v955 = vld [vmem:[%s1 + $0xc] sm:$0xf]
      %v956 = vld [vmem:[%s1 + $0x10] sm:$0xf]
      %v957 = vld [vmem:[%s1 + $0x14] sm:$0xf]
      %v958 = vld [vmem:[%s1 + $0x18] sm:$0xf]
      %v959 = vld [vmem:[%s1 + $0x1c] sm:$0xf]
      %v960 = vld [vmem:[%s1 + $0x20] sm:$0xf]
      %v961 = vld [vmem:[%s1 + $0x24] sm:$0xf]
      %v962 = vld [vmem:[%s1 + $0x28] sm:$0xf]
      %v963 = vld [vmem:[%s1 + $0x2c] sm:$0xf]
      %v964 = vld [vmem:[%s1 + $0x30] sm:$0xf]
      %v965 = vld [vmem:[%s1 + $0x34] sm:$0xf]
      %v966 = vld [vmem:[%s1 + $0x38] sm:$0xf]
      %v967 = vld [vmem:[%s1 + $0x3c] sm:$0xf]
      %v968 = vld [vmem:[%s1 + $0x40] sm:$0xf]
      %v969 = vld [vmem:[%s1 + $0x44] sm:$0xf]
      %v970 = vld [vmem:[%s1 + $0x48] sm:$0xf]
      %v971 = vld [vmem:[%s1 + $0x4c] sm:$0xf]
      %v972 = vld [vmem:[%s1 + $0x50] sm:$0xf]
      %v973 = vld [vmem:[%s1 + $0x54] sm:$0xf]
      %v974 = vld [vmem:[%s1 + $0x58] sm:$0xf]
      %v975 = vld [vmem:[%s1 + $0x5c] sm:$0xf]
      %v976 = vld [vmem:[%s1 + $0x60] sm:$0xf]
      %v977 = vld [vmem:[%s1 + $0x64] sm:$0xf]
      %v978 = vld [vmem:[%s1 + $0x68] sm:$0xf]
      %v979 = vld [vmem:[%s1 + $0x6c] sm:$0xf]
      %v980 = vld [vmem:[%s1 + $0x70] sm:$0xf]
      %v981 = vld [vmem:[%s1 + $0x74] sm:$0xf]
      %v982 = vld [vmem:[%s1 + $0x78] sm:$0xf]
      %v983 = vld [vmem:[%s1 + $0x7c] sm:$0xf]
      %v984 = vld [vmem:[%s1 + $0x80] sm:$0xf]
      %v985 = vld [vmem:[%s1 + $0x84] sm:$0xf]
      %v986 = vld [vmem:[%s1 + $0x88] sm:$0xf]
      %v987 = vld [vmem:[%s1 + $0x8c] sm:$0xf]
      %v988 = vld [vmem:[%s1 + $0x90] sm:$0xf]
      %v989 = vld [vmem:[%s1 + $0x94] sm:$0xf]
      %v990 = vld [vmem:[%s1 + $0x98] sm:$0xf]
      %v991 = vld [vmem:[%s1 + $0x9c] sm:$0xf]
      %v992 = vld [vmem:[%s1 + $0xa0] sm:$0xf]
      %v993 = vld [vmem:[%s1 + $0xa4] sm:$0xf]
      %v994 = vld [vmem:[%s1 + $0xa8] sm:$0xf]
      %v995 = vld [vmem:[%s1 + $0xac] sm:$0xf]
      %v996 = vld [vmem:[%s1 + $0xb0] sm:$0xf]
      %v997 = vld [vmem:[%s1 + $0xb4] sm:$0xf]
      %v998 = vld [vmem:[%s1 + $0xb8] sm:$0xf]
      %v999 = vld [vmem:[%s1 + $0xbc] sm:$0xf]
      %v1000 = vld [vmem:[%s2] sm:$0x1]
      %v1002 = vlaneseq
      %v1003 = vshrl.u32 %v1002, 7
      %v1004 = vsub.s32 0, %v1003
      %v1005 = vrot.slane %v1000, %v1004
      %v1055 = vunpack.c.l.b16 %v952
      %v1056 = vunpack.c.l.b16 %v953
      %v1057 = vunpack.c.l.b16 %v954
      %v1058 = vunpack.c.l.b16 %v955
      %v1059 = vunpack.c.l.b16 %v956
      %v1060 = vunpack.c.l.b16 %v957
      %v1061 = vunpack.c.l.b16 %v958
      %v1062 = vunpack.c.l.b16 %v959
      %v1063 = vunpack.c.l.b16 %v960
      %v1064 = vunpack.c.l.b16 %v961
      %v1065 = vunpack.c.l.b16 %v962
      %v1066 = vunpack.c.l.b16 %v963
      %v1067 = vunpack.c.l.b16 %v964
      %v1068 = vunpack.c.l.b16 %v965
      %v1069 = vunpack.c.l.b16 %v966
      %v1070 = vunpack.c.l.b16 %v967
      %v1071 = vunpack.c.l.b16 %v968
      %v1072 = vunpack.c.l.b16 %v969
      %v1073 = vunpack.c.l.b16 %v970
      %v1074 = vunpack.c.l.b16 %v971
      %v1075 = vunpack.c.l.b16 %v972
      %v1076 = vunpack.c.l.b16 %v973
      %v1077 = vunpack.c.l.b16 %v974
      %v1078 = vunpack.c.l.b16 %v975
      %v1079 = vunpack.c.l.b16 %v976
      %v1080 = vunpack.c.l.b16 %v977
      %v1081 = vunpack.c.l.b16 %v978
      %v1082 = vunpack.c.l.b16 %v979
      %v1083 = vunpack.c.l.b16 %v980
      %v1084 = vunpack.c.l.b16 %v981
      %v1085 = vunpack.c.l.b16 %v982
      %v1086 = vunpack.c.l.b16 %v983
      %v1087 = vunpack.c.l.b16 %v984
      %v1088 = vunpack.c.l.b16 %v985
      %v1089 = vunpack.c.l.b16 %v986
      %v1090 = vunpack.c.l.b16 %v987
      %v1091 = vunpack.c.l.b16 %v988
      %v1092 = vunpack.c.l.b16 %v989
      %v1093 = vunpack.c.l.b16 %v990
      %v1094 = vunpack.c.l.b16 %v991
      %v1095 = vunpack.c.l.b16 %v992
      %v1096 = vunpack.c.l.b16 %v993
      %v1097 = vunpack.c.l.b16 %v994
      %v1098 = vunpack.c.l.b16 %v995
      %v1099 = vunpack.c.l.b16 %v996
      %v1100 = vunpack.c.l.b16 %v997
      %v1101 = vunpack.c.l.b16 %v998
      %v1102 = vunpack.c.l.b16 %v999
      %v1103 = vpack.c.b16 %v1056, %v1055
      %v1104 = vpack.c.b16 %v1058, %v1057
      %v1105 = vpack.c.b16 %v1060, %v1059
      %v1106 = vpack.c.b16 %v1062, %v1061
      %v1107 = vpack.c.b16 %v1064, %v1063
      %v1108 = vpack.c.b16 %v1066, %v1065
      %v1109 = vpack.c.b16 %v1068, %v1067
      %v1110 = vpack.c.b16 %v1070, %v1069
      %v1111 = vpack.c.b16 %v1072, %v1071
      %v1112 = vpack.c.b16 %v1074, %v1073
      %v1113 = vpack.c.b16 %v1076, %v1075
      %v1114 = vpack.c.b16 %v1078, %v1077
      %v1115 = vpack.c.b16 %v1080, %v1079
      %v1116 = vpack.c.b16 %v1082, %v1081
      %v1117 = vpack.c.b16 %v1084, %v1083
      %v1118 = vpack.c.b16 %v1086, %v1085
      %v1119 = vpack.c.b16 %v1088, %v1087
      %v1120 = vpack.c.b16 %v1090, %v1089
      %v1121 = vpack.c.b16 %v1092, %v1091
      %v1122 = vpack.c.b16 %v1094, %v1093
      %v1123 = vpack.c.b16 %v1096, %v1095
      %v1124 = vpack.c.b16 %v1098, %v1097
      %v1125 = vpack.c.b16 %v1100, %v1099
      %v1126 = vpack.c.b16 %v1102, %v1101
      %1151 = vmatprep.subr.bf16.mxu0 0
      %1152 = vmatpush1.bf16.msra.mxu0 %v1103
      %1153 = vmatprep.subr.bf16.mxu0 0
      %1154 = vmatpush1.bf16.msra.mxu0 %v1104
      %1155 = vmatprep.subr.bf16.mxu0 0
      %1156 = vmatpush1.bf16.msra.mxu0 %v1105
      %1157 = vmatprep.subr.bf16.mxu0 0
      %1158 = vmatpush1.bf16.msra.mxu0 %v1106
      %1159 = vmatprep.subr.bf16.mxu0 0
      %1160 = vmatpush1.bf16.msra.mxu0 %v1107
      %1161 = vmatprep.subr.bf16.mxu0 0
      %1162 = vmatpush1.bf16.msra.mxu0 %v1108
      %1163 = vmatprep.subr.bf16.mxu0 0
      %1164 = vmatpush1.bf16.msra.mxu0 %v1109
      %1165 = vmatprep.subr.bf16.mxu0 0
      %1166 = vmatpush1.bf16.msra.mxu0 %v1110
      %1167 = vmatprep.subr.bf16.mxu0 0
      %1168 = vmatpush1.bf16.msra.mxu0 %v1111
      %1169 = vmatprep.subr.bf16.mxu0 0
      %1170 = vmatpush1.bf16.msra.mxu0 %v1112
      %1171 = vmatprep.subr.bf16.mxu0 0
      %1172 = vmatpush1.bf16.msra.mxu0 %v1113
      %1173 = vmatprep.subr.bf16.mxu0 0
      %1174 = vmatpush1.bf16.msra.mxu0 %v1114
      %1175 = vmatprep.subr.bf16.mxu0 0
      %1176 = vmatpush1.bf16.msra.mxu0 %v1115
      %1177 = vmatprep.subr.bf16.mxu0 0
      %1178 = vmatpush1.bf16.msra.mxu0 %v1116
      %1179 = vmatprep.subr.bf16.mxu0 0
      %1180 = vmatpush1.bf16.msra.mxu0 %v1117
      %1181 = vmatprep.subr.bf16.mxu0 0
      %1182 = vmatpush1.bf16.msra.mxu0 %v1118
      %1183 = vmatprep.mubr.bf16.mxu0 %v926
      %1184 = vmatmul.mubr.bf16.gmra.mrb[0].mxu0 %v925
      %v1185 = vpop.f32.mrb[0].mxu0
      %v1186 = vadd.f32 %v1005, %v1185
      %v1187 = vpop.f32.mrb[0].mxu0
      %v1188 = vpop.f32.mrb[0].mxu0
      %v1189 = vadd.f32 %v1005, %v1188
      %v1190 = vpop.f32.mrb[0].mxu0
      %1191 = vmatprep.mubr.bf16.mxu0 %v929
      %1192 = vmatmul.mubr.bf16.gmra.mrb[0].mxu0 %v928
      %v1193 = vpop.f32.mrb[0].mxu0
      %v1194 = vadd.f32 %v1005, %v1193
      %v1195 = vpop.f32.mrb[0].mxu0
      %v1196 = vpop.f32.mrb[0].mxu0
      %v1197 = vadd.f32 %v1005, %v1196
      %v1198 = vpop.f32.mrb[0].mxu0
      %1199 = vmatprep.mubr.bf16.mxu0 %v932
      %1200 = vmatmul.mubr.bf16.gmra.mrb[0].mxu0 %v931
      %v1201 = vpop.f32.mrb[0].mxu0
      %v1202 = vadd.f32 %v1005, %v1201
      %v1203 = vpop.f32.mrb[0].mxu0
      %v1204 = vpop.f32.mrb[0].mxu0
      %v1205 = vadd.f32 %v1005, %v1204
      %v1206 = vpop.f32.mrb[0].mxu0
      %1207 = vmatprep.mubr.bf16.mxu0 %v935
      %1208 = vmatmul.mubr.bf16.gmra.mrb[0].mxu0 %v934
      %v1209 = vpop.f32.mrb[0].mxu0
      %v1210 = vadd.f32 %v1005, %v1209
      %v1211 = vpop.f32.mrb[0].mxu0
      %v1212 = vpop.f32.mrb[0].mxu0
      %v1213 = vadd.f32 %v1005, %v1212
      %v1214 = vpop.f32.mrb[0].mxu0
      %1215 = vmatprep.mubr.bf16.mxu0 %v938
      %1216 = vmatmul.mubr.bf16.gmra.mrb[0].mxu0 %v937
      %v1217 = vpop.f32.mrb[0].mxu0
      %v1218 = vadd.f32 %v1005, %v1217
      %v1219 = vpop.f32.mrb[0].mxu0
      %v1220 = vpop.f32.mrb[0].mxu0
      %v1221 = vadd.f32 %v1005, %v1220
      %v1222 = vpop.f32.mrb[0].mxu0
      %1223 = vmatprep.mubr.bf16.mxu0 %v941
      %1224 = vmatmul.mubr.bf16.gmra.mrb[0].mxu0 %v940
      %v1225 = vpop.f32.mrb[0].mxu0
      %v1226 = vadd.f32 %v1005, %v1225
      %v1227 = vpop.f32.mrb[0].mxu0
      %v1228 = vpop.f32.mrb[0].mxu0
      %v1229 = vadd.f32 %v1005, %v1228
      %v1230 = vpop.f32.mrb[0].mxu0
      %1231 = vmatprep.mubr.bf16.mxu0 %v944
      %1232 = vmatmul.mubr.bf16.gmra.mrb[0].mxu0 %v943
      %v1233 = vpop.f32.mrb[0].mxu0
      %v1234 = vadd.f32 %v1005, %v1233
      %v1235 = vpop.f32.mrb[0].mxu0
      %v1236 = vpop.f32.mrb[0].mxu0
      %v1237 = vadd.f32 %v1005, %v1236
      %v1238 = vpop.f32.mrb[0].mxu0
      %1239 = vmatprep.mubr.bf16.mxu0 %v947
      %1240 = vmatmul.mubr.bf16.gmra.mrb[0].mxu0 %v946
      %v1241 = vpop.f32.mrb[0].mxu0
      %v1242 = vadd.f32 %v1005, %v1241
      %v1243 = vpop.f32.mrb[0].mxu0
      %v1244 = vpop.f32.mrb[0].mxu0
      %v1245 = vadd.f32 %v1005, %v1244
      %v1246 = vpop.f32.mrb[0].mxu0
      %1247 = vmatprep.mubr.bf16.mxu0 %v950
      %1248 = vmatmul.mubr.bf16.gmra.mrb[0].mxu0 %v949
      %v1249 = vpop.f32.mrb[0].mxu0
      %v1250 = vadd.f32 %v1005, %v1249
      %v1251 = vpop.f32.mrb[0].mxu0
      %v1252 = vpop.f32.mrb[0].mxu0
      %v1253 = vadd.f32 %v1005, %v1252
      %v1254 = vpop.f32.mrb[0].mxu0
      %1255 = vdwg.mxu0
      %1256 = vmatprep.subr.bf16.mxu0 0
      %1257 = vmatpush1.bf16.msra.mxu0 %v1119
      %1258 = vmatprep.subr.bf16.mxu0 0
      %1259 = vmatpush1.bf16.msra.mxu0 %v1120
      %1260 = vmatprep.subr.bf16.mxu0 0
      %1261 = vmatpush1.bf16.msra.mxu0 %v1121
      %1262 = vmatprep.subr.bf16.mxu0 0
      %1263 = vmatpush1.bf16.msra.mxu0 %v1122
      %1264 = vmatprep.subr.bf16.mxu0 0
      %1265 = vmatpush1.bf16.msra.mxu0 %v1123
      %1266 = vmatprep.subr.bf16.mxu0 0
      %1267 = vmatpush1.bf16.msra.mxu0 %v1124
      %1268 = vmatprep.subr.bf16.mxu0 0
      %1269 = vmatpush1.bf16.msra.mxu0 %v1125
      %1270 = vmatprep.subr.bf16.mxu0 0
      %1271 = vmatpush1.bf16.msra.mxu0 %v1126
      %1272 = vmatprep.subr.bf16.mxu0 0
      %1273 = vmatpush1.bf16.msra.mxu0 0
      %1274 = vmatprep.subr.bf16.mxu0 0
      %1275 = vmatpush1.bf16.msra.mxu0 0
      %1276 = vmatprep.subr.bf16.mxu0 0
      %1277 = vmatpush1.bf16.msra.mxu0 0
      %1278 = vmatprep.subr.bf16.mxu0 0
      %1279 = vmatpush1.bf16.msra.mxu0 0
      %1280 = vmatprep.subr.bf16.mxu0 0
      %1281 = vmatpush1.bf16.msra.mxu0 0
      %1282 = vmatprep.subr.bf16.mxu0 0
      %1283 = vmatpush1.bf16.msra.mxu0 0
      %1284 = vmatprep.subr.bf16.mxu0 0
      %1285 = vmatpush1.bf16.msra.mxu0 0
      %1286 = vmatprep.subr.bf16.mxu0 0
      %1287 = vmatpush1.bf16.msra.mxu0 0
      %1288 = vmatprep.mubr.bf16.mxu0 0
      %1289 = vmatmul.mubr.bf16.gmra.mrb[0].mxu0 %v927
      %v1290 = vpop.f32.mrb[0].mxu0
      %v1291 = vadd.f32 %v1186, %v1290
      %v1292 = vpop.f32.mrb[0].mxu0
      %v1293 = vpop.f32.mrb[0].mxu0
      %v1294 = vadd.f32 %v1189, %v1293
      %v1295 = vpop.f32.mrb[0].mxu0
      %1296 = vmatprep.mubr.bf16.mxu0 0
      %1297 = vmatmul.mubr.bf16.gmra.mrb[0].mxu0 %v930
      %v1298 = vpop.f32.mrb[0].mxu0
      %v1299 = vadd.f32 %v1194, %v1298
      %v1300 = vpop.f32.mrb[0].mxu0
      %v1301 = vpop.f32.mrb[0].mxu0
      %v1302 = vadd.f32 %v1197, %v1301
      %v1303 = vpop.f32.mrb[0].mxu0
      %1304 = vmatprep.mubr.bf16.mxu0 0
      %1305 = vmatmul.mubr.bf16.gmra.mrb[0].mxu0 %v933
      %v1306 = vpop.f32.mrb[0].mxu0
      %v1307 = vadd.f32 %v1202, %v1306
      %v1308 = vpop.f32.mrb[0].mxu0
      %v1309 = vpop.f32.mrb[0].mxu0
      %v1310 = vadd.f32 %v1205, %v1309
      %v1311 = vpop.f32.mrb[0].mxu0
      %1312 = vmatprep.mubr.bf16.mxu0 0
      %1313 = vmatmul.mubr.bf16.gmra.mrb[0].mxu0 %v936
      %v1314 = vpop.f32.mrb[0].mxu0
      %v1315 = vadd.f32 %v1210, %v1314
      %v1316 = vpop.f32.mrb[0].mxu0
      %v1317 = vpop.f32.mrb[0].mxu0
      %v1318 = vadd.f32 %v1213, %v1317
      %v1319 = vpop.f32.mrb[0].mxu0
      %1320 = vmatprep.mubr.bf16.mxu0 0
      %1321 = vmatmul.mubr.bf16.gmra.mrb[0].mxu0 %v939
      %v1322 = vpop.f32.mrb[0].mxu0
      %v1323 = vadd.f32 %v1218, %v1322
      %v1324 = vpop.f32.mrb[0].mxu0
      %v1325 = vpop.f32.mrb[0].mxu0
      %v1326 = vadd.f32 %v1221, %v1325
      %v1327 = vpop.f32.mrb[0].mxu0
      %1328 = vmatprep.mubr.bf16.mxu0 0
      %1329 = vmatmul.mubr.bf16.gmra.mrb[0].mxu0 %v942
      %v1330 = vpop.f32.mrb[0].mxu0
      %v1331 = vadd.f32 %v1226, %v1330
      %v1332 = vpop.f32.mrb[0].mxu0
      %v1333 = vpop.f32.mrb[0].mxu0
      %v1334 = vadd.f32 %v1229, %v1333
      %v1335 = vpop.f32.mrb[0].mxu0
      %1336 = vmatprep.mubr.bf16.mxu0 0
      %1337 = vmatmul.mubr.bf16.gmra.mrb[0].mxu0 %v945
      %v1338 = vpop.f32.mrb[0].mxu0
      %v1339 = vadd.f32 %v1234, %v1338
      %v1340 = vpop.f32.mrb[0].mxu0
      %v1341 = vpop.f32.mrb[0].mxu0
      %v1342 = vadd.f32 %v1237, %v1341
      %v1343 = vpop.f32.mrb[0].mxu0
      %1344 = vmatprep.mubr.bf16.mxu0 0
      %1345 = vmatmul.mubr.bf16.gmra.mrb[0].mxu0 %v948
      %v1346 = vpop.f32.mrb[0].mxu0
      %v1347 = vadd.f32 %v1242, %v1346
      %v1348 = vpop.f32.mrb[0].mxu0
      %v1349 = vpop.f32.mrb[0].mxu0
      %v1350 = vadd.f32 %v1245, %v1349
      %v1351 = vpop.f32.mrb[0].mxu0
      %1352 = vmatprep.mubr.bf16.mxu0 0
      %1353 = vmatmul.mubr.bf16.gmra.mrb[0].mxu0 %v951
      %v1354 = vpop.f32.mrb[0].mxu0
      %v1355 = vadd.f32 %v1250, %v1354
      %v1356 = vpop.f32.mrb[0].mxu0
      %v1357 = vpop.f32.mrb[0].mxu0
      %v1358 = vadd.f32 %v1253, %v1357
      %v1359 = vpop.f32.mrb[0].mxu0
      %1360 = vdwg.mxu0
      %v1361 = vmax.f32 %v1291, 0.0
      %v1362 = vmax.f32 %v1294, 0.0
      %v1363 = vmax.f32 %v1299, 0.0
      %v1364 = vmax.f32 %v1302, 0.0
      %v1365 = vmax.f32 %v1307, 0.0
      %v1366 = vmax.f32 %v1310, 0.0
      %v1367 = vmax.f32 %v1315, 0.0
      %v1368 = vmax.f32 %v1318, 0.0
      %v1369 = vmax.f32 %v1323, 0.0
      %v1370 = vmax.f32 %v1326, 0.0
      %v1371 = vmax.f32 %v1331, 0.0
      %v1372 = vmax.f32 %v1334, 0.0
      %v1373 = vmax.f32 %v1339, 0.0
      %v1374 = vmax.f32 %v1342, 0.0
      %v1375 = vmax.f32 %v1347, 0.0
      %v1376 = vmax.f32 %v1350, 0.0
      %v1377 = vmax.f32 %v1355, 0.0
      %v1378 = vmax.f32 %v1358, 0.0
      %v1379 = vpack.c.bf16 %v1362, %v1361
      %v1380 = vpack.c.bf16 %v1364, %v1363
      %v1381 = vpack.c.bf16 %v1366, %v1365
      %v1382 = vpack.c.bf16 %v1368, %v1367
      %v1383 = vpack.c.bf16 %v1370, %v1369
      %v1384 = vpack.c.bf16 %v1372, %v1371
      %v1385 = vpack.c.bf16 %v1374, %v1373
      %v1386 = vpack.c.bf16 %v1376, %v1375
      %v1387 = vpack.c.bf16 %v1378, %v1377
      %v1397 = vunpack.c.l.b16 %v1379
      %v1398 = vunpack.c.h.b16 %v1379
      %v1399 = vunpack.c.l.b16 %v1380
      %v1400 = vunpack.c.h.b16 %v1380
      %v1401 = vunpack.c.l.b16 %v1381
      %v1402 = vunpack.c.h.b16 %v1381
      %v1403 = vunpack.c.l.b16 %v1382
      %v1404 = vunpack.c.h.b16 %v1382
      %v1405 = vunpack.c.l.b16 %v1383
      %v1406 = vunpack.c.h.b16 %v1383
      %v1407 = vunpack.c.l.b16 %v1384
      %v1408 = vunpack.c.h.b16 %v1384
      %v1409 = vunpack.c.l.b16 %v1385
      %v1410 = vunpack.c.h.b16 %v1385
      %v1411 = vunpack.c.l.b16 %v1386
      %v1412 = vunpack.c.h.b16 %v1386
      %v1413 = vunpack.c.l.b16 %v1387
      %v1414 = vunpack.c.h.b16 %v1387
      %v1415 = vpack.c.b16 %v1397, %v1397
      %v1416 = vpack.c.b16 %v1398, %v1398
      %v1417 = vpack.c.b16 %v1399, %v1399
      %v1418 = vpack.c.b16 %v1400, %v1400
      %v1419 = vpack.c.b16 %v1401, %v1401
      %v1420 = vpack.c.b16 %v1402, %v1402
      %v1421 = vpack.c.b16 %v1403, %v1403
      %v1422 = vpack.c.b16 %v1404, %v1404
      %v1423 = vpack.c.b16 %v1405, %v1405
      %v1424 = vpack.c.b16 %v1406, %v1406
      %v1425 = vpack.c.b16 %v1407, %v1407
      %v1426 = vpack.c.b16 %v1408, %v1408
      %v1427 = vpack.c.b16 %v1409, %v1409
      %v1428 = vpack.c.b16 %v1410, %v1410
      %v1429 = vpack.c.b16 %v1411, %v1411
      %v1430 = vpack.c.b16 %v1412, %v1412
      %v1431 = vpack.c.b16 %v1413, %v1413
      %v1432 = vpack.c.b16 %v1414, %v1414
      %v1434 = vshrl.u32 %v1415, 16
      %v1436 = vrot.slane %v1434, 7
      %v1437 = vshll.u32 %v1415, 16
      %v1439 = vor.u32 %v1436, %v1437
      %v1440 = vrot.slane %v1436, 4
      %v1442 = vshrl.u32 %v1416, 16
      %v1444 = vrot.slane %v1442, 7
      %v1445 = vshll.u32 %v1416, 16
      %v1447 = vor.u32 %v1444, %v1445
      %v1448 = vsel %vm306, %v1440, %v1447
      %v1449 = vrot.slane %v1444, 4
      %v1451 = vshrl.u32 %v1417, 16
      %v1453 = vrot.slane %v1451, 7
      %v1454 = vshll.u32 %v1417, 16
      %v1456 = vor.u32 %v1453, %v1454
      %v1457 = vsel %vm306, %v1449, %v1456
      %v1458 = vrot.slane %v1453, 4
      %v1460 = vshrl.u32 %v1418, 16
      %v1462 = vrot.slane %v1460, 7
      %v1463 = vshll.u32 %v1418, 16
      %v1465 = vor.u32 %v1462, %v1463
      %v1466 = vsel %vm306, %v1458, %v1465
      %v1467 = vrot.slane %v1462, 4
      %v1469 = vshrl.u32 %v1419, 16
      %v1471 = vrot.slane %v1469, 7
      %v1472 = vshll.u32 %v1419, 16
      %v1474 = vor.u32 %v1471, %v1472
      %v1475 = vsel %vm306, %v1467, %v1474
      %v1476 = vrot.slane %v1471, 4
      %v1478 = vshrl.u32 %v1420, 16
      %v1480 = vrot.slane %v1478, 7
      %v1481 = vshll.u32 %v1420, 16
      %v1483 = vor.u32 %v1480, %v1481
      %v1484 = vsel %vm306, %v1476, %v1483
      %v1485 = vrot.slane %v1480, 4
      %v1487 = vshrl.u32 %v1421, 16
      %v1489 = vrot.slane %v1487, 7
      %v1490 = vshll.u32 %v1421, 16
      %v1492 = vor.u32 %v1489, %v1490
      %v1493 = vsel %vm306, %v1485, %v1492
      %v1494 = vrot.slane %v1489, 4
      %v1496 = vshrl.u32 %v1422, 16
      %v1498 = vrot.slane %v1496, 7
      %v1499 = vshll.u32 %v1422, 16
      %v1501 = vor.u32 %v1498, %v1499
      %v1502 = vsel %vm306, %v1494, %v1501
      %v1503 = vrot.slane %v1498, 4
      %v1505 = vshrl.u32 %v1423, 16
      %v1507 = vrot.slane %v1505, 7
      %v1508 = vshll.u32 %v1423, 16
      %v1510 = vor.u32 %v1507, %v1508
      %v1511 = vsel %vm306, %v1503, %v1510
      %v1512 = vrot.slane %v1507, 4
      %v1514 = vshrl.u32 %v1424, 16
      %v1516 = vrot.slane %v1514, 7
      %v1517 = vshll.u32 %v1424, 16
      %v1519 = vor.u32 %v1516, %v1517
      %v1520 = vsel %vm306, %v1512, %v1519
      %v1521 = vrot.slane %v1516, 4
      %v1523 = vshrl.u32 %v1425, 16
      %v1525 = vrot.slane %v1523, 7
      %v1526 = vshll.u32 %v1425, 16
      %v1528 = vor.u32 %v1525, %v1526
      %v1529 = vsel %vm306, %v1521, %v1528
      %v1530 = vrot.slane %v1525, 4
      %v1532 = vshrl.u32 %v1426, 16
      %v1534 = vrot.slane %v1532, 7
      %v1535 = vshll.u32 %v1426, 16
      %v1537 = vor.u32 %v1534, %v1535
      %v1538 = vsel %vm306, %v1530, %v1537
      %v1539 = vrot.slane %v1534, 4
      %v1541 = vshrl.u32 %v1427, 16
      %v1543 = vrot.slane %v1541, 7
      %v1544 = vshll.u32 %v1427, 16
      %v1546 = vor.u32 %v1543, %v1544
      %v1547 = vsel %vm306, %v1539, %v1546
      %v1548 = vrot.slane %v1543, 4
      %v1550 = vshrl.u32 %v1428, 16
      %v1552 = vrot.slane %v1550, 7
      %v1553 = vshll.u32 %v1428, 16
      %v1555 = vor.u32 %v1552, %v1553
      %v1556 = vsel %vm306, %v1548, %v1555
      %v1557 = vrot.slane %v1552, 4
      %v1559 = vshrl.u32 %v1429, 16
      %v1561 = vrot.slane %v1559, 7
      %v1562 = vshll.u32 %v1429, 16
      %v1564 = vor.u32 %v1561, %v1562
      %v1565 = vsel %vm306, %v1557, %v1564
      %v1566 = vrot.slane %v1561, 4
      %v1568 = vshrl.u32 %v1430, 16
      %v1570 = vrot.slane %v1568, 7
      %v1571 = vshll.u32 %v1430, 16
      %v1573 = vor.u32 %v1570, %v1571
      %v1574 = vsel %vm306, %v1566, %v1573
      %v1575 = vrot.slane %v1570, 4
      %v1577 = vshrl.u32 %v1431, 16
      %v1579 = vrot.slane %v1577, 7
      %v1580 = vshll.u32 %v1431, 16
      %v1582 = vor.u32 %v1579, %v1580
      %v1583 = vsel %vm306, %v1575, %v1582
      %v1584 = vrot.slane %v1579, 4
      %v1586 = vshrl.u32 %v1432, 16
      %v1588 = vrot.slane %v1586, 7
      %v1589 = vshll.u32 %v1432, 16
      %v1591 = vor.u32 %v1588, %v1589
      %v1592 = vsel %vm306, %v1584, %v1591
      %v1593 = vrot.slane %v1588, 4
      %v1613 = vld [vmem:[#allocation2] sm:$0xf]
      %v1614 = vsel %vm329, %v1439, %v1613
      %1615 = vst [vmem:[#allocation2] sm:$0xf] %v1614
      %1616 = vst [vmem:[#allocation2 + $0x4] sm:$0xf] %v1448
      %1617 = vst [vmem:[#allocation2 + $0x8] sm:$0xf] %v1457
      %1618 = vst [vmem:[#allocation2 + $0xc] sm:$0xf] %v1466
      %1619 = vst [vmem:[#allocation2 + $0x10] sm:$0xf] %v1475
      %1620 = vst [vmem:[#allocation2 + $0x14] sm:$0xf] %v1484
      %1621 = vst [vmem:[#allocation2 + $0x18] sm:$0xf] %v1493
      %1622 = vst [vmem:[#allocation2 + $0x1c] sm:$0xf] %v1502
      %1623 = vst [vmem:[#allocation2 + $0x20] sm:$0xf] %v1511
      %1624 = vst [vmem:[#allocation2 + $0x24] sm:$0xf] %v1520
      %1625 = vst [vmem:[#allocation2 + $0x28] sm:$0xf] %v1529
      %1626 = vst [vmem:[#allocation2 + $0x2c] sm:$0xf] %v1538
      %1627 = vst [vmem:[#allocation2 + $0x30] sm:$0xf] %v1547
      %1628 = vst [vmem:[#allocation2 + $0x34] sm:$0xf] %v1556
      %1629 = vst [vmem:[#allocation2 + $0x38] sm:$0xf] %v1565
      %1630 = vst [vmem:[#allocation2 + $0x3c] sm:$0xf] %v1574
      %1631 = vst [vmem:[#allocation2 + $0x40] sm:$0xf] %v1583
      %1632 = vst [vmem:[#allocation2 + $0x44] sm:$0xf] %v1592
      %v1633 = vld [vmem:[#allocation2 + $0x48] sm:$0x1]
      %v1634 = vsel %vm335, %v1593, %v1633
      %1635 = vst [vmem:[#allocation2 + $0x48] sm:$0x1] %v1634
      %v1636 = vld [vmem:[#allocation2] sm:$0x1]
      %v1637 = vsel %vm335, 0, %v1636
      %1638 = vst [vmem:[#allocation2] sm:$0x1] %v1637
      %vm1639 = vmand %vm334, %vm328
      %v1640 = vld [vmem:[#allocation2 + $0x8] sm:$0x1]
      %v1641 = vsel %vm1639, 0, %v1640
      %1642 = vst [vmem:[#allocation2 + $0x8] sm:$0x1] %v1641
      %vm1643 = vcmask 1041409
      %vm1644 = vmand %vm1643, %vm341
      %v1645 = vld [vmem:[#allocation2 + $0x8] sm:$0x2]
      %v1646 = vsel %vm1644, 0, %v1645
      %1647 = vst [vmem:[#allocation2 + $0x8] sm:$0x2] %v1646
      %vm1648 = vmand %vm1643, %vm367
      %v1649 = vld [vmem:[#allocation2 + $0x10] sm:$0x2]
      %v1650 = vsel %vm1648, 0, %v1649
      %1651 = vst [vmem:[#allocation2 + $0x10] sm:$0x2] %v1650
      %vm1652 = vcmask 1042434
      %vm1653 = vmand %vm1652, %vm380
      %v1654 = vld [vmem:[#allocation2 + $0x10] sm:$0x4]
      %v1655 = vsel %vm1653, 0, %v1654
      %1656 = vst [vmem:[#allocation2 + $0x10] sm:$0x4] %v1655
      %vm1657 = vmand %vm1652, %vm406
      %v1658 = vld [vmem:[#allocation2 + $0x18] sm:$0x4]
      %v1659 = vsel %vm1657, 0, %v1658
      %1660 = vst [vmem:[#allocation2 + $0x18] sm:$0x4] %v1659
      %vm1661 = vmand %vm444, %vm419
      %v1662 = vld [vmem:[#allocation2 + $0x18] sm:$0x8]
      %v1663 = vsel %vm1661, 0, %v1662
      %1664 = vst [vmem:[#allocation2 + $0x18] sm:$0x8] %v1663
      %v1665 = vld [vmem:[#allocation2 + $0x20] sm:$0x8]
      %v1666 = vsel %vm446, 0, %v1665
      %1667 = vst [vmem:[#allocation2 + $0x20] sm:$0x8] %v1666
      %v1668 = vld [vmem:[#allocation2 + $0x24] sm:$0x1]
      %v1669 = vsel %vm335, 0, %v1668
      %1670 = vst [vmem:[#allocation2 + $0x24] sm:$0x1] %v1669
      %v1671 = vld [vmem:[#allocation2 + $0x2c] sm:$0x1]
      %v1672 = vsel %vm1639, 0, %v1671
      %1673 = vst [vmem:[#allocation2 + $0x2c] sm:$0x1] %v1672
      %v1674 = vld [vmem:[#allocation2 + $0x2c] sm:$0x2]
      %v1675 = vsel %vm1644, 0, %v1674
      %1676 = vst [vmem:[#allocation2 + $0x2c] sm:$0x2] %v1675
      %v1677 = vld [vmem:[#allocation2 + $0x34] sm:$0x2]
      %v1678 = vsel %vm1648, 0, %v1677
      %1679 = vst [vmem:[#allocation2 + $0x34] sm:$0x2] %v1678
      %v1680 = vld [vmem:[#allocation2 + $0x34] sm:$0x4]
      %v1681 = vsel %vm1653, 0, %v1680
      %1682 = vst [vmem:[#allocation2 + $0x34] sm:$0x4] %v1681
      %v1683 = vld [vmem:[#allocation2 + $0x3c] sm:$0x4]
      %v1684 = vsel %vm1657, 0, %v1683
      %1685 = vst [vmem:[#allocation2 + $0x3c] sm:$0x4] %v1684
      %v1686 = vld [vmem:[#allocation2 + $0x3c] sm:$0x8]
      %v1687 = vsel %vm1661, 0, %v1686
      %1688 = vst [vmem:[#allocation2 + $0x3c] sm:$0x8] %v1687
      %v1689 = vld [vmem:[#allocation2 + $0x44] sm:$0x8]
      %v1690 = vsel %vm446, 0, %v1689
      %1691 = vst [vmem:[#allocation2 + $0x44] sm:$0x8] %v1690
      %1692 = vst [vmem:[#allocation2 + $0x48] sm:$0x1] 0
      %v1693 = vld [vmem:[#allocation2] sm:$0xf]
      %v1694 = vld [vmem:[#allocation2 + $0x4] sm:$0xf]
      %v1695 = vld [vmem:[#allocation2 + $0x8] sm:$0xf]
      %v1696 = vld [vmem:[#allocation2 + $0xc] sm:$0xf]
      %v1697 = vld [vmem:[#allocation2 + $0x10] sm:$0xf]
      %v1698 = vld [vmem:[#allocation2 + $0x14] sm:$0xf]
      %v1699 = vld [vmem:[#allocation2 + $0x18] sm:$0xf]
      %v1700 = vld [vmem:[#allocation2 + $0x1c] sm:$0xf]
      %v1701 = vld [vmem:[#allocation2 + $0x20] sm:$0xf]
      %v1702 = vld [vmem:[#allocation2 + $0x24] sm:$0xf]
      %v1703 = vld [vmem:[#allocation2 + $0x28] sm:$0xf]
      %v1704 = vld [vmem:[#allocation2 + $0x2c] sm:$0xf]
      %v1705 = vld [vmem:[#allocation2 + $0x30] sm:$0xf]
      %v1706 = vld [vmem:[#allocation2 + $0x34] sm:$0xf]
      %v1707 = vld [vmem:[#allocation2 + $0x38] sm:$0xf]
      %v1708 = vld [vmem:[#allocation2 + $0x3c] sm:$0xf]
      %v1709 = vld [vmem:[#allocation2 + $0x40] sm:$0xf]
      %v1710 = vld [vmem:[#allocation2 + $0x44] sm:$0xf]
      %v1729 = vunpack.c.l.b16 %v1693
      %v1730 = vunpack.c.l.b16 %v1694
      %v1731 = vunpack.c.l.b16 %v1695
      %v1732 = vunpack.c.l.b16 %v1696
      %v1733 = vunpack.c.l.b16 %v1697
      %v1734 = vunpack.c.l.b16 %v1698
      %v1735 = vunpack.c.l.b16 %v1699
      %v1736 = vunpack.c.l.b16 %v1700
      %v1737 = vunpack.c.l.b16 %v1701
      %v1738 = vunpack.c.l.b16 %v1702
      %v1739 = vunpack.c.l.b16 %v1703
      %v1740 = vunpack.c.l.b16 %v1704
      %v1741 = vunpack.c.l.b16 %v1705
      %v1742 = vunpack.c.l.b16 %v1706
      %v1743 = vunpack.c.l.b16 %v1707
      %v1744 = vunpack.c.l.b16 %v1708
      %v1745 = vunpack.c.l.b16 %v1709
      %v1746 = vunpack.c.l.b16 %v1710
      %v1747 = vpack.c.b16 %v1730, %v1729
      %v1748 = vpack.c.b16 %v1732, %v1731
      %v1749 = vpack.c.b16 %v1734, %v1733
      %v1750 = vpack.c.b16 %v1736, %v1735
      %v1751 = vpack.c.b16 %v1738, %v1737
      %v1752 = vpack.c.b16 %v1740, %v1739
      %v1753 = vpack.c.b16 %v1742, %v1741
      %v1754 = vpack.c.b16 %v1744, %v1743
      %v1755 = vpack.c.b16 %v1746, %v1745
      %1765 = vst [vmem:[#allocation3] sm:$0xff] %v1747
      %1766 = vst [vmem:[#allocation3 + $0x18] sm:$0xff] %v1748
      %1767 = vst [vmem:[#allocation3 + $0x30] sm:$0xff] %v1749
      %1768 = vst [vmem:[#allocation3 + $0x48] sm:$0xff] %v1750
      %1769 = vst [vmem:[#allocation3 + $0x60] sm:$0xff] %v1751
      %1770 = vst [vmem:[#allocation3 + $0x78] sm:$0xff] %v1752
      %1771 = vst [vmem:[#allocation3 + $0x90] sm:$0xff] %v1753
      %1772 = vst [vmem:[#allocation3 + $0xa8] sm:$0xff] %v1754
      %1773 = vst [vmem:[#allocation3 + $0xc0] sm:$0xff] %v1755
      %v1774 = vld [vmem:[#allocation2] sm:$0xf]
      %v1775 = vld [vmem:[#allocation2 + $0x4] sm:$0xf]
      %v1776 = vld [vmem:[#allocation2 + $0x8] sm:$0xf]
      %v1777 = vld [vmem:[#allocation2 + $0xc] sm:$0xf]
      %v1778 = vld [vmem:[#allocation2 + $0x10] sm:$0xf]
      %v1779 = vld [vmem:[#allocation2 + $0x14] sm:$0xf]
      %v1780 = vld [vmem:[#allocation2 + $0x18] sm:$0xf]
      %v1781 = vld [vmem:[#allocation2 + $0x1c] sm:$0xf]
      %v1782 = vld [vmem:[#allocation2 + $0x20] sm:$0xf]
      %v1783 = vld [vmem:[#allocation2 + $0x24] sm:$0xf]
      %v1784 = vld [vmem:[#allocation2 + $0x28] sm:$0xf]
      %v1785 = vld [vmem:[#allocation2 + $0x2c] sm:$0xf]
      %v1786 = vld [vmem:[#allocation2 + $0x30] sm:$0xf]
      %v1787 = vld [vmem:[#allocation2 + $0x34] sm:$0xf]
      %v1788 = vld [vmem:[#allocation2 + $0x38] sm:$0xf]
      %v1789 = vld [vmem:[#allocation2 + $0x3c] sm:$0xf]
      %v1790 = vld [vmem:[#allocation2 + $0x40] sm:$0xf]
      %v1791 = vld [vmem:[#allocation2 + $0x44] sm:$0xf]
      %v1792 = vld [vmem:[#allocation2 + $0x48] sm:$0x1]
      %v1812 = vunpack.c.l.b16 %v1774
      %v1813 = vunpack.c.l.b16 %v1775
      %v1814 = vunpack.c.l.b16 %v1776
      %v1815 = vunpack.c.l.b16 %v1777
      %v1816 = vunpack.c.l.b16 %v1778
      %v1817 = vunpack.c.l.b16 %v1779
      %v1818 = vunpack.c.l.b16 %v1780
      %v1819 = vunpack.c.l.b16 %v1781
      %v1820 = vunpack.c.l.b16 %v1782
      %v1821 = vunpack.c.l.b16 %v1783
      %v1822 = vunpack.c.l.b16 %v1784
      %v1823 = vunpack.c.l.b16 %v1785
      %v1824 = vunpack.c.l.b16 %v1786
      %v1825 = vunpack.c.l.b16 %v1787
      %v1826 = vunpack.c.l.b16 %v1788
      %v1827 = vunpack.c.l.b16 %v1789
      %v1828 = vunpack.c.l.b16 %v1790
      %v1829 = vunpack.c.l.b16 %v1791
      %v1830 = vunpack.c.l.b16 %v1792
      %v1831 = vpack.c.b16 %v1813, %v1812
      %v1832 = vpack.c.b16 %v1815, %v1814
      %v1833 = vpack.c.b16 %v1817, %v1816
      %v1834 = vpack.c.b16 %v1819, %v1818
      %v1835 = vpack.c.b16 %v1821, %v1820
      %v1836 = vpack.c.b16 %v1823, %v1822
      %v1837 = vpack.c.b16 %v1825, %v1824
      %v1838 = vpack.c.b16 %v1827, %v1826
      %v1839 = vpack.c.b16 %v1829, %v1828
      %v1840 = vpack.c.b16 %v1830, %v1830
      %v1842 = vshrl.u32 %v1831, 16
      %v1844 = vshll.u32 %v1831, 16
      %v1846 = vrot.slane %v1844, 1
      %v1847 = vor.u32 %v1842, %v1846
      %v1849 = vshll.u32 %v1832, 16
      %v1851 = vrot.slane %v1849, 1
      %v1852 = vsel %vm725, %v1847, %v1851
      %v1853 = vshrl.u32 %v1832, 16
      %v1855 = vor.u32 %v1853, %v1851
      %v1857 = vshll.u32 %v1833, 16
      %v1859 = vrot.slane %v1857, 1
      %v1860 = vsel %vm725, %v1855, %v1859
      %v1861 = vshrl.u32 %v1833, 16
      %v1863 = vor.u32 %v1861, %v1859
      %v1865 = vshll.u32 %v1834, 16
      %v1867 = vrot.slane %v1865, 1
      %v1868 = vsel %vm725, %v1863, %v1867
      %v1869 = vshrl.u32 %v1834, 16
      %v1871 = vor.u32 %v1869, %v1867
      %v1873 = vshll.u32 %v1835, 16
      %v1875 = vrot.slane %v1873, 1
      %v1876 = vsel %vm725, %v1871, %v1875
      %v1877 = vshrl.u32 %v1835, 16
      %v1879 = vor.u32 %v1877, %v1875
      %v1881 = vshll.u32 %v1836, 16
      %v1883 = vrot.slane %v1881, 1
      %v1884 = vsel %vm725, %v1879, %v1883
      %v1885 = vshrl.u32 %v1836, 16
      %v1887 = vor.u32 %v1885, %v1883
      %v1889 = vshll.u32 %v1837, 16
      %v1891 = vrot.slane %v1889, 1
      %v1892 = vsel %vm725, %v1887, %v1891
      %v1893 = vshrl.u32 %v1837, 16
      %v1895 = vor.u32 %v1893, %v1891
      %v1897 = vshll.u32 %v1838, 16
      %v1899 = vrot.slane %v1897, 1
      %v1900 = vsel %vm725, %v1895, %v1899
      %v1901 = vshrl.u32 %v1838, 16
      %v1903 = vor.u32 %v1901, %v1899
      %v1905 = vshll.u32 %v1839, 16
      %v1907 = vrot.slane %v1905, 1
      %v1908 = vsel %vm725, %v1903, %v1907
      %v1909 = vshrl.u32 %v1839, 16
      %v1911 = vor.u32 %v1909, %v1907
      %v1913 = vshll.u32 %v1840, 16
      %v1915 = vrot.slane %v1913, 1
      %v1916 = vsel %vm725, %v1911, %v1915
      %1926 = vst [vmem:[#allocation3 + $0x8] sm:$0xff] %v1852
      %1927 = vst [vmem:[#allocation3 + $0x20] sm:$0xff] %v1860
      %1928 = vst [vmem:[#allocation3 + $0x38] sm:$0xff] %v1868
      %1929 = vst [vmem:[#allocation3 + $0x50] sm:$0xff] %v1876
      %1930 = vst [vmem:[#allocation3 + $0x68] sm:$0xff] %v1884
      %1931 = vst [vmem:[#allocation3 + $0x80] sm:$0xff] %v1892
      %1932 = vst [vmem:[#allocation3 + $0x98] sm:$0xff] %v1900
      %1933 = vst [vmem:[#allocation3 + $0xb0] sm:$0xff] %v1908
      %1934 = vst [vmem:[#allocation3 + $0xc8] sm:$0xff] %v1916
      %v1935 = vld [vmem:[#allocation2] sm:$0xe]
      %v1936 = vld [vmem:[#allocation2 + $0x4] sm:$0xf]
      %v1937 = vld [vmem:[#allocation2 + $0x8] sm:$0xf]
      %v1938 = vld [vmem:[#allocation2 + $0xc] sm:$0xf]
      %v1939 = vld [vmem:[#allocation2 + $0x10] sm:$0xf]
      %v1940 = vld [vmem:[#allocation2 + $0x14] sm:$0xf]
      %v1941 = vld [vmem:[#allocation2 + $0x18] sm:$0xf]
      %v1942 = vld [vmem:[#allocation2 + $0x1c] sm:$0xf]
      %v1943 = vld [vmem:[#allocation2 + $0x20] sm:$0xf]
      %v1944 = vld [vmem:[#allocation2 + $0x24] sm:$0xf]
      %v1945 = vld [vmem:[#allocation2 + $0x28] sm:$0xf]
      %v1946 = vld [vmem:[#allocation2 + $0x2c] sm:$0xf]
      %v1947 = vld [vmem:[#allocation2 + $0x30] sm:$0xf]
      %v1948 = vld [vmem:[#allocation2 + $0x34] sm:$0xf]
      %v1949 = vld [vmem:[#allocation2 + $0x38] sm:$0xf]
      %v1950 = vld [vmem:[#allocation2 + $0x3c] sm:$0xf]
      %v1951 = vld [vmem:[#allocation2 + $0x40] sm:$0xf]
      %v1952 = vld [vmem:[#allocation2 + $0x44] sm:$0xf]
      %v1953 = vld [vmem:[#allocation2 + $0x48] sm:$0x1]
      %v1973 = vunpack.c.l.b16 %v1935
      %v1974 = vunpack.c.l.b16 %v1936
      %v1975 = vunpack.c.l.b16 %v1937
      %v1976 = vunpack.c.l.b16 %v1938
      %v1977 = vunpack.c.l.b16 %v1939
      %v1978 = vunpack.c.l.b16 %v1940
      %v1979 = vunpack.c.l.b16 %v1941
      %v1980 = vunpack.c.l.b16 %v1942
      %v1981 = vunpack.c.l.b16 %v1943
      %v1982 = vunpack.c.l.b16 %v1944
      %v1983 = vunpack.c.l.b16 %v1945
      %v1984 = vunpack.c.l.b16 %v1946
      %v1985 = vunpack.c.l.b16 %v1947
      %v1986 = vunpack.c.l.b16 %v1948
      %v1987 = vunpack.c.l.b16 %v1949
      %v1988 = vunpack.c.l.b16 %v1950
      %v1989 = vunpack.c.l.b16 %v1951
      %v1990 = vunpack.c.l.b16 %v1952
      %v1991 = vunpack.c.l.b16 %v1953
      %v1992 = vpack.c.b16 %v1974, %v1973
      %v1993 = vpack.c.b16 %v1976, %v1975
      %v1994 = vpack.c.b16 %v1978, %v1977
      %v1995 = vpack.c.b16 %v1980, %v1979
      %v1996 = vpack.c.b16 %v1982, %v1981
      %v1997 = vpack.c.b16 %v1984, %v1983
      %v1998 = vpack.c.b16 %v1986, %v1985
      %v1999 = vpack.c.b16 %v1988, %v1987
      %v2000 = vpack.c.b16 %v1990, %v1989
      %v2001 = vpack.c.b16 %v1991, %v1991
      %v2002 = vrot.slane %v1992, 1
      %v2003 = vrot.slane %v1993, 1
      %v2004 = vsel %vm887, %v2002, %v2003
      %v2005 = vrot.slane %v1994, 1
      %v2006 = vsel %vm887, %v2003, %v2005
      %v2007 = vrot.slane %v1995, 1
      %v2008 = vsel %vm887, %v2005, %v2007
      %v2009 = vrot.slane %v1996, 1
      %v2010 = vsel %vm887, %v2007, %v2009
      %v2011 = vrot.slane %v1997, 1
      %v2012 = vsel %vm887, %v2009, %v2011
      %v2013 = vrot.slane %v1998, 1
      %v2014 = vsel %vm887, %v2011, %v2013
      %v2015 = vrot.slane %v1999, 1
      %v2016 = vsel %vm887, %v2013, %v2015
      %v2017 = vrot.slane %v2000, 1
      %v2018 = vsel %vm887, %v2015, %v2017
      %v2019 = vrot.slane %v2001, 1
      %v2020 = vsel %vm887, %v2017, %v2019
      %2030 = vst [vmem:[#allocation3 + $0x10] sm:$0xff] %v2004
      %2031 = vst [vmem:[#allocation3 + $0x28] sm:$0xff] %v2006
      %2032 = vst [vmem:[#allocation3 + $0x40] sm:$0xff] %v2008
      %2033 = vst [vmem:[#allocation3 + $0x58] sm:$0xff] %v2010
      %2034 = vst [vmem:[#allocation3 + $0x70] sm:$0xff] %v2012
      %2035 = vst [vmem:[#allocation3 + $0x88] sm:$0xff] %v2014
      %2036 = vst [vmem:[#allocation3 + $0xa0] sm:$0xff] %v2016
      %2037 = vst [vmem:[#allocation3 + $0xb8] sm:$0xff] %v2018
      %2038 = vst [vmem:[#allocation3 + $0xd0] sm:$0xff] %v2020
      %v2039 = vld [vmem:[#allocation3] sm:$0xff]
      %v2040 = vld [vmem:[#allocation3 + $0x8] sm:$0xff]
      %v2041 = vld [vmem:[#allocation3 + $0x10] sm:$0xff]
      %v2042 = vld [vmem:[#allocation3 + $0x18] sm:$0xff]
      %v2043 = vld [vmem:[#allocation3 + $0x20] sm:$0xff]
      %v2044 = vld [vmem:[#allocation3 + $0x28] sm:$0xff]
      %v2045 = vld [vmem:[#allocation3 + $0x30] sm:$0xff]
      %v2046 = vld [vmem:[#allocation3 + $0x38] sm:$0xff]
      %v2047 = vld [vmem:[#allocation3 + $0x40] sm:$0xff]
      %v2048 = vld [vmem:[#allocation3 + $0x48] sm:$0xff]
      %v2049 = vld [vmem:[#allocation3 + $0x50] sm:$0xff]
      %v2050 = vld [vmem:[#allocation3 + $0x58] sm:$0xff]
      %v2051 = vld [vmem:[#allocation3 + $0x60] sm:$0xff]
      %v2052 = vld [vmem:[#allocation3 + $0x68] sm:$0xff]
      %v2053 = vld [vmem:[#allocation3 + $0x70] sm:$0xff]
      %v2054 = vld [vmem:[#allocation3 + $0x78] sm:$0xff]
      %v2055 = vld [vmem:[#allocation3 + $0x80] sm:$0xff]
      %v2056 = vld [vmem:[#allocation3 + $0x88] sm:$0xff]
      %v2057 = vld [vmem:[#allocation3 + $0x90] sm:$0xff]
      %v2058 = vld [vmem:[#allocation3 + $0x98] sm:$0xff]
      %v2059 = vld [vmem:[#allocation3 + $0xa0] sm:$0xff]
      %v2060 = vld [vmem:[#allocation3 + $0xa8] sm:$0xff]
      %v2061 = vld [vmem:[#allocation3 + $0xb0] sm:$0xff]
      %v2062 = vld [vmem:[#allocation3 + $0xb8] sm:$0xff]
      %v2063 = vld [vmem:[#allocation3 + $0xc0] sm:$0xff]
      %v2064 = vld [vmem:[#allocation3 + $0xc8] sm:$0xff]
      %v2065 = vld [vmem:[#allocation3 + $0xd0] sm:$0xff]
      %v2066 = vld [vmem:[%s3] sm:$0xf]
      %v2067 = vld [vmem:[%s3 + $0x4] sm:$0xf]
      %v2068 = vld [vmem:[%s3 + $0x8] sm:$0xf]
      %v2069 = vld [vmem:[%s3 + $0xc] sm:$0xf]
      %v2070 = vld [vmem:[%s3 + $0x10] sm:$0xf]
      %v2071 = vld [vmem:[%s3 + $0x14] sm:$0xf]
      %v2072 = vld [vmem:[%s3 + $0x18] sm:$0xf]
      %v2073 = vld [vmem:[%s3 + $0x1c] sm:$0xf]
      %v2074 = vld [vmem:[%s3 + $0x20] sm:$0xf]
      %v2075 = vld [vmem:[%s3 + $0x24] sm:$0xf]
      %v2076 = vld [vmem:[%s3 + $0x28] sm:$0xf]
      %v2077 = vld [vmem:[%s3 + $0x2c] sm:$0xf]
      %v2078 = vld [vmem:[%s3 + $0x30] sm:$0xf]
      %v2079 = vld [vmem:[%s3 + $0x34] sm:$0xf]
      %v2080 = vld [vmem:[%s3 + $0x38] sm:$0xf]
      %v2081 = vld [vmem:[%s3 + $0x3c] sm:$0xf]
      %v2082 = vld [vmem:[%s3 + $0x40] sm:$0xf]
      %v2083 = vld [vmem:[%s3 + $0x44] sm:$0xf]
      %v2084 = vld [vmem:[%s3 + $0x48] sm:$0xf]
      %v2085 = vld [vmem:[%s3 + $0x4c] sm:$0xf]
      %v2086 = vld [vmem:[%s3 + $0x50] sm:$0xf]
      %v2087 = vld [vmem:[%s3 + $0x54] sm:$0xf]
      %v2088 = vld [vmem:[%s3 + $0x58] sm:$0xf]
      %v2089 = vld [vmem:[%s3 + $0x5c] sm:$0xf]
      %v2090 = vld [vmem:[%s3 + $0x60] sm:$0xf]
      %v2091 = vld [vmem:[%s3 + $0x64] sm:$0xf]
      %v2092 = vld [vmem:[%s3 + $0x68] sm:$0xf]
      %v2093 = vld [vmem:[%s3 + $0x6c] sm:$0xf]
      %v2094 = vld [vmem:[%s3 + $0x70] sm:$0xf]
      %v2095 = vld [vmem:[%s3 + $0x74] sm:$0xf]
      %v2096 = vld [vmem:[%s3 + $0x78] sm:$0xf]
      %v2097 = vld [vmem:[%s3 + $0x7c] sm:$0xf]
      %v2098 = vld [vmem:[%s3 + $0x80] sm:$0xf]
      %v2099 = vld [vmem:[%s3 + $0x84] sm:$0xf]
      %v2100 = vld [vmem:[%s3 + $0x88] sm:$0xf]
      %v2101 = vld [vmem:[%s3 + $0x8c] sm:$0xf]
      %v2102 = vld [vmem:[%s3 + $0x90] sm:$0xf]
      %v2103 = vld [vmem:[%s3 + $0x94] sm:$0xf]
      %v2104 = vld [vmem:[%s3 + $0x98] sm:$0xf]
      %v2105 = vld [vmem:[%s3 + $0x9c] sm:$0xf]
      %v2106 = vld [vmem:[%s3 + $0xa0] sm:$0xf]
      %v2107 = vld [vmem:[%s3 + $0xa4] sm:$0xf]
      %v2108 = vld [vmem:[%s3 + $0xa8] sm:$0xf]
      %v2109 = vld [vmem:[%s3 + $0xac] sm:$0xf]
      %v2110 = vld [vmem:[%s3 + $0xb0] sm:$0xf]
      %v2111 = vld [vmem:[%s3 + $0xb4] sm:$0xf]
      %v2112 = vld [vmem:[%s3 + $0xb8] sm:$0xf]
      %v2113 = vld [vmem:[%s3 + $0xbc] sm:$0xf]
      %v2114 = vld [vmem:[%s4] sm:$0x1]
      %v2116 = vlaneseq
      %v2117 = vshrl.u32 %v2116, 7
      %v2118 = vsub.s32 0, %v2117
      %v2119 = vrot.slane %v2114, %v2118
      %v2169 = vunpack.c.l.b16 %v2066
      %v2170 = vunpack.c.l.b16 %v2067
      %v2171 = vunpack.c.l.b16 %v2068
      %v2172 = vunpack.c.l.b16 %v2069
      %v2173 = vunpack.c.l.b16 %v2070
      %v2174 = vunpack.c.l.b16 %v2071
      %v2175 = vunpack.c.l.b16 %v2072
      %v2176 = vunpack.c.l.b16 %v2073
      %v2177 = vunpack.c.l.b16 %v2074
      %v2178 = vunpack.c.l.b16 %v2075
      %v2179 = vunpack.c.l.b16 %v2076
      %v2180 = vunpack.c.l.b16 %v2077
      %v2181 = vunpack.c.l.b16 %v2078
      %v2182 = vunpack.c.l.b16 %v2079
      %v2183 = vunpack.c.l.b16 %v2080
      %v2184 = vunpack.c.l.b16 %v2081
      %v2185 = vunpack.c.l.b16 %v2082
      %v2186 = vunpack.c.l.b16 %v2083
      %v2187 = vunpack.c.l.b16 %v2084
      %v2188 = vunpack.c.l.b16 %v2085
      %v2189 = vunpack.c.l.b16 %v2086
      %v2190 = vunpack.c.l.b16 %v2087
      %v2191 = vunpack.c.l.b16 %v2088
      %v2192 = vunpack.c.l.b16 %v2089
      %v2193 = vunpack.c.l.b16 %v2090
      %v2194 = vunpack.c.l.b16 %v2091
      %v2195 = vunpack.c.l.b16 %v2092
      %v2196 = vunpack.c.l.b16 %v2093
      %v2197 = vunpack.c.l.b16 %v2094
      %v2198 = vunpack.c.l.b16 %v2095
      %v2199 = vunpack.c.l.b16 %v2096
      %v2200 = vunpack.c.l.b16 %v2097
      %v2201 = vunpack.c.l.b16 %v2098
      %v2202 = vunpack.c.l.b16 %v2099
      %v2203 = vunpack.c.l.b16 %v2100
      %v2204 = vunpack.c.l.b16 %v2101
      %v2205 = vunpack.c.l.b16 %v2102
      %v2206 = vunpack.c.l.b16 %v2103
      %v2207 = vunpack.c.l.b16 %v2104
      %v2208 = vunpack.c.l.b16 %v2105
      %v2209 = vunpack.c.l.b16 %v2106
      %v2210 = vunpack.c.l.b16 %v2107
      %v2211 = vunpack.c.l.b16 %v2108
      %v2212 = vunpack.c.l.b16 %v2109
      %v2213 = vunpack.c.l.b16 %v2110
      %v2214 = vunpack.c.l.b16 %v2111
      %v2215 = vunpack.c.l.b16 %v2112
      %v2216 = vunpack.c.l.b16 %v2113
      %v2217 = vpack.c.b16 %v2170, %v2169
      %v2218 = vpack.c.b16 %v2172, %v2171
      %v2219 = vpack.c.b16 %v2174, %v2173
      %v2220 = vpack.c.b16 %v2176, %v2175
      %v2221 = vpack.c.b16 %v2178, %v2177
      %v2222 = vpack.c.b16 %v2180, %v2179
      %v2223 = vpack.c.b16 %v2182, %v2181
      %v2224 = vpack.c.b16 %v2184, %v2183
      %v2225 = vpack.c.b16 %v2186, %v2185
      %v2226 = vpack.c.b16 %v2188, %v2187
      %v2227 = vpack.c.b16 %v2190, %v2189
      %v2228 = vpack.c.b16 %v2192, %v2191
      %v2229 = vpack.c.b16 %v2194, %v2193
      %v2230 = vpack.c.b16 %v2196, %v2195
      %v2231 = vpack.c.b16 %v2198, %v2197
      %v2232 = vpack.c.b16 %v2200, %v2199
      %v2233 = vpack.c.b16 %v2202, %v2201
      %v2234 = vpack.c.b16 %v2204, %v2203
      %v2235 = vpack.c.b16 %v2206, %v2205
      %v2236 = vpack.c.b16 %v2208, %v2207
      %v2237 = vpack.c.b16 %v2210, %v2209
      %v2238 = vpack.c.b16 %v2212, %v2211
      %v2239 = vpack.c.b16 %v2214, %v2213
      %v2240 = vpack.c.b16 %v2216, %v2215
      %2265 = vmatprep.subr.bf16.mxu0 0
      %2266 = vmatpush1.bf16.msra.mxu0 %v2217
      %2267 = vmatprep.subr.bf16.mxu0 0
      %2268 = vmatpush1.bf16.msra.mxu0 %v2218
      %2269 = vmatprep.subr.bf16.mxu0 0
      %2270 = vmatpush1.bf16.msra.mxu0 %v2219
      %2271 = vmatprep.subr.bf16.mxu0 0
      %2272 = vmatpush1.bf16.msra.mxu0 %v2220
      %2273 = vmatprep.subr.bf16.mxu0 0
      %2274 = vmatpush1.bf16.msra.mxu0 %v2221
      %2275 = vmatprep.subr.bf16.mxu0 0
      %2276 = vmatpush1.bf16.msra.mxu0 %v2222
      %2277 = vmatprep.subr.bf16.mxu0 0
      %2278 = vmatpush1.bf16.msra.mxu0 %v2223
      %2279 = vmatprep.subr.bf16.mxu0 0
      %2280 = vmatpush1.bf16.msra.mxu0 %v2224
      %2281 = vmatprep.subr.bf16.mxu0 0
      %2282 = vmatpush1.bf16.msra.mxu0 %v2225
      %2283 = vmatprep.subr.bf16.mxu0 0
      %2284 = vmatpush1.bf16.msra.mxu0 %v2226
      %2285 = vmatprep.subr.bf16.mxu0 0
      %2286 = vmatpush1.bf16.msra.mxu0 %v2227
      %2287 = vmatprep.subr.bf16.mxu0 0
      %2288 = vmatpush1.bf16.msra.mxu0 %v2228
      %2289 = vmatprep.subr.bf16.mxu0 0
      %2290 = vmatpush1.bf16.msra.mxu0 %v2229
      %2291 = vmatprep.subr.bf16.mxu0 0
      %2292 = vmatpush1.bf16.msra.mxu0 %v2230
      %2293 = vmatprep.subr.bf16.mxu0 0
      %2294 = vmatpush1.bf16.msra.mxu0 %v2231
      %2295 = vmatprep.subr.bf16.mxu0 0
      %2296 = vmatpush1.bf16.msra.mxu0 %v2232
      %2297 = vmatprep.mubr.bf16.mxu0 %v2040
      %2298 = vmatmul.mubr.bf16.gmra.mrb[0].mxu0 %v2039
      %v2299 = vpop.f32.mrb[0].mxu0
      %v2300 = vadd.f32 %v2119, %v2299
      %v2301 = vpop.f32.mrb[0].mxu0
      %v2302 = vpop.f32.mrb[0].mxu0
      %v2303 = vadd.f32 %v2119, %v2302
      %v2304 = vpop.f32.mrb[0].mxu0
      %2305 = vmatprep.mubr.bf16.mxu0 %v2043
      %2306 = vmatmul.mubr.bf16.gmra.mrb[0].mxu0 %v2042
      %v2307 = vpop.f32.mrb[0].mxu0
      %v2308 = vadd.f32 %v2119, %v2307
      %v2309 = vpop.f32.mrb[0].mxu0
      %v2310 = vpop.f32.mrb[0].mxu0
      %v2311 = vadd.f32 %v2119, %v2310
      %v2312 = vpop.f32.mrb[0].mxu0
      %2313 = vmatprep.mubr.bf16.mxu0 %v2046
      %2314 = vmatmul.mubr.bf16.gmra.mrb[0].mxu0 %v2045
      %v2315 = vpop.f32.mrb[0].mxu0
      %v2316 = vadd.f32 %v2119, %v2315
      %v2317 = vpop.f32.mrb[0].mxu0
      %v2318 = vpop.f32.mrb[0].mxu0
      %v2319 = vadd.f32 %v2119, %v2318
      %v2320 = vpop.f32.mrb[0].mxu0
      %2321 = vmatprep.mubr.bf16.mxu0 %v2049
      %2322 = vmatmul.mubr.bf16.gmra.mrb[0].mxu0 %v2048
      %v2323 = vpop.f32.mrb[0].mxu0
      %v2324 = vadd.f32 %v2119, %v2323
      %v2325 = vpop.f32.mrb[0].mxu0
      %v2326 = vpop.f32.mrb[0].mxu0
      %v2327 = vadd.f32 %v2119, %v2326
      %v2328 = vpop.f32.mrb[0].mxu0
      %2329 = vmatprep.mubr.bf16.mxu0 %v2052
      %2330 = vmatmul.mubr.bf16.gmra.mrb[0].mxu0 %v2051
      %v2331 = vpop.f32.mrb[0].mxu0
      %v2332 = vadd.f32 %v2119, %v2331
      %v2333 = vpop.f32.mrb[0].mxu0
      %v2334 = vpop.f32.mrb[0].mxu0
      %v2335 = vadd.f32 %v2119, %v2334
      %v2336 = vpop.f32.mrb[0].mxu0
      %2337 = vmatprep.mubr.bf16.mxu0 %v2055
      %2338 = vmatmul.mubr.bf16.gmra.mrb[0].mxu0 %v2054
      %v2339 = vpop.f32.mrb[0].mxu0
      %v2340 = vadd.f32 %v2119, %v2339
      %v2341 = vpop.f32.mrb[0].mxu0
      %v2342 = vpop.f32.mrb[0].mxu0
      %v2343 = vadd.f32 %v2119, %v2342
      %v2344 = vpop.f32.mrb[0].mxu0
      %2345 = vmatprep.mubr.bf16.mxu0 %v2058
      %2346 = vmatmul.mubr.bf16.gmra.mrb[0].mxu0 %v2057
      %v2347 = vpop.f32.mrb[0].mxu0
      %v2348 = vadd.f32 %v2119, %v2347
      %v2349 = vpop.f32.mrb[0].mxu0
      %v2350 = vpop.f32.mrb[0].mxu0
      %v2351 = vadd.f32 %v2119, %v2350
      %v2352 = vpop.f32.mrb[0].mxu0
      %2353 = vmatprep.mubr.bf16.mxu0 %v2061
      %2354 = vmatmul.mubr.bf16.gmra.mrb[0].mxu0 %v2060
      %v2355 = vpop.f32.mrb[0].mxu0
      %v2356 = vadd.f32 %v2119, %v2355
      %v2357 = vpop.f32.mrb[0].mxu0
      %v2358 = vpop.f32.mrb[0].mxu0
      %v2359 = vadd.f32 %v2119, %v2358
      %v2360 = vpop.f32.mrb[0].mxu0
      %2361 = vmatprep.mubr.bf16.mxu0 %v2064
      %2362 = vmatmul.mubr.bf16.gmra.mrb[0].mxu0 %v2063
      %v2363 = vpop.f32.mrb[0].mxu0
      %v2364 = vadd.f32 %v2119, %v2363
      %v2365 = vpop.f32.mrb[0].mxu0
      %v2366 = vpop.f32.mrb[0].mxu0
      %v2367 = vadd.f32 %v2119, %v2366
      %v2368 = vpop.f32.mrb[0].mxu0
      %2369 = vdwg.mxu0
      %2370 = vmatprep.subr.bf16.mxu0 0
      %2371 = vmatpush1.bf16.msra.mxu0 %v2233
      %2372 = vmatprep.subr.bf16.mxu0 0
      %2373 = vmatpush1.bf16.msra.mxu0 %v2234
      %2374 = vmatprep.subr.bf16.mxu0 0
      %2375 = vmatpush1.bf16.msra.mxu0 %v2235
      %2376 = vmatprep.subr.bf16.mxu0 0
      %2377 = vmatpush1.bf16.msra.mxu0 %v2236
      %2378 = vmatprep.subr.bf16.mxu0 0
      %2379 = vmatpush1.bf16.msra.mxu0 %v2237
      %2380 = vmatprep.subr.bf16.mxu0 0
      %2381 = vmatpush1.bf16.msra.mxu0 %v2238
      %2382 = vmatprep.subr.bf16.mxu0 0
      %2383 = vmatpush1.bf16.msra.mxu0 %v2239
      %2384 = vmatprep.subr.bf16.mxu0 0
      %2385 = vmatpush1.bf16.msra.mxu0 %v2240
      %2386 = vmatprep.subr.bf16.mxu0 0
      %2387 = vmatpush1.bf16.msra.mxu0 0
      %2388 = vmatprep.subr.bf16.mxu0 0
      %2389 = vmatpush1.bf16.msra.mxu0 0
      %2390 = vmatprep.subr.bf16.mxu0 0
      %2391 = vmatpush1.bf16.msra.mxu0 0
      %2392 = vmatprep.subr.bf16.mxu0 0
      %2393 = vmatpush1.bf16.msra.mxu0 0
      %2394 = vmatprep.subr.bf16.mxu0 0
      %2395 = vmatpush1.bf16.msra.mxu0 0
      %2396 = vmatprep.subr.bf16.mxu0 0
      %2397 = vmatpush1.bf16.msra.mxu0 0
      %2398 = vmatprep.subr.bf16.mxu0 0
      %2399 = vmatpush1.bf16.msra.mxu0 0
      %2400 = vmatprep.subr.bf16.mxu0 0
      %2401 = vmatpush1.bf16.msra.mxu0 0
      %2402 = vmatprep.mubr.bf16.mxu0 0
      %2403 = vmatmul.mubr.bf16.gmra.mrb[0].mxu0 %v2041
      %v2404 = vpop.f32.mrb[0].mxu0
      %v2405 = vadd.f32 %v2300, %v2404
      %v2406 = vpop.f32.mrb[0].mxu0
      %v2407 = vpop.f32.mrb[0].mxu0
      %v2408 = vadd.f32 %v2303, %v2407
      %v2409 = vpop.f32.mrb[0].mxu0
      %2410 = vmatprep.mubr.bf16.mxu0 0
      %2411 = vmatmul.mubr.bf16.gmra.mrb[0].mxu0 %v2044
      %v2412 = vpop.f32.mrb[0].mxu0
      %v2413 = vadd.f32 %v2308, %v2412
      %v2414 = vpop.f32.mrb[0].mxu0
      %v2415 = vpop.f32.mrb[0].mxu0
      %v2416 = vadd.f32 %v2311, %v2415
      %v2417 = vpop.f32.mrb[0].mxu0
      %2418 = vmatprep.mubr.bf16.mxu0 0
      %2419 = vmatmul.mubr.bf16.gmra.mrb[0].mxu0 %v2047
      %v2420 = vpop.f32.mrb[0].mxu0
      %v2421 = vadd.f32 %v2316, %v2420
      %v2422 = vpop.f32.mrb[0].mxu0
      %v2423 = vpop.f32.mrb[0].mxu0
      %v2424 = vadd.f32 %v2319, %v2423
      %v2425 = vpop.f32.mrb[0].mxu0
      %2426 = vmatprep.mubr.bf16.mxu0 0
      %2427 = vmatmul.mubr.bf16.gmra.mrb[0].mxu0 %v2050
      %v2428 = vpop.f32.mrb[0].mxu0
      %v2429 = vadd.f32 %v2324, %v2428
      %v2430 = vpop.f32.mrb[0].mxu0
      %v2431 = vpop.f32.mrb[0].mxu0
      %v2432 = vadd.f32 %v2327, %v2431
      %v2433 = vpop.f32.mrb[0].mxu0
      %2434 = vmatprep.mubr.bf16.mxu0 0
      %2435 = vmatmul.mubr.bf16.gmra.mrb[0].mxu0 %v2053
      %v2436 = vpop.f32.mrb[0].mxu0
      %v2437 = vadd.f32 %v2332, %v2436
      %v2438 = vpop.f32.mrb[0].mxu0
      %v2439 = vpop.f32.mrb[0].mxu0
      %v2440 = vadd.f32 %v2335, %v2439
      %v2441 = vpop.f32.mrb[0].mxu0
      %2442 = vmatprep.mubr.bf16.mxu0 0
      %2443 = vmatmul.mubr.bf16.gmra.mrb[0].mxu0 %v2056
      %v2444 = vpop.f32.mrb[0].mxu0
      %v2445 = vadd.f32 %v2340, %v2444
      %v2446 = vpop.f32.mrb[0].mxu0
      %v2447 = vpop.f32.mrb[0].mxu0
      %v2448 = vadd.f32 %v2343, %v2447
      %v2449 = vpop.f32.mrb[0].mxu0
      %2450 = vmatprep.mubr.bf16.mxu0 0
      %2451 = vmatmul.mubr.bf16.gmra.mrb[0].mxu0 %v2059
      %v2452 = vpop.f32.mrb[0].mxu0
      %v2453 = vadd.f32 %v2348, %v2452
      %v2454 = vpop.f32.mrb[0].mxu0
      %v2455 = vpop.f32.mrb[0].mxu0
      %v2456 = vadd.f32 %v2351, %v2455
      %v2457 = vpop.f32.mrb[0].mxu0
      %2458 = vmatprep.mubr.bf16.mxu0 0
      %2459 = vmatmul.mubr.bf16.gmra.mrb[0].mxu0 %v2062
      %v2460 = vpop.f32.mrb[0].mxu0
      %v2461 = vadd.f32 %v2356, %v2460
      %v2462 = vpop.f32.mrb[0].mxu0
      %v2463 = vpop.f32.mrb[0].mxu0
      %v2464 = vadd.f32 %v2359, %v2463
      %v2465 = vpop.f32.mrb[0].mxu0
      %2466 = vmatprep.mubr.bf16.mxu0 0
      %2467 = vmatmul.mubr.bf16.gmra.mrb[0].mxu0 %v2065
      %v2468 = vpop.f32.mrb[0].mxu0
      %v2469 = vadd.f32 %v2364, %v2468
      %v2470 = vpop.f32.mrb[0].mxu0
      %v2471 = vpop.f32.mrb[0].mxu0
      %v2472 = vadd.f32 %v2367, %v2471
      %v2473 = vpop.f32.mrb[0].mxu0
      %2474 = vdwg.mxu0
      %v2475 = vmax.f32 %v2405, 0.0
      %v2476 = vmax.f32 %v2408, 0.0
      %v2477 = vmax.f32 %v2413, 0.0
      %v2478 = vmax.f32 %v2416, 0.0
      %v2479 = vmax.f32 %v2421, 0.0
      %v2480 = vmax.f32 %v2424, 0.0
      %v2481 = vmax.f32 %v2429, 0.0
      %v2482 = vmax.f32 %v2432, 0.0
      %v2483 = vmax.f32 %v2437, 0.0
      %v2484 = vmax.f32 %v2440, 0.0
      %v2485 = vmax.f32 %v2445, 0.0
      %v2486 = vmax.f32 %v2448, 0.0
      %v2487 = vmax.f32 %v2453, 0.0
      %v2488 = vmax.f32 %v2456, 0.0
      %v2489 = vmax.f32 %v2461, 0.0
      %v2490 = vmax.f32 %v2464, 0.0
      %v2491 = vmax.f32 %v2469, 0.0
      %v2492 = vmax.f32 %v2472, 0.0
      %2493 = vst [vmem:[#allocation4] sm:$0xff] %v2475
      %2494 = vst [vmem:[#allocation4 + $0x8] sm:$0xff] %v2476
      %2495 = vst [vmem:[#allocation4 + $0x10] sm:$0xff] %v2477
      %2496 = vst [vmem:[#allocation4 + $0x18] sm:$0xff] %v2478
      %2497 = vst [vmem:[#allocation4 + $0x20] sm:$0xff] %v2479
      %2498 = vst [vmem:[#allocation4 + $0x28] sm:$0xff] %v2480
      %2499 = vst [vmem:[#allocation4 + $0x30] sm:$0xff] %v2481
      %2500 = vst [vmem:[#allocation4 + $0x38] sm:$0xff] %v2482
      %2501 = vst [vmem:[#allocation4 + $0x40] sm:$0xff] %v2483
      %2502 = vst [vmem:[#allocation4 + $0x48] sm:$0xff] %v2484
      %2503 = vst [vmem:[#allocation4 + $0x50] sm:$0xff] %v2485
      %2504 = vst [vmem:[#allocation4 + $0x58] sm:$0xff] %v2486
      %2505 = vst [vmem:[#allocation4 + $0x60] sm:$0xff] %v2487
      %2506 = vst [vmem:[#allocation4 + $0x68] sm:$0xff] %v2488
      %2507 = vst [vmem:[#allocation4 + $0x70] sm:$0xff] %v2489
      %2508 = vst [vmem:[#allocation4 + $0x78] sm:$0xff] %v2490
      %2509 = vst [vmem:[#allocation4 + $0x80] sm:$0xff] %v2491
      %2510 = vst [vmem:[#allocation4 + $0x88] sm:$0xff] %v2492
      %v2511 = vld [vmem:[#allocation4] ss:$2 sm:$0xff]
      %v2512 = vpack.c.bf16 %v2511, %v2511
      %2513 = vst [vmem:[#allocation5] sm:$0xf] %v2512
      %s2514 = scalar_lea.vmem [#allocation4], 1
      %v2515 = vld [vmem:[%s2514] ss:$2 sm:$0xff]
      %v2516 = vpack.c.bf16 %v2515, %v2515
      %2517 = vst [vmem:[#allocation5 + $0x8] sm:$0xf] %v2516
      %s2518 = scalar_lea.vmem [#allocation4], 18
      %v2519 = vld [vmem:[%s2518] ss:$2 sm:$0xff]
      %v2520 = vpack.c.bf16 %v2519, %v2519
      %v2522 = vrot.slane %v2520, 4
      %2524 = vst [vmem:[#allocation5] sm:$0xf0] %v2522
      %s2525 = scalar_lea.vmem [#allocation4], 19
      %v2526 = vld [vmem:[%s2525] ss:$2 sm:$0xff]
      %v2527 = vpack.c.bf16 %v2526, %v2526
      %v2529 = vrot.slane %v2527, 4
      %2531 = vst [vmem:[#allocation5 + $0x8] sm:$0xf0] %v2529
      %s2532 = scalar_lea.vmem [#allocation4], 36
      %v2533 = vld [vmem:[%s2532] ss:$2 sm:$0xff]
      %v2534 = vpack.c.bf16 %v2533, %v2533
      %2535 = vst [vmem:[#allocation5 + $0x10] sm:$0xf] %v2534
      %s2536 = scalar_lea.vmem [#allocation4], 37
      %v2537 = vld [vmem:[%s2536] ss:$2 sm:$0xff]
      %v2538 = vpack.c.bf16 %v2537, %v2537
      %2539 = vst [vmem:[#allocation5 + $0x18] sm:$0xf] %v2538
      %s2540 = scalar_lea.vmem [#allocation4], 54
      %v2541 = vld [vmem:[%s2540] ss:$2 sm:$0xff]
      %v2542 = vpack.c.bf16 %v2541, %v2541
      %v2544 = vrot.slane %v2542, 4
      %2546 = vst [vmem:[#allocation5 + $0x10] sm:$0xf0] %v2544
      %s2547 = scalar_lea.vmem [#allocation4], 55
      %v2548 = vld [vmem:[%s2547] ss:$2 sm:$0xff]
      %v2549 = vpack.c.bf16 %v2548, %v2548
      %v2551 = vrot.slane %v2549, 4
      %2553 = vst [vmem:[#allocation5 + $0x18] sm:$0xf0] %v2551
      %s2554 = scalar_lea.vmem [#allocation4], 72
      %v2555 = vld [vmem:[%s2554] ss:$2 sm:$0xff]
      %v2556 = vpack.c.bf16 %v2555, %v2555
      %2557 = vst [vmem:[#allocation5 + $0x20] sm:$0xf] %v2556
      %s2558 = scalar_lea.vmem [#allocation4], 73
      %v2559 = vld [vmem:[%s2558] ss:$2 sm:$0xff]
      %v2560 = vpack.c.bf16 %v2559, %v2559
      %2561 = vst [vmem:[#allocation5 + $0x28] sm:$0xf] %v2560
      %s2562 = scalar_lea.vmem [#allocation4], 90
      %v2563 = vld [vmem:[%s2562] ss:$2 sm:$0xff]
      %v2564 = vpack.c.bf16 %v2563, %v2563
      %v2566 = vrot.slane %v2564, 4
      %2568 = vst [vmem:[#allocation5 + $0x20] sm:$0xf0] %v2566
      %s2569 = scalar_lea.vmem [#allocation4], 91
      %v2570 = vld [vmem:[%s2569] ss:$2 sm:$0xff]
      %v2571 = vpack.c.bf16 %v2570, %v2570
      %v2573 = vrot.slane %v2571, 4
      %2575 = vst [vmem:[#allocation5 + $0x28] sm:$0xf0] %v2573
      %s2576 = scalar_lea.vmem [#allocation4], 108
      %v2577 = vld [vmem:[%s2576] ss:$2 sm:$0xff]
      %v2578 = vpack.c.bf16 %v2577, %v2577
      %2579 = vst [vmem:[#allocation5 + $0x30] sm:$0xf] %v2578
      %s2580 = scalar_lea.vmem [#allocation4], 109
      %v2581 = vld [vmem:[%s2580] ss:$2 sm:$0xff]
      %v2582 = vpack.c.bf16 %v2581, %v2581
      %2583 = vst [vmem:[#allocation5 + $0x38] sm:$0xf] %v2582
      %s2584 = scalar_lea.vmem [#allocation4], 126
      %v2585 = vld [vmem:[%s2584] ss:$2 sm:$0xff]
      %v2586 = vpack.c.bf16 %v2585, %v2585
      %v2588 = vrot.slane %v2586, 4
      %2590 = vst [vmem:[#allocation5 + $0x30] sm:$0xf0] %v2588
      %s2591 = scalar_lea.vmem [#allocation4], 127
      %v2592 = vld [vmem:[%s2591] ss:$2 sm:$0xff]
      %v2593 = vpack.c.bf16 %v2592, %v2592
      %v2595 = vrot.slane %v2593, 4
      %2597 = vst [vmem:[#allocation5 + $0x38] sm:$0xf0] %v2595
      %v2598 = vld [vmem:[#allocation5] sm:$0xff]
      %v2599 = vld [vmem:[#allocation5 + $0x8] sm:$0xff]
      %v2600 = vld [vmem:[#allocation5 + $0x10] sm:$0xff]
      %v2601 = vld [vmem:[#allocation5 + $0x18] sm:$0xff]
      %v2602 = vld [vmem:[#allocation5 + $0x20] sm:$0xff]
      %v2603 = vld [vmem:[#allocation5 + $0x28] sm:$0xff]
      %v2604 = vld [vmem:[#allocation5 + $0x30] sm:$0xff]
      %v2605 = vld [vmem:[#allocation5 + $0x38] sm:$0xff]
      %v2606 = vld [vmem:[%s5] sm:$0xf]
      %v2607 = vld [vmem:[%s5 + $0x4] sm:$0xf]
      %v2608 = vld [vmem:[%s5 + $0x8] sm:$0xf]
      %v2609 = vld [vmem:[%s5 + $0xc] sm:$0xf]
      %v2610 = vld [vmem:[%s5 + $0x10] sm:$0xf]
      %v2611 = vld [vmem:[%s5 + $0x14] sm:$0xf]
      %v2612 = vld [vmem:[%s5 + $0x18] sm:$0xf]
      %v2613 = vld [vmem:[%s5 + $0x1c] sm:$0xf]
      %v2614 = vld [vmem:[%s5 + $0x20] sm:$0xf]
      %v2615 = vld [vmem:[%s5 + $0x24] sm:$0xf]
      %v2616 = vld [vmem:[%s5 + $0x28] sm:$0xf]
      %v2617 = vld [vmem:[%s5 + $0x2c] sm:$0xf]
      %v2618 = vld [vmem:[%s5 + $0x30] sm:$0xf]
      %v2619 = vld [vmem:[%s5 + $0x34] sm:$0xf]
      %v2620 = vld [vmem:[%s5 + $0x38] sm:$0xf]
      %v2621 = vld [vmem:[%s5 + $0x3c] sm:$0xf]
      %v2622 = vld [vmem:[%s5 + $0x40] sm:$0xf]
      %v2623 = vld [vmem:[%s5 + $0x44] sm:$0xf]
      %v2624 = vld [vmem:[%s5 + $0x48] sm:$0xf]
      %v2625 = vld [vmem:[%s5 + $0x4c] sm:$0xf]
      %v2626 = vld [vmem:[%s5 + $0x50] sm:$0xf]
      %v2627 = vld [vmem:[%s5 + $0x54] sm:$0xf]
      %v2628 = vld [vmem:[%s5 + $0x58] sm:$0xf]
      %v2629 = vld [vmem:[%s5 + $0x5c] sm:$0xf]
      %v2630 = vld [vmem:[%s5 + $0x60] sm:$0xf]
      %v2631 = vld [vmem:[%s5 + $0x64] sm:$0xf]
      %v2632 = vld [vmem:[%s5 + $0x68] sm:$0xf]
      %v2633 = vld [vmem:[%s5 + $0x6c] sm:$0xf]
      %v2634 = vld [vmem:[%s5 + $0x70] sm:$0xf]
      %v2635 = vld [vmem:[%s5 + $0x74] sm:$0xf]
      %v2636 = vld [vmem:[%s5 + $0x78] sm:$0xf]
      %v2637 = vld [vmem:[%s5 + $0x7c] sm:$0xf]
      %v2638 = vld [vmem:[%s6] sm:$0x1]
      %v2640 = vlaneseq
      %v2641 = vshrl.u32 %v2640, 7
      %v2642 = vsub.s32 0, %v2641
      %v2643 = vrot.slane %v2638, %v2642
      %v2677 = vunpack.c.l.b16 %v2606
      %v2678 = vunpack.c.l.b16 %v2607
      %v2679 = vunpack.c.l.b16 %v2608
      %v2680 = vunpack.c.l.b16 %v2609
      %v2681 = vunpack.c.l.b16 %v2610
      %v2682 = vunpack.c.l.b16 %v2611
      %v2683 = vunpack.c.l.b16 %v2612
      %v2684 = vunpack.c.l.b16 %v2613
      %v2685 = vunpack.c.l.b16 %v2614
      %v2686 = vunpack.c.l.b16 %v2615
      %v2687 = vunpack.c.l.b16 %v2616
      %v2688 = vunpack.c.l.b16 %v2617
      %v2689 = vunpack.c.l.b16 %v2618
      %v2690 = vunpack.c.l.b16 %v2619
      %v2691 = vunpack.c.l.b16 %v2620
      %v2692 = vunpack.c.l.b16 %v2621
      %v2693 = vunpack.c.l.b16 %v2622
      %v2694 = vunpack.c.l.b16 %v2623
      %v2695 = vunpack.c.l.b16 %v2624
      %v2696 = vunpack.c.l.b16 %v2625
      %v2697 = vunpack.c.l.b16 %v2626
      %v2698 = vunpack.c.l.b16 %v2627
      %v2699 = vunpack.c.l.b16 %v2628
      %v2700 = vunpack.c.l.b16 %v2629
      %v2701 = vunpack.c.l.b16 %v2630
      %v2702 = vunpack.c.l.b16 %v2631
      %v2703 = vunpack.c.l.b16 %v2632
      %v2704 = vunpack.c.l.b16 %v2633
      %v2705 = vunpack.c.l.b16 %v2634
      %v2706 = vunpack.c.l.b16 %v2635
      %v2707 = vunpack.c.l.b16 %v2636
      %v2708 = vunpack.c.l.b16 %v2637
      %v2709 = vpack.c.b16 %v2678, %v2677
      %v2710 = vpack.c.b16 %v2680, %v2679
      %v2711 = vpack.c.b16 %v2682, %v2681
      %v2712 = vpack.c.b16 %v2684, %v2683
      %v2713 = vpack.c.b16 %v2686, %v2685
      %v2714 = vpack.c.b16 %v2688, %v2687
      %v2715 = vpack.c.b16 %v2690, %v2689
      %v2716 = vpack.c.b16 %v2692, %v2691
      %v2717 = vpack.c.b16 %v2694, %v2693
      %v2718 = vpack.c.b16 %v2696, %v2695
      %v2719 = vpack.c.b16 %v2698, %v2697
      %v2720 = vpack.c.b16 %v2700, %v2699
      %v2721 = vpack.c.b16 %v2702, %v2701
      %v2722 = vpack.c.b16 %v2704, %v2703
      %v2723 = vpack.c.b16 %v2706, %v2705
      %v2724 = vpack.c.b16 %v2708, %v2707
      %2741 = vmatprep.subr.bf16.mxu0 0
      %2742 = vmatpush1.bf16.msra.mxu0 %v2709
      %2743 = vmatprep.subr.bf16.mxu0 0
      %2744 = vmatpush1.bf16.msra.mxu0 %v2710
      %2745 = vmatprep.subr.bf16.mxu0 0
      %2746 = vmatpush1.bf16.msra.mxu0 %v2711
      %2747 = vmatprep.subr.bf16.mxu0 0
      %2748 = vmatpush1.bf16.msra.mxu0 %v2712
      %2749 = vmatprep.subr.bf16.mxu0 0
      %2750 = vmatpush1.bf16.msra.mxu0 %v2713
      %2751 = vmatprep.subr.bf16.mxu0 0
      %2752 = vmatpush1.bf16.msra.mxu0 %v2714
      %2753 = vmatprep.subr.bf16.mxu0 0
      %2754 = vmatpush1.bf16.msra.mxu0 %v2715
      %2755 = vmatprep.subr.bf16.mxu0 0
      %2756 = vmatpush1.bf16.msra.mxu0 %v2716
      %2757 = vmatprep.subr.bf16.mxu0 0
      %2758 = vmatpush1.bf16.msra.mxu0 %v2717
      %2759 = vmatprep.subr.bf16.mxu0 0
      %2760 = vmatpush1.bf16.msra.mxu0 %v2718
      %2761 = vmatprep.subr.bf16.mxu0 0
      %2762 = vmatpush1.bf16.msra.mxu0 %v2719
      %2763 = vmatprep.subr.bf16.mxu0 0
      %2764 = vmatpush1.bf16.msra.mxu0 %v2720
      %2765 = vmatprep.subr.bf16.mxu0 0
      %2766 = vmatpush1.bf16.msra.mxu0 %v2721
      %2767 = vmatprep.subr.bf16.mxu0 0
      %2768 = vmatpush1.bf16.msra.mxu0 %v2722
      %2769 = vmatprep.subr.bf16.mxu0 0
      %2770 = vmatpush1.bf16.msra.mxu0 %v2723
      %2771 = vmatprep.subr.bf16.mxu0 0
      %2772 = vmatpush1.bf16.msra.mxu0 %v2724
      %2773 = vmatprep.mubr.bf16.mxu0 %v2599
      %2774 = vmatmul.mubr.bf16.gmra.mrb[0].mxu0 %v2598
      %v2775 = vpop.f32.mrb[0].mxu0
      %v2776 = vadd.f32 %v2643, %v2775
      %v2777 = vpop.f32.mrb[0].mxu0
      %v2778 = vpop.f32.mrb[0].mxu0
      %v2779 = vadd.f32 %v2643, %v2778
      %v2780 = vpop.f32.mrb[0].mxu0
      %2781 = vmatprep.mubr.bf16.mxu0 %v2601
      %2782 = vmatmul.mubr.bf16.gmra.mrb[0].mxu0 %v2600
      %v2783 = vpop.f32.mrb[0].mxu0
      %v2784 = vadd.f32 %v2643, %v2783
      %v2785 = vpop.f32.mrb[0].mxu0
      %v2786 = vpop.f32.mrb[0].mxu0
      %v2787 = vadd.f32 %v2643, %v2786
      %v2788 = vpop.f32.mrb[0].mxu0
      %2789 = vmatprep.mubr.bf16.mxu0 %v2603
      %2790 = vmatmul.mubr.bf16.gmra.mrb[0].mxu0 %v2602
      %v2791 = vpop.f32.mrb[0].mxu0
      %v2792 = vadd.f32 %v2643, %v2791
      %v2793 = vpop.f32.mrb[0].mxu0
      %v2794 = vpop.f32.mrb[0].mxu0
      %v2795 = vadd.f32 %v2643, %v2794
      %v2796 = vpop.f32.mrb[0].mxu0
      %2797 = vmatprep.mubr.bf16.mxu0 %v2605
      %2798 = vmatmul.mubr.bf16.gmra.mrb[0].mxu0 %v2604
      %v2799 = vpop.f32.mrb[0].mxu0
      %v2800 = vadd.f32 %v2643, %v2799
      %v2801 = vpop.f32.mrb[0].mxu0
      %v2802 = vpop.f32.mrb[0].mxu0
      %v2803 = vadd.f32 %v2643, %v2802
      %v2804 = vpop.f32.mrb[0].mxu0
      %2805 = vdwg.mxu0
      %v2806 = vmax.f32 %v2776, 0.0
      %v2807 = vmax.f32 %v2779, 0.0
      %v2808 = vmax.f32 %v2784, 0.0
      %v2809 = vmax.f32 %v2787, 0.0
      %v2810 = vmax.f32 %v2792, 0.0
      %v2811 = vmax.f32 %v2795, 0.0
      %v2812 = vmax.f32 %v2800, 0.0
      %v2813 = vmax.f32 %v2803, 0.0
      %2814 = vst [vmem:[%s280] sm:$0xff] %v2806
      %2815 = vst [vmem:[%s280 + $0x8] sm:$0xff] %v2807
      %2816 = vst [vmem:[%s280 + $0x10] sm:$0xff] %v2808
      %2817 = vst [vmem:[%s280 + $0x18] sm:$0xff] %v2809
      %2818 = vst [vmem:[%s280 + $0x20] sm:$0xff] %v2810
      %2819 = vst [vmem:[%s280 + $0x28] sm:$0xff] %v2811
      %2820 = vst [vmem:[%s280 + $0x30] sm:$0xff] %v2812
      %2821 = vst [vmem:[%s280 + $0x38] sm:$0xff] %v2813
      %s2822 = smul.u32 8, %s18
      %p2823 = scmp.lt.s32.totalorder %s2822, 15
      %s2824 = scalar_select %p2823, %s2822, 15
      %s2825 = smul.addr %s2824, 8
      %s2826 = scalar_lea.vmem %s7, %s2825
      // Predicated region
      $region49: #{encoder_layer_forward.1} parent=47 // pred_check
        %p2827 = pneg %p188
      $region50: #{encoder_layer_forward.1} parent=47 // pred_check_branch
        %2829 = sbr.rel (%p2827) target = $region52
      $region51: #{encoder_layer_forward.1} parent=47 // pred_region
        %s2830 = smul.u32 8, %s18
      $region52: #{encoder_layer_forward.1} parent=47 // pred_fallthru
        _
    $region48: #{encoder_layer_forward.1} parent=5 // pred_fallthru
      _
    %p2831 = scmp.le.s32.totalorder 2, %s13
    // Predicated region
    $region53: #{encoder_layer_forward.1} parent=5 // pred_check
      %p2832 = pneg %p2831
    $region54: #{encoder_layer_forward.1} parent=5 // pred_check_branch
      %2834 = sbr.rel (%p2832) target = $region56
    $region55: #{encoder_layer_forward.1} parent=5 // pred_region
      %s2835 = ssub.s32 %s13, 2
      // Predicated region
      $region57: #{encoder_layer_forward.1} parent=55 // pred_check
        %p2836 = pneg %p194
      $region58: #{encoder_layer_forward.1} parent=55 // pred_check_branch
        %2838 = sbr.rel (%p2836) target = $region60
      $region59: #{encoder_layer_forward.1} parent=55 // pred_region
        %s2839 = smul.u32 8, %s19
        %p2840 = scmp.lt.s32.totalorder %s2839, 15
        %s2841 = scalar_select %p2840, %s2839, 15
        %s2842 = smul.addr %s2841, 8
        %s2843 = scalar_lea.vmem %s7, %s2842
      $region60: #{encoder_layer_forward.1} parent=55 // pred_fallthru
        _
    $region56: #{encoder_layer_forward.1} parent=5 // pred_fallthru
      _
  $region6: #{encoder_layer_forward.1} parent=0 // loop_footer
    %s17 = sadd.s32 1, %s13
  $region7: #{encoder_layer_forward.1} parent=0 // loop_footer_branch
    %12 = sbr.rel target = $region3
  $region8: #{encoder_layer_forward.1} parent=0 // loop_exit
    _

</llo_original>
